<compile_context>
chip_gen: v7x
topology: tpu7x:2x2x1
jax: 0.10.0
libtpu: 0.0.40
codegen_flags: <defaults>
</compile_context>

<pallas_src>
from functools import partial

import jax
import jax.numpy as jnp
from jax import lax
from jax.experimental import pallas as pl
from jax.experimental.pallas import tpu as pltpu

BN_EPS = 1e-5
HIDDEN = 16  # fixed hidden width of the PyTorch module


def _round_up(x, m):
    return (x + m - 1) // m * m


def make_mlp_kernel(layer_shapes, batch, rows_per_batch, w_offsets, bn_offset):
    """Fused kernel for the whole MLP.

    Kernel args:
      x_ref : (B, Cin, H*W)    NCHW with the spatial dims flattened (free reshape)
      p_ref : (max_C, 128)     packed [all conv weights | gamma/beta per layer]
      o_ref : (B, Cout_last, H*W)
    """
    rows = batch * rows_per_batch  # total BN reduction length (N*H*W)

    def kernel(x_ref, p_ref, o_ref):
        params = p_ref[...]  # single tiny packed-parameter load

        # Lane-concat the per-batch slabs inside the kernel (replaces the old HBM
        # transpose): (B, Cin, HW) -> (Cin, B*HW).  HW and B*HW are multiples of 128,
        # so everything stays lane-aligned / unmasked.
        h = jnp.concatenate([x_ref[b] for b in range(batch)], axis=1)

        inv_n = jnp.float32(1.0 / rows)
        ones_col = jnp.ones((rows, 1), jnp.float32)  # MXU reduction vector (hoisted)

        for l, (cout, cin) in enumerate(layer_shapes):
            woff = w_offsets[l]
            w = params[:cout, woff:woff + cin]                       # (cout, cin)
            gamma = params[:cout, bn_offset + 2 * l:bn_offset + 2 * l + 1]  # (cout, 1)
            beta = params[:cout, bn_offset + 2 * l + 1:bn_offset + 2 * l + 2]

            # 1x1 conv == (Cout, Cin) @ (Cin, rows) on the MXU.
            # Conv bias intentionally omitted: training-mode BN's mean subtraction
            # cancels a per-channel additive bias exactly.
            y = jnp.dot(w, h, preferred_element_type=jnp.float32)

            # Batch statistics over (N, H, W) == the lane axis, done as ONE MXU matmul
            # against a ones column (keeps the reduce off the XLU critical path).
            # HIGHEST precision keeps the sums f32-exact so they match the reference.
            ycat = jnp.concatenate([y, y * y], axis=0)               # (2*cout, rows)
            sums = jnp.dot(ycat, ones_col,
                           preferred_element_type=jnp.float32,
                           precision=lax.Precision.HIGHEST)          # (2*cout, 1)
            mean = sums[:cout] * inv_n
            ex2 = sums[cout:] * inv_n
            var = jnp.maximum(ex2 - mean * mean, 0.0)  # clamp single-pass variance

            scale = gamma * lax.rsqrt(var + BN_EPS)    # EUP rsqrt, gamma folded in
            shift = beta - mean * scale
            h = jnp.maximum(y * scale + shift, 0.0)    # BN + ReLU in one pass

        # Lane-split back to per-batch slabs: (Cout, B*HW) -> (B, Cout, HW).
        for b in range(batch):
            o_ref[b] = h[:, b * rows_per_batch:(b + 1) * rows_per_batch].astype(o_ref.dtype)

    return kernel


@partial(jax.jit, static_argnums=(2, 3, 4))
def mlp_forward(x_nchw, param_slab, layer_shapes, w_offsets, bn_offset):
    """Fused Pallas forward.  Only free reshapes on the host side - no transposes."""
    b, c, hh, ww = x_nchw.shape
    hw = hh * ww
    cout_last = layer_shapes[-1][0]

    x3 = x_nchw.reshape(b, c, hw)  # free reshape of contiguous NCHW

    kernel = make_mlp_kernel(layer_shapes, b, hw, w_offsets, bn_offset)
    vmem = pl.BlockSpec(memory_space=pltpu.MemorySpace.VMEM)  # whole-array VMEM specs

    y3 = pl.pallas_call(
        kernel,
        out_shape=jax.ShapeDtypeStruct((b, cout_last, hw), jnp.float32),
        in_specs=[vmem, vmem],
        out_specs=vmem,
    )(x3, param_slab)

    return y3.reshape(b, cout_last, hh, ww)  # free reshape back to NCHW


def init_params(key, in_channels, out_channels):
    """Parameters matching the PyTorch module's layer shapes.

    Conv2d 1x1 weights (out, in, 1, 1) stored as (out, in).  Conv biases are generated but
    only used by the reference (they cancel under training-mode BN).  Gamma/beta are given
    non-trivial values to exercise the packed-parameter path.
    """
    channels = [in_channels] + list(out_channels)
    weights, biases, gammas, betas = [], [], [], []
    for i in range(1, len(channels)):
        cin, cout = channels[i - 1], channels[i]
        key, k1, k2, k3, k4, k5, k6, k7, k8 = jax.random.split(key, 9)
        # Conv(cin -> 16), BN(16)
        weights.append(jax.random.normal(k1, (HIDDEN, cin), jnp.float32) * 0.1)
        biases.append(jax.random.normal(k2, (HIDDEN,), jnp.float32) * 0.1)
        gammas.append(1.0 + 0.1 * jax.random.normal(k3, (HIDDEN,), jnp.float32))
        betas.append(0.1 * jax.random.normal(k4, (HIDDEN,), jnp.float32))
        # Conv(16 -> cout), BN(cout)
        weights.append(jax.random.normal(k5, (cout, HIDDEN), jnp.float32) * 0.1)
        biases.append(jax.random.normal(k6, (cout,), jnp.float32) * 0.1)
        gammas.append(1.0 + 0.1 * jax.random.normal(k7, (cout,), jnp.float32))
        betas.append(0.1 * jax.random.normal(k8, (cout,), jnp.float32))
    return weights, biases, gammas, betas


def pack_params(weights, gammas, betas):
    """Pack all conv weights and BN gamma/beta into one (max_C, 128) f32 slab."""
    layer_shapes = tuple((int(w.shape[0]), int(w.shape[1])) for w in weights)
    max_cout = _round_up(max(s[0] for s in layer_shapes), 8)

    w_offsets, col = [], 0
    for (_, cin) in layer_shapes:
        w_offsets.append(col)
        col += cin
    bn_offset = col
    col += 2 * len(layer_shapes)
    total_cols = _round_up(col, 128)  # lane-dense slab

    slab = jnp.zeros((max_cout, total_cols), jnp.float32)
    for l, (w, g, b) in enumerate(zip(weights, gammas, betas)):
        cout, cin = layer_shapes[l]
        slab = slab.at[:cout, w_offsets[l]:w_offsets[l] + cin].set(w)
        slab = slab.at[:cout, bn_offset + 2 * l].set(g)
        slab = slab.at[:cout, bn_offset + 2 * l + 1].set(b)
    return slab, layer_shapes, tuple(w_offsets), bn_offset


def mlp_forward_ref(x_nchw, weights, biases, gammas, betas):
    """Pure-JAX reference, faithful to the PyTorch forward (conv bias included,
    two-pass biased batch statistics, training-mode BatchNorm)."""
    b, c, hh, ww = x_nchw.shape
    x2d = jnp.transpose(x_nchw, (0, 2, 3, 1)).reshape(b * hh * ww, c)  # (rows, C)
    for w, bias, g, be in zip(weights, biases, gammas, betas):
        h = x2d @ w.T + bias[None, :]
        m = h.mean(0, keepdims=True)
        v = ((h - m) ** 2).mean(0, keepdims=True)
        x2d = jnp.maximum((h - m) / jnp.sqrt(v + BN_EPS) * g[None, :] + be[None, :], 0.0)
    cf = x2d.shape[-1]
    return jnp.transpose(x2d.reshape(b, hh, ww, cf), (0, 3, 1, 2))


if __name__ == "__main__":
    # MLP(in_channels=4, out_channels=[32, 8]) on NCHW input (2, 4, 16, 16).
    in_channels = 4
    out_channels = [32, 8]

    key = jax.random.PRNGKey(0)
    key, kx = jax.random.split(key)
    x = jax.random.normal(kx, (2, in_channels, 16, 16), jnp.float32)

    weights, biases, gammas, betas = init_params(key, in_channels, out_channels)
    param_slab, layer_shapes, w_offsets, bn_offset = pack_params(weights, gammas, betas)

    out = mlp_forward(x, param_slab, layer_shapes, w_offsets, bn_offset)
    out = jax.block_until_ready(out)

    ref = mlp_forward_ref(x, weights, biases, gammas, betas)
    assert out.shape == (2, out_channels[-1], 16, 16), out.shape
    max_err = float(jnp.max(jnp.abs(out - ref)))
    assert jnp.allclose(out, ref, atol=1e-4, rtol=1e-4), max_err

    print("KERNEL_OK")
</pallas_src>

<mosaic_0001>
module attributes {stable_mosaic.version = 11 : i64} {
  func.func @kernel(%arg0: memref<2x4x256xf32, #tpu.memory_space<vmem>>, %arg1: memref<32x128xf32, #tpu.memory_space<vmem>>, %arg2: memref<2x8x256xf32, #tpu.memory_space<vmem>>) attributes {dimension_semantics = [], scalar_prefetch = 0 : i64, scratch_operands = 0 : i64, tpu.core_type = #tpu.core_type<tc>} {
    %c0 = arith.constant 0 : index
    %c0_0 = arith.constant 0 : index
    %0 = vector.load %arg1[%c0, %c0_0] : memref<32x128xf32, #tpu.memory_space<vmem>>, vector<32x128xf32>
    %c0_1 = arith.constant 0 : index
    %c0_2 = arith.constant 0 : index
    %c0_3 = arith.constant 0 : index
    %1 = vector.load %arg0[%c0_1, %c0_2, %c0_3] : memref<2x4x256xf32, #tpu.memory_space<vmem>>, vector<1x4x256xf32>
    %2 = vector.shape_cast %1 : vector<1x4x256xf32> to vector<4x256xf32>
    %c1 = arith.constant 1 : index
    %c0_4 = arith.constant 0 : index
    %c0_5 = arith.constant 0 : index
    %3 = vector.load %arg0[%c1, %c0_4, %c0_5] : memref<2x4x256xf32, #tpu.memory_space<vmem>>, vector<1x4x256xf32>
    %4 = vector.shape_cast %3 : vector<1x4x256xf32> to vector<4x256xf32>
    %5 = tpu.concatenate %2, %4 in 1 : vector<4x256xf32>, vector<4x256xf32> -> vector<4x512xf32>
    %cst = arith.constant 1.000000e+00 : f32
    %6 = vector.broadcast %cst : f32 to vector<512x1xf32>
    %7 = vector.extract_strided_slice %0 {offsets = [0, 0], sizes = [16, 4], strides = [1, 1]} : vector<32x128xf32> to vector<16x4xf32>
    %8 = vector.extract_strided_slice %0 {offsets = [0, 68], sizes = [16, 1], strides = [1, 1]} : vector<32x128xf32> to vector<16x1xf32>
    %9 = vector.extract_strided_slice %0 {offsets = [0, 69], sizes = [16, 1], strides = [1, 1]} : vector<32x128xf32> to vector<16x1xf32>
    %cst_6 = arith.constant dense<0.000000e+00> : vector<16x512xf32>
    %10 = tpu.matmul %7, %5, %cst_6 {dimension_numbers = #tpu.dot_dimension_numbers<[1], [0], [0], [1], [0, 0, 1, 1], [], []>} : vector<16x4xf32>, vector<4x512xf32>, vector<16x512xf32> -> vector<16x512xf32>
    %11 = arith.mulf %10, %10 : vector<16x512xf32>
    %12 = tpu.concatenate %10, %11 in 0 : vector<16x512xf32>, vector<16x512xf32> -> vector<32x512xf32>
    %cst_7 = arith.constant dense<0.000000e+00> : vector<32x1xf32>
    %13 = tpu.matmul %12, %6, %cst_7 {dimension_numbers = #tpu.dot_dimension_numbers<[1], [0], [0], [1], [0, 0, 1, 1], [], []>, precision = #tpu.contract_precision<fp32>} : vector<32x512xf32>, vector<512x1xf32>, vector<32x1xf32> -> vector<32x1xf32>
    %14 = vector.extract_strided_slice %13 {offsets = [0, 0], sizes = [16, 1], strides = [1, 1]} : vector<32x1xf32> to vector<16x1xf32>
    %cst_8 = arith.constant 0.001953125 : f32
    %15 = vector.broadcast %cst_8 : f32 to vector<16x1xf32>
    %16 = arith.mulf %14, %15 : vector<16x1xf32>
    %17 = vector.extract_strided_slice %13 {offsets = [16, 0], sizes = [16, 1], strides = [1, 1]} : vector<32x1xf32> to vector<16x1xf32>
    %cst_9 = arith.constant 0.001953125 : f32
    %18 = vector.broadcast %cst_9 : f32 to vector<16x1xf32>
    %19 = arith.mulf %17, %18 : vector<16x1xf32>
    %20 = arith.mulf %16, %16 : vector<16x1xf32>
    %21 = arith.subf %19, %20 : vector<16x1xf32>
    %cst_10 = arith.constant 0.000000e+00 : f32
    %22 = vector.broadcast %cst_10 : f32 to vector<16x1xf32>
    %23 = arith.maximumf %21, %22 : vector<16x1xf32>
    %cst_11 = arith.constant 9.99999974E-6 : f32
    %24 = vector.broadcast %cst_11 : f32 to vector<16x1xf32>
    %25 = arith.addf %23, %24 : vector<16x1xf32>
    %26 = math.rsqrt %25 : vector<16x1xf32>
    %27 = arith.mulf %8, %26 : vector<16x1xf32>
    %28 = arith.mulf %16, %27 : vector<16x1xf32>
    %29 = arith.subf %9, %28 : vector<16x1xf32>
    %30 = vector.broadcast %27 : vector<16x1xf32> to vector<16x512xf32>
    %31 = arith.mulf %10, %30 : vector<16x512xf32>
    %32 = vector.broadcast %29 : vector<16x1xf32> to vector<16x512xf32>
    %33 = arith.addf %31, %32 : vector<16x512xf32>
    %cst_12 = arith.constant 0.000000e+00 : f32
    %34 = vector.broadcast %cst_12 : f32 to vector<16x512xf32>
    %35 = arith.maximumf %33, %34 : vector<16x512xf32>
    %36 = vector.extract_strided_slice %0 {offsets = [0, 4], sizes = [32, 16], strides = [1, 1]} : vector<32x128xf32> to vector<32x16xf32>
    %37 = vector.extract_strided_slice %0 {offsets = [0, 70], sizes = [32, 1], strides = [1, 1]} : vector<32x128xf32> to vector<32x1xf32>
    %38 = vector.extract_strided_slice %0 {offsets = [0, 71], sizes = [32, 1], strides = [1, 1]} : vector<32x128xf32> to vector<32x1xf32>
    %cst_13 = arith.constant dense<0.000000e+00> : vector<32x512xf32>
    %39 = tpu.matmul %36, %35, %cst_13 {dimension_numbers = #tpu.dot_dimension_numbers<[1], [0], [0], [1], [0, 0, 1, 1], [], []>} : vector<32x16xf32>, vector<16x512xf32>, vector<32x512xf32> -> vector<32x512xf32>
    %40 = arith.mulf %39, %39 : vector<32x512xf32>
    %41 = tpu.concatenate %39, %40 in 0 : vector<32x512xf32>, vector<32x512xf32> -> vector<64x512xf32>
    %cst_14 = arith.constant dense<0.000000e+00> : vector<64x1xf32>
    %42 = tpu.matmul %41, %6, %cst_14 {dimension_numbers = #tpu.dot_dimension_numbers<[1], [0], [0], [1], [0, 0, 1, 1], [], []>, precision = #tpu.contract_precision<fp32>} : vector<64x512xf32>, vector<512x1xf32>, vector<64x1xf32> -> vector<64x1xf32>
    %43 = vector.extract_strided_slice %42 {offsets = [0, 0], sizes = [32, 1], strides = [1, 1]} : vector<64x1xf32> to vector<32x1xf32>
    %cst_15 = arith.constant 0.001953125 : f32
    %44 = vector.broadcast %cst_15 : f32 to vector<32x1xf32>
    %45 = arith.mulf %43, %44 : vector<32x1xf32>
    %46 = vector.extract_strided_slice %42 {offsets = [32, 0], sizes = [32, 1], strides = [1, 1]} : vector<64x1xf32> to vector<32x1xf32>
    %cst_16 = arith.constant 0.001953125 : f32
    %47 = vector.broadcast %cst_16 : f32 to vector<32x1xf32>
    %48 = arith.mulf %46, %47 : vector<32x1xf32>
    %49 = arith.mulf %45, %45 : vector<32x1xf32>
    %50 = arith.subf %48, %49 : vector<32x1xf32>
    %cst_17 = arith.constant 0.000000e+00 : f32
    %51 = vector.broadcast %cst_17 : f32 to vector<32x1xf32>
    %52 = arith.maximumf %50, %51 : vector<32x1xf32>
    %cst_18 = arith.constant 9.99999974E-6 : f32
    %53 = vector.broadcast %cst_18 : f32 to vector<32x1xf32>
    %54 = arith.addf %52, %53 : vector<32x1xf32>
    %55 = math.rsqrt %54 : vector<32x1xf32>
    %56 = arith.mulf %37, %55 : vector<32x1xf32>
    %57 = arith.mulf %45, %56 : vector<32x1xf32>
    %58 = arith.subf %38, %57 : vector<32x1xf32>
    %59 = vector.broadcast %56 : vector<32x1xf32> to vector<32x512xf32>
    %60 = arith.mulf %39, %59 : vector<32x512xf32>
    %61 = vector.broadcast %58 : vector<32x1xf32> to vector<32x512xf32>
    %62 = arith.addf %60, %61 : vector<32x512xf32>
    %cst_19 = arith.constant 0.000000e+00 : f32
    %63 = vector.broadcast %cst_19 : f32 to vector<32x512xf32>
    %64 = arith.maximumf %62, %63 : vector<32x512xf32>
    %65 = vector.extract_strided_slice %0 {offsets = [0, 20], sizes = [16, 32], strides = [1, 1]} : vector<32x128xf32> to vector<16x32xf32>
    %66 = vector.extract_strided_slice %0 {offsets = [0, 72], sizes = [16, 1], strides = [1, 1]} : vector<32x128xf32> to vector<16x1xf32>
    %67 = vector.extract_strided_slice %0 {offsets = [0, 73], sizes = [16, 1], strides = [1, 1]} : vector<32x128xf32> to vector<16x1xf32>
    %cst_20 = arith.constant dense<0.000000e+00> : vector<16x512xf32>
    %68 = tpu.matmul %65, %64, %cst_20 {dimension_numbers = #tpu.dot_dimension_numbers<[1], [0], [0], [1], [0, 0, 1, 1], [], []>} : vector<16x32xf32>, vector<32x512xf32>, vector<16x512xf32> -> vector<16x512xf32>
    %69 = arith.mulf %68, %68 : vector<16x512xf32>
    %70 = tpu.concatenate %68, %69 in 0 : vector<16x512xf32>, vector<16x512xf32> -> vector<32x512xf32>
    %cst_21 = arith.constant dense<0.000000e+00> : vector<32x1xf32>
    %71 = tpu.matmul %70, %6, %cst_21 {dimension_numbers = #tpu.dot_dimension_numbers<[1], [0], [0], [1], [0, 0, 1, 1], [], []>, precision = #tpu.contract_precision<fp32>} : vector<32x512xf32>, vector<512x1xf32>, vector<32x1xf32> -> vector<32x1xf32>
    %72 = vector.extract_strided_slice %71 {offsets = [0, 0], sizes = [16, 1], strides = [1, 1]} : vector<32x1xf32> to vector<16x1xf32>
    %cst_22 = arith.constant 0.001953125 : f32
    %73 = vector.broadcast %cst_22 : f32 to vector<16x1xf32>
    %74 = arith.mulf %72, %73 : vector<16x1xf32>
    %75 = vector.extract_strided_slice %71 {offsets = [16, 0], sizes = [16, 1], strides = [1, 1]} : vector<32x1xf32> to vector<16x1xf32>
    %cst_23 = arith.constant 0.001953125 : f32
    %76 = vector.broadcast %cst_23 : f32 to vector<16x1xf32>
    %77 = arith.mulf %75, %76 : vector<16x1xf32>
    %78 = arith.mulf %74, %74 : vector<16x1xf32>
    %79 = arith.subf %77, %78 : vector<16x1xf32>
    %cst_24 = arith.constant 0.000000e+00 : f32
    %80 = vector.broadcast %cst_24 : f32 to vector<16x1xf32>
    %81 = arith.maximumf %79, %80 : vector<16x1xf32>
    %cst_25 = arith.constant 9.99999974E-6 : f32
    %82 = vector.broadcast %cst_25 : f32 to vector<16x1xf32>
    %83 = arith.addf %81, %82 : vector<16x1xf32>
    %84 = math.rsqrt %83 : vector<16x1xf32>
    %85 = arith.mulf %66, %84 : vector<16x1xf32>
    %86 = arith.mulf %74, %85 : vector<16x1xf32>
    %87 = arith.subf %67, %86 : vector<16x1xf32>
    %88 = vector.broadcast %85 : vector<16x1xf32> to vector<16x512xf32>
    %89 = arith.mulf %68, %88 : vector<16x512xf32>
    %90 = vector.broadcast %87 : vector<16x1xf32> to vector<16x512xf32>
    %91 = arith.addf %89, %90 : vector<16x512xf32>
    %cst_26 = arith.constant 0.000000e+00 : f32
    %92 = vector.broadcast %cst_26 : f32 to vector<16x512xf32>
    %93 = arith.maximumf %91, %92 : vector<16x512xf32>
    %94 = vector.extract_strided_slice %0 {offsets = [0, 52], sizes = [8, 16], strides = [1, 1]} : vector<32x128xf32> to vector<8x16xf32>
    %95 = vector.extract_strided_slice %0 {offsets = [0, 74], sizes = [8, 1], strides = [1, 1]} : vector<32x128xf32> to vector<8x1xf32>
    %96 = vector.extract_strided_slice %0 {offsets = [0, 75], sizes = [8, 1], strides = [1, 1]} : vector<32x128xf32> to vector<8x1xf32>
    %cst_27 = arith.constant dense<0.000000e+00> : vector<8x512xf32>
    %97 = tpu.matmul %94, %93, %cst_27 {dimension_numbers = #tpu.dot_dimension_numbers<[1], [0], [0], [1], [0, 0, 1, 1], [], []>} : vector<8x16xf32>, vector<16x512xf32>, vector<8x512xf32> -> vector<8x512xf32>
    %98 = arith.mulf %97, %97 : vector<8x512xf32>
    %99 = tpu.concatenate %97, %98 in 0 : vector<8x512xf32>, vector<8x512xf32> -> vector<16x512xf32>
    %cst_28 = arith.constant dense<0.000000e+00> : vector<16x1xf32>
    %100 = tpu.matmul %99, %6, %cst_28 {dimension_numbers = #tpu.dot_dimension_numbers<[1], [0], [0], [1], [0, 0, 1, 1], [], []>, precision = #tpu.contract_precision<fp32>} : vector<16x512xf32>, vector<512x1xf32>, vector<16x1xf32> -> vector<16x1xf32>
    %101 = vector.extract_strided_slice %100 {offsets = [0, 0], sizes = [8, 1], strides = [1, 1]} : vector<16x1xf32> to vector<8x1xf32>
    %cst_29 = arith.constant 0.001953125 : f32
    %102 = vector.broadcast %cst_29 : f32 to vector<8x1xf32>
    %103 = arith.mulf %101, %102 : vector<8x1xf32>
    %104 = vector.extract_strided_slice %100 {offsets = [8, 0], sizes = [8, 1], strides = [1, 1]} : vector<16x1xf32> to vector<8x1xf32>
    %cst_30 = arith.constant 0.001953125 : f32
    %105 = vector.broadcast %cst_30 : f32 to vector<8x1xf32>
    %106 = arith.mulf %104, %105 : vector<8x1xf32>
    %107 = arith.mulf %103, %103 : vector<8x1xf32>
    %108 = arith.subf %106, %107 : vector<8x1xf32>
    %cst_31 = arith.constant 0.000000e+00 : f32
    %109 = vector.broadcast %cst_31 : f32 to vector<8x1xf32>
    %110 = arith.maximumf %108, %109 : vector<8x1xf32>
    %cst_32 = arith.constant 9.99999974E-6 : f32
    %111 = vector.broadcast %cst_32 : f32 to vector<8x1xf32>
    %112 = arith.addf %110, %111 : vector<8x1xf32>
    %113 = math.rsqrt %112 : vector<8x1xf32>
    %114 = arith.mulf %95, %113 : vector<8x1xf32>
    %115 = arith.mulf %103, %114 : vector<8x1xf32>
    %116 = arith.subf %96, %115 : vector<8x1xf32>
    %117 = vector.broadcast %114 : vector<8x1xf32> to vector<8x512xf32>
    %118 = arith.mulf %97, %117 : vector<8x512xf32>
    %119 = vector.broadcast %116 : vector<8x1xf32> to vector<8x512xf32>
    %120 = arith.addf %118, %119 : vector<8x512xf32>
    %cst_33 = arith.constant 0.000000e+00 : f32
    %121 = vector.broadcast %cst_33 : f32 to vector<8x512xf32>
    %122 = arith.maximumf %120, %121 : vector<8x512xf32>
    %123 = vector.extract_strided_slice %122 {offsets = [0, 0], sizes = [8, 256], strides = [1, 1]} : vector<8x512xf32> to vector<8x256xf32>
    %c0_34 = arith.constant 0 : index
    %c0_35 = arith.constant 0 : index
    %c0_36 = arith.constant 0 : index
    %124 = vector.load %arg2[%c0_34, %c0_35, %c0_36] : memref<2x8x256xf32, #tpu.memory_space<vmem>>, vector<1x8x256xf32>
    %125 = vector.shape_cast %124 : vector<1x8x256xf32> to vector<8x256xf32>
    %126 = vector.shape_cast %123 : vector<8x256xf32> to vector<1x8x256xf32>
    tpu.vector_store %arg2[%c0_34, %c0_35, %c0_36], %126 {strides = array<i32>} : memref<2x8x256xf32, #tpu.memory_space<vmem>>, vector<1x8x256xf32>,
    %127 = vector.extract_strided_slice %122 {offsets = [0, 256], sizes = [8, 256], strides = [1, 1]} : vector<8x512xf32> to vector<8x256xf32>
    %c1_37 = arith.constant 1 : index
    %c0_38 = arith.constant 0 : index
    %c0_39 = arith.constant 0 : index
    %128 = vector.load %arg2[%c1_37, %c0_38, %c0_39] : memref<2x8x256xf32, #tpu.memory_space<vmem>>, vector<1x8x256xf32>
    %129 = vector.shape_cast %128 : vector<1x8x256xf32> to vector<8x256xf32>
    %130 = vector.shape_cast %127 : vector<8x256xf32> to vector<1x8x256xf32>
    tpu.vector_store %arg2[%c1_37, %c0_38, %c0_39], %130 {strides = array<i32>} : memref<2x8x256xf32, #tpu.memory_space<vmem>>, vector<1x8x256xf32>,
    return
  }
}

</mosaic_0001>

<llo_original>
// kernel: mlp_forward.1
$region0: #{mlp_forward.1}
  #allocation0 [shape = 'u32[]', space=smem, size = 0x4, offset = 0x4, fixed_abs, tag = 'smem constant byte address 0x4 - core index']
  #allocation1 [shape = 'u32[144,128]{1,0:T(1,128)}', space=vmem, size = 0x12000, scoped, tag = 'internal scratch']
  %s0 = inlined_call_operand.vmem [shape: f32[2,4,256], index: 0, kind: input, shape index: {}]
  %s1 = inlined_call_operand.vmem [shape: f32[32,128], index: 1, kind: input, shape index: {}]
  %s2 = inlined_call_operand.vmem [shape: f32[2,8,256], index: 2, kind: output, shape index: {}]
  %s3 = sld [smem:[#allocation0]]
  $region18: #{mlp_forward.1} parent=0
    _
  %s5 = ssub.s32 1, %s3
  %s6 = scalar_select 0, %s5, %s3
  // Predicated region
  $region2: #{mlp_forward.1} parent=0 // pred_check
    _
  $region3: #{mlp_forward.1} parent=0 // pred_check_branch
    %8 = sbr.rel (0) target = $region5
  $region4: #{mlp_forward.1} parent=0 // pred_region
    _
  $region5: #{mlp_forward.1} parent=0 // pred_fallthru
    _
  // Predicated region
  $region6: #{mlp_forward.1} parent=0 // pred_check
    _
  $region7: #{mlp_forward.1} parent=0 // pred_check_branch
    %10 = sbr.rel (0) target = $region9
  $region8: #{mlp_forward.1} parent=0 // pred_region
    _
  $region9: #{mlp_forward.1} parent=0 // pred_fallthru
    _
  %v11 = vld [vmem:[%s1] sm:$0xff]
  %v12 = vld [vmem:[%s1 + $0x8] sm:$0xff]
  %v13 = vld [vmem:[%s1 + $0x10] sm:$0xff]
  %v14 = vld [vmem:[%s1 + $0x18] sm:$0xff]
  %v15 = vld [vmem:[%s0] sm:$0xff]
  %s16 = scalar_lea.vmem %s0, 8
  %v17 = vld [vmem:[%s16] sm:$0xff]
  %v19 = vcombine.high %v15, %v15
  %v21 = vcombine.high %v17, %v17
  %vm22 = vcmask 31744
  %v24 = vsel %vm22, %v11, 0
  %v27 = vsel %vm22, %v12, 0
  %vm29 = vcmask 1043456
  %v30 = vsel %vm29, %v15, 0
  %v32 = vsel %vm29, %v19, 0
  %v34 = vsel %vm29, %v17, 0
  %v36 = vsel %vm29, %v21, 0
  %38 = vmatprep.subr.mxu0 %v32
  %39 = vmatpush1.msra.mxu0 %v30
  %40 = vmatprep.subr.mxu0 0.0
  %41 = vmatpush1.msra.mxu0 0.0
  %42 = vmatprep.subr.mxu0 0.0
  %43 = vmatpush1.msra.mxu0 0.0
  %44 = vmatprep.subr.mxu0 0.0
  %45 = vmatpush1.msra.mxu0 0.0
  %46 = vmatprep.subr.mxu0 0.0
  %47 = vmatpush1.msra.mxu0 0.0
  %48 = vmatprep.subr.mxu0 0.0
  %49 = vmatpush1.msra.mxu0 0.0
  %50 = vmatprep.subr.mxu0 0.0
  %51 = vmatpush1.msra.mxu0 0.0
  %52 = vmatprep.subr.mxu0 0.0
  %53 = vmatpush1.msra.mxu0 0.0
  %54 = vmatprep.subr.mxu0 0.0
  %55 = vmatpush1.msra.mxu0 0.0
  %56 = vmatprep.subr.mxu0 0.0
  %57 = vmatpush1.msra.mxu0 0.0
  %58 = vmatprep.subr.mxu0 0.0
  %59 = vmatpush1.msra.mxu0 0.0
  %60 = vmatprep.subr.mxu0 0.0
  %61 = vmatpush1.msra.mxu0 0.0
  %62 = vmatprep.subr.mxu0 0.0
  %63 = vmatpush1.msra.mxu0 0.0
  %64 = vmatprep.subr.mxu0 0.0
  %65 = vmatpush1.msra.mxu0 0.0
  %66 = vmatprep.subr.mxu0 0.0
  %67 = vmatpush1.msra.mxu0 0.0
  %68 = vmatprep.subr.mxu0 0.0
  %69 = vmatpush1.msra.mxu0 0.0
  %70 = vmatprep.subr.mxu0 0.0
  %71 = vmatpush1.msra.mxu0 0.0
  %72 = vmatprep.subr.mxu0 0.0
  %73 = vmatpush1.msra.mxu0 0.0
  %74 = vmatprep.subr.mxu0 0.0
  %75 = vmatpush1.msra.mxu0 0.0
  %76 = vmatprep.subr.mxu0 0.0
  %77 = vmatpush1.msra.mxu0 0.0
  %78 = vmatprep.subr.mxu0 0.0
  %79 = vmatpush1.msra.mxu0 0.0
  %80 = vmatprep.subr.mxu0 0.0
  %81 = vmatpush1.msra.mxu0 0.0
  %82 = vmatprep.subr.mxu0 0.0
  %83 = vmatpush1.msra.mxu0 0.0
  %84 = vmatprep.subr.mxu0 0.0
  %85 = vmatpush1.msra.mxu0 0.0
  %86 = vmatprep.subr.mxu0 0.0
  %87 = vmatpush1.msra.mxu0 0.0
  %88 = vmatprep.subr.mxu0 0.0
  %89 = vmatpush1.msra.mxu0 0.0
  %90 = vmatprep.subr.mxu0 0.0
  %91 = vmatpush1.msra.mxu0 0.0
  %92 = vmatprep.subr.mxu0 0.0
  %93 = vmatpush1.msra.mxu0 0.0
  %94 = vmatprep.subr.mxu0 0.0
  %95 = vmatpush1.msra.mxu0 0.0
  %96 = vmatprep.subr.mxu0 0.0
  %97 = vmatpush1.msra.mxu0 0.0
  %98 = vmatprep.subr.mxu0 0.0
  %99 = vmatpush1.msra.mxu0 0.0
  %100 = vmatprep.subr.mxu0 0.0
  %101 = vmatpush1.msra.mxu0 0.0
  %102 = vmatprep.mubr.f32.mxu0 0.0
  %103 = vmatmul.mubr.f32.gmra.mrb[0].mxu0 %v24
  %v104 = vpop.f32.mrb[0].mxu0
  %v105 = vadd.f32 0.0, %v104
  %v106 = vpop.f32.mrb[0].mxu0
  %v107 = vadd.f32 0.0, %v106
  %108 = vmatprep.mubr.f32.mxu0 0.0
  %109 = vmatmul.mubr.f32.gmra.mrb[0].mxu0 %v27
  %v110 = vpop.f32.mrb[0].mxu0
  %v111 = vadd.f32 0.0, %v110
  %v112 = vpop.f32.mrb[0].mxu0
  %v113 = vadd.f32 0.0, %v112
  %114 = vdwg.mxu0
  %115 = vmatprep.subr.mxu0 %v36
  %116 = vmatpush1.msra.mxu0 %v34
  %117 = vmatprep.subr.mxu0 0.0
  %118 = vmatpush1.msra.mxu0 0.0
  %119 = vmatprep.subr.mxu0 0.0
  %120 = vmatpush1.msra.mxu0 0.0
  %121 = vmatprep.subr.mxu0 0.0
  %122 = vmatpush1.msra.mxu0 0.0
  %123 = vmatprep.subr.mxu0 0.0
  %124 = vmatpush1.msra.mxu0 0.0
  %125 = vmatprep.subr.mxu0 0.0
  %126 = vmatpush1.msra.mxu0 0.0
  %127 = vmatprep.subr.mxu0 0.0
  %128 = vmatpush1.msra.mxu0 0.0
  %129 = vmatprep.subr.mxu0 0.0
  %130 = vmatpush1.msra.mxu0 0.0
  %131 = vmatprep.subr.mxu0 0.0
  %132 = vmatpush1.msra.mxu0 0.0
  %133 = vmatprep.subr.mxu0 0.0
  %134 = vmatpush1.msra.mxu0 0.0
  %135 = vmatprep.subr.mxu0 0.0
  %136 = vmatpush1.msra.mxu0 0.0
  %137 = vmatprep.subr.mxu0 0.0
  %138 = vmatpush1.msra.mxu0 0.0
  %139 = vmatprep.subr.mxu0 0.0
  %140 = vmatpush1.msra.mxu0 0.0
  %141 = vmatprep.subr.mxu0 0.0
  %142 = vmatpush1.msra.mxu0 0.0
  %143 = vmatprep.subr.mxu0 0.0
  %144 = vmatpush1.msra.mxu0 0.0
  %145 = vmatprep.subr.mxu0 0.0
  %146 = vmatpush1.msra.mxu0 0.0
  %147 = vmatprep.subr.mxu0 0.0
  %148 = vmatpush1.msra.mxu0 0.0
  %149 = vmatprep.subr.mxu0 0.0
  %150 = vmatpush1.msra.mxu0 0.0
  %151 = vmatprep.subr.mxu0 0.0
  %152 = vmatpush1.msra.mxu0 0.0
  %153 = vmatprep.subr.mxu0 0.0
  %154 = vmatpush1.msra.mxu0 0.0
  %155 = vmatprep.subr.mxu0 0.0
  %156 = vmatpush1.msra.mxu0 0.0
  %157 = vmatprep.subr.mxu0 0.0
  %158 = vmatpush1.msra.mxu0 0.0
  %159 = vmatprep.subr.mxu0 0.0
  %160 = vmatpush1.msra.mxu0 0.0
  %161 = vmatprep.subr.mxu0 0.0
  %162 = vmatpush1.msra.mxu0 0.0
  %163 = vmatprep.subr.mxu0 0.0
  %164 = vmatpush1.msra.mxu0 0.0
  %165 = vmatprep.subr.mxu0 0.0
  %166 = vmatpush1.msra.mxu0 0.0
  %167 = vmatprep.subr.mxu0 0.0
  %168 = vmatpush1.msra.mxu0 0.0
  %169 = vmatprep.subr.mxu0 0.0
  %170 = vmatpush1.msra.mxu0 0.0
  %171 = vmatprep.subr.mxu0 0.0
  %172 = vmatpush1.msra.mxu0 0.0
  %173 = vmatprep.subr.mxu0 0.0
  %174 = vmatpush1.msra.mxu0 0.0
  %175 = vmatprep.subr.mxu0 0.0
  %176 = vmatpush1.msra.mxu0 0.0
  %177 = vmatprep.subr.mxu0 0.0
  %178 = vmatpush1.msra.mxu0 0.0
  %179 = vmatprep.mubr.f32.mxu0 0.0
  %180 = vmatmul.mubr.f32.gmra.mrb[0].mxu0 %v24
  %v181 = vpop.f32.mrb[0].mxu0
  %v182 = vadd.f32 0.0, %v181
  %v183 = vpop.f32.mrb[0].mxu0
  %v184 = vadd.f32 0.0, %v183
  %185 = vmatprep.mubr.f32.mxu0 0.0
  %186 = vmatmul.mubr.f32.gmra.mrb[0].mxu0 %v27
  %v187 = vpop.f32.mrb[0].mxu0
  %v188 = vadd.f32 0.0, %v187
  %v189 = vpop.f32.mrb[0].mxu0
  %v190 = vadd.f32 0.0, %v189
  %191 = vdwg.mxu0
  %v192 = vmul.f32 %v105, %v105
  %v193 = vmul.f32 %v107, %v107
  %v194 = vmul.f32 %v182, %v182
  %v195 = vmul.f32 %v184, %v184
  %v196 = vmul.f32 %v111, %v111
  %v197 = vmul.f32 %v113, %v113
  %v198 = vmul.f32 %v188, %v188
  %v199 = vmul.f32 %v190, %v190
  %200 = vmatprep.subr.mxu0 0.0
  %201 = vmatpush1.msra.mxu0 1.0
  %202 = vmatprep.subr.mxu0 0.0
  %203 = vmatpush1.msra.mxu0 1.0
  %204 = vmatprep.subr.mxu0 0.0
  %205 = vmatpush1.msra.mxu0 1.0
  %206 = vmatprep.subr.mxu0 0.0
  %207 = vmatpush1.msra.mxu0 1.0
  %208 = vmatprep.subr.mxu0 0.0
  %209 = vmatpush1.msra.mxu0 1.0
  %210 = vmatprep.subr.mxu0 0.0
  %211 = vmatpush1.msra.mxu0 1.0
  %212 = vmatprep.subr.mxu0 0.0
  %213 = vmatpush1.msra.mxu0 1.0
  %214 = vmatprep.subr.mxu0 0.0
  %215 = vmatpush1.msra.mxu0 1.0
  %216 = vmatprep.subr.mxu0 0.0
  %217 = vmatpush1.msra.mxu0 1.0
  %218 = vmatprep.subr.mxu0 0.0
  %219 = vmatpush1.msra.mxu0 1.0
  %220 = vmatprep.subr.mxu0 0.0
  %221 = vmatpush1.msra.mxu0 1.0
  %222 = vmatprep.subr.mxu0 0.0
  %223 = vmatpush1.msra.mxu0 1.0
  %224 = vmatprep.subr.mxu0 0.0
  %225 = vmatpush1.msra.mxu0 1.0
  %226 = vmatprep.subr.mxu0 0.0
  %227 = vmatpush1.msra.mxu0 1.0
  %228 = vmatprep.subr.mxu0 0.0
  %229 = vmatpush1.msra.mxu0 1.0
  %230 = vmatprep.subr.mxu0 0.0
  %231 = vmatpush1.msra.mxu0 1.0
  %232 = vmatprep.subr.mxu0 0.0
  %233 = vmatpush1.msra.mxu0 1.0
  %234 = vmatprep.subr.mxu0 0.0
  %235 = vmatpush1.msra.mxu0 1.0
  %236 = vmatprep.subr.mxu0 0.0
  %237 = vmatpush1.msra.mxu0 1.0
  %238 = vmatprep.subr.mxu0 0.0
  %239 = vmatpush1.msra.mxu0 1.0
  %240 = vmatprep.subr.mxu0 0.0
  %241 = vmatpush1.msra.mxu0 1.0
  %242 = vmatprep.subr.mxu0 0.0
  %243 = vmatpush1.msra.mxu0 1.0
  %244 = vmatprep.subr.mxu0 0.0
  %245 = vmatpush1.msra.mxu0 1.0
  %246 = vmatprep.subr.mxu0 0.0
  %247 = vmatpush1.msra.mxu0 1.0
  %248 = vmatprep.subr.mxu0 0.0
  %249 = vmatpush1.msra.mxu0 1.0
  %250 = vmatprep.subr.mxu0 0.0
  %251 = vmatpush1.msra.mxu0 1.0
  %252 = vmatprep.subr.mxu0 0.0
  %253 = vmatpush1.msra.mxu0 1.0
  %254 = vmatprep.subr.mxu0 0.0
  %255 = vmatpush1.msra.mxu0 1.0
  %256 = vmatprep.subr.mxu0 0.0
  %257 = vmatpush1.msra.mxu0 1.0
  %258 = vmatprep.subr.mxu0 0.0
  %259 = vmatpush1.msra.mxu0 1.0
  %260 = vmatprep.subr.mxu0 0.0
  %261 = vmatpush1.msra.mxu0 1.0
  %262 = vmatprep.subr.mxu0 0.0
  %263 = vmatpush1.msra.mxu0 1.0
  %v264 = vand.u32 %v107, 4294901760
  %v265 = vsub.f32 %v107, %v264
  %v266 = vand.u32 %v265, 4294901760
  %v267 = vsub.f32 %v265, %v266
  %v268 = vand.u32 %v267, 4294901760
  %269 = vmatprep.mubr.f32.mxu0 %v268
  %v270 = vand.u32 %v105, 4294901760
  %v271 = vsub.f32 %v105, %v270
  %v272 = vand.u32 %v271, 4294901760
  %v273 = vsub.f32 %v271, %v272
  %v274 = vand.u32 %v273, 4294901760
  %275 = vmatmul.mubr.f32.gmra.mrb[0].mxu0 %v274
  %v276 = vpop.f32.mrb[0].mxu0
  %v277 = vadd.f32 0.0, %v276
  %v278 = vpop.f32.mrb[0].mxu0
  %v279 = vand.u32 %v113, 4294901760
  %v280 = vsub.f32 %v113, %v279
  %v281 = vand.u32 %v280, 4294901760
  %v282 = vsub.f32 %v280, %v281
  %v283 = vand.u32 %v282, 4294901760
  %284 = vmatprep.mubr.f32.mxu0 %v283
  %v285 = vand.u32 %v111, 4294901760
  %v286 = vsub.f32 %v111, %v285
  %v287 = vand.u32 %v286, 4294901760
  %v288 = vsub.f32 %v286, %v287
  %v289 = vand.u32 %v288, 4294901760
  %290 = vmatmul.mubr.f32.gmra.mrb[0].mxu0 %v289
  %v291 = vpop.f32.mrb[0].mxu0
  %v292 = vadd.f32 0.0, %v291
  %v293 = vpop.f32.mrb[0].mxu0
  %v294 = vand.u32 %v193, 4294901760
  %v295 = vsub.f32 %v193, %v294
  %v296 = vand.u32 %v295, 4294901760
  %v297 = vsub.f32 %v295, %v296
  %v298 = vand.u32 %v297, 4294901760
  %299 = vmatprep.mubr.f32.mxu0 %v298
  %v300 = vand.u32 %v192, 4294901760
  %v301 = vsub.f32 %v192, %v300
  %v302 = vand.u32 %v301, 4294901760
  %v303 = vsub.f32 %v301, %v302
  %v304 = vand.u32 %v303, 4294901760
  %305 = vmatmul.mubr.f32.gmra.mrb[0].mxu0 %v304
  %v306 = vpop.f32.mrb[0].mxu0
  %v307 = vadd.f32 0.0, %v306
  %v308 = vpop.f32.mrb[0].mxu0
  %v309 = vand.u32 %v197, 4294901760
  %v310 = vsub.f32 %v197, %v309
  %v311 = vand.u32 %v310, 4294901760
  %v312 = vsub.f32 %v310, %v311
  %v313 = vand.u32 %v312, 4294901760
  %314 = vmatprep.mubr.f32.mxu0 %v313
  %v315 = vand.u32 %v196, 4294901760
  %v316 = vsub.f32 %v196, %v315
  %v317 = vand.u32 %v316, 4294901760
  %v318 = vsub.f32 %v316, %v317
  %v319 = vand.u32 %v318, 4294901760
  %320 = vmatmul.mubr.f32.gmra.mrb[0].mxu0 %v319
  %v321 = vpop.f32.mrb[0].mxu0
  %v322 = vadd.f32 0.0, %v321
  %v323 = vpop.f32.mrb[0].mxu0
  %324 = vdwg.mxu0
  %325 = vmatprep.subr.mxu0 0.0
  %326 = vmatpush1.msra.mxu0 0.0
  %327 = vmatprep.subr.mxu0 0.0
  %328 = vmatpush1.msra.mxu0 0.0
  %329 = vmatprep.subr.mxu0 0.0
  %330 = vmatpush1.msra.mxu0 0.0
  %331 = vmatprep.subr.mxu0 0.0
  %332 = vmatpush1.msra.mxu0 0.0
  %333 = vmatprep.subr.mxu0 0.0
  %334 = vmatpush1.msra.mxu0 0.0
  %335 = vmatprep.subr.mxu0 0.0
  %336 = vmatpush1.msra.mxu0 0.0
  %337 = vmatprep.subr.mxu0 0.0
  %338 = vmatpush1.msra.mxu0 0.0
  %339 = vmatprep.subr.mxu0 0.0
  %340 = vmatpush1.msra.mxu0 0.0
  %341 = vmatprep.subr.mxu0 0.0
  %342 = vmatpush1.msra.mxu0 0.0
  %343 = vmatprep.subr.mxu0 0.0
  %344 = vmatpush1.msra.mxu0 0.0
  %345 = vmatprep.subr.mxu0 0.0
  %346 = vmatpush1.msra.mxu0 0.0
  %347 = vmatprep.subr.mxu0 0.0
  %348 = vmatpush1.msra.mxu0 0.0
  %349 = vmatprep.subr.mxu0 0.0
  %350 = vmatpush1.msra.mxu0 0.0
  %351 = vmatprep.subr.mxu0 0.0
  %352 = vmatpush1.msra.mxu0 0.0
  %353 = vmatprep.subr.mxu0 0.0
  %354 = vmatpush1.msra.mxu0 0.0
  %355 = vmatprep.subr.mxu0 0.0
  %356 = vmatpush1.msra.mxu0 0.0
  %357 = vmatprep.subr.mxu0 0.0
  %358 = vmatpush1.msra.mxu0 0.0
  %359 = vmatprep.subr.mxu0 0.0
  %360 = vmatpush1.msra.mxu0 0.0
  %361 = vmatprep.subr.mxu0 0.0
  %362 = vmatpush1.msra.mxu0 0.0
  %363 = vmatprep.subr.mxu0 0.0
  %364 = vmatpush1.msra.mxu0 0.0
  %365 = vmatprep.subr.mxu0 0.0
  %366 = vmatpush1.msra.mxu0 0.0
  %367 = vmatprep.subr.mxu0 0.0
  %368 = vmatpush1.msra.mxu0 0.0
  %369 = vmatprep.subr.mxu0 0.0
  %370 = vmatpush1.msra.mxu0 0.0
  %371 = vmatprep.subr.mxu0 0.0
  %372 = vmatpush1.msra.mxu0 0.0
  %373 = vmatprep.subr.mxu0 0.0
  %374 = vmatpush1.msra.mxu0 0.0
  %375 = vmatprep.subr.mxu0 0.0
  %376 = vmatpush1.msra.mxu0 0.0
  %377 = vmatprep.subr.mxu0 0.0
  %378 = vmatpush1.msra.mxu0 0.0
  %379 = vmatprep.subr.mxu0 0.0
  %380 = vmatpush1.msra.mxu0 0.0
  %381 = vmatprep.subr.mxu0 0.0
  %382 = vmatpush1.msra.mxu0 0.0
  %383 = vmatprep.subr.mxu0 0.0
  %384 = vmatpush1.msra.mxu0 0.0
  %385 = vmatprep.subr.mxu0 0.0
  %386 = vmatpush1.msra.mxu0 0.0
  %387 = vmatprep.subr.mxu0 0.0
  %388 = vmatpush1.msra.mxu0 0.0
  %v389 = vand.u32 %v107, 4294901760
  %390 = vmatprep.mubr.f32.mxu0 %v389
  %v391 = vand.u32 %v105, 4294901760
  %392 = vmatmul.mubr.f32.gmra.mrb[0].mxu0 %v391
  %v393 = vpop.f32.mrb[0].mxu0
  %v394 = vadd.f32 %v277, %v393
  %v395 = vpop.f32.mrb[0].mxu0
  %v396 = vand.u32 %v113, 4294901760
  %397 = vmatprep.mubr.f32.mxu0 %v396
  %v398 = vand.u32 %v111, 4294901760
  %399 = vmatmul.mubr.f32.gmra.mrb[0].mxu0 %v398
  %v400 = vpop.f32.mrb[0].mxu0
  %v401 = vadd.f32 %v292, %v400
  %v402 = vpop.f32.mrb[0].mxu0
  %v403 = vand.u32 %v193, 4294901760
  %404 = vmatprep.mubr.f32.mxu0 %v403
  %v405 = vand.u32 %v192, 4294901760
  %406 = vmatmul.mubr.f32.gmra.mrb[0].mxu0 %v405
  %v407 = vpop.f32.mrb[0].mxu0
  %v408 = vadd.f32 %v307, %v407
  %v409 = vpop.f32.mrb[0].mxu0
  %v410 = vand.u32 %v197, 4294901760
  %411 = vmatprep.mubr.f32.mxu0 %v410
  %v412 = vand.u32 %v196, 4294901760
  %413 = vmatmul.mubr.f32.gmra.mrb[0].mxu0 %v412
  %v414 = vpop.f32.mrb[0].mxu0
  %v415 = vadd.f32 %v322, %v414
  %v416 = vpop.f32.mrb[0].mxu0
  %417 = vdwg.mxu0
  %418 = vmatprep.subr.mxu0 0.0
  %419 = vmatpush1.msra.mxu0 0.0
  %420 = vmatprep.subr.mxu0 0.0
  %421 = vmatpush1.msra.mxu0 0.0
  %422 = vmatprep.subr.mxu0 0.0
  %423 = vmatpush1.msra.mxu0 0.0
  %424 = vmatprep.subr.mxu0 0.0
  %425 = vmatpush1.msra.mxu0 0.0
  %426 = vmatprep.subr.mxu0 0.0
  %427 = vmatpush1.msra.mxu0 0.0
  %428 = vmatprep.subr.mxu0 0.0
  %429 = vmatpush1.msra.mxu0 0.0
  %430 = vmatprep.subr.mxu0 0.0
  %431 = vmatpush1.msra.mxu0 0.0
  %432 = vmatprep.subr.mxu0 0.0
  %433 = vmatpush1.msra.mxu0 0.0
  %434 = vmatprep.subr.mxu0 0.0
  %435 = vmatpush1.msra.mxu0 0.0
  %436 = vmatprep.subr.mxu0 0.0
  %437 = vmatpush1.msra.mxu0 0.0
  %438 = vmatprep.subr.mxu0 0.0
  %439 = vmatpush1.msra.mxu0 0.0
  %440 = vmatprep.subr.mxu0 0.0
  %441 = vmatpush1.msra.mxu0 0.0
  %442 = vmatprep.subr.mxu0 0.0
  %443 = vmatpush1.msra.mxu0 0.0
  %444 = vmatprep.subr.mxu0 0.0
  %445 = vmatpush1.msra.mxu0 0.0
  %446 = vmatprep.subr.mxu0 0.0
  %447 = vmatpush1.msra.mxu0 0.0
  %448 = vmatprep.subr.mxu0 0.0
  %449 = vmatpush1.msra.mxu0 0.0
  %450 = vmatprep.subr.mxu0 0.0
  %451 = vmatpush1.msra.mxu0 0.0
  %452 = vmatprep.subr.mxu0 0.0
  %453 = vmatpush1.msra.mxu0 0.0
  %454 = vmatprep.subr.mxu0 0.0
  %455 = vmatpush1.msra.mxu0 0.0
  %456 = vmatprep.subr.mxu0 0.0
  %457 = vmatpush1.msra.mxu0 0.0
  %458 = vmatprep.subr.mxu0 0.0
  %459 = vmatpush1.msra.mxu0 0.0
  %460 = vmatprep.subr.mxu0 0.0
  %461 = vmatpush1.msra.mxu0 0.0
  %462 = vmatprep.subr.mxu0 0.0
  %463 = vmatpush1.msra.mxu0 0.0
  %464 = vmatprep.subr.mxu0 0.0
  %465 = vmatpush1.msra.mxu0 0.0
  %466 = vmatprep.subr.mxu0 0.0
  %467 = vmatpush1.msra.mxu0 0.0
  %468 = vmatprep.subr.mxu0 0.0
  %469 = vmatpush1.msra.mxu0 0.0
  %470 = vmatprep.subr.mxu0 0.0
  %471 = vmatpush1.msra.mxu0 0.0
  %472 = vmatprep.subr.mxu0 0.0
  %473 = vmatpush1.msra.mxu0 0.0
  %474 = vmatprep.subr.mxu0 0.0
  %475 = vmatpush1.msra.mxu0 0.0
  %476 = vmatprep.subr.mxu0 0.0
  %477 = vmatpush1.msra.mxu0 0.0
  %478 = vmatprep.subr.mxu0 0.0
  %479 = vmatpush1.msra.mxu0 0.0
  %480 = vmatprep.subr.mxu0 0.0
  %481 = vmatpush1.msra.mxu0 0.0
  %v482 = vand.u32 %v107, 4294901760
  %v483 = vsub.f32 %v107, %v482
  %484 = vmatprep.mubr.f32.mxu0 %v483
  %v485 = vand.u32 %v105, 4294901760
  %v486 = vsub.f32 %v105, %v485
  %487 = vmatmul.mubr.f32.gmra.mrb[0].mxu0 %v486
  %v488 = vpop.f32.mrb[0].mxu0
  %v489 = vadd.f32 %v394, %v488
  %v490 = vpop.f32.mrb[0].mxu0
  %v491 = vand.u32 %v113, 4294901760
  %v492 = vsub.f32 %v113, %v491
  %493 = vmatprep.mubr.f32.mxu0 %v492
  %v494 = vand.u32 %v111, 4294901760
  %v495 = vsub.f32 %v111, %v494
  %496 = vmatmul.mubr.f32.gmra.mrb[0].mxu0 %v495
  %v497 = vpop.f32.mrb[0].mxu0
  %v498 = vadd.f32 %v401, %v497
  %v499 = vpop.f32.mrb[0].mxu0
  %v500 = vand.u32 %v193, 4294901760
  %v501 = vsub.f32 %v193, %v500
  %502 = vmatprep.mubr.f32.mxu0 %v501
  %v503 = vand.u32 %v192, 4294901760
  %v504 = vsub.f32 %v192, %v503
  %505 = vmatmul.mubr.f32.gmra.mrb[0].mxu0 %v504
  %v506 = vpop.f32.mrb[0].mxu0
  %v507 = vadd.f32 %v408, %v506
  %v508 = vpop.f32.mrb[0].mxu0
  %v509 = vand.u32 %v197, 4294901760
  %v510 = vsub.f32 %v197, %v509
  %511 = vmatprep.mubr.f32.mxu0 %v510
  %v512 = vand.u32 %v196, 4294901760
  %v513 = vsub.f32 %v196, %v512
  %514 = vmatmul.mubr.f32.gmra.mrb[0].mxu0 %v513
  %v515 = vpop.f32.mrb[0].mxu0
  %v516 = vadd.f32 %v415, %v515
  %v517 = vpop.f32.mrb[0].mxu0
  %518 = vdwg.mxu0
  %519 = vmatprep.subr.mxu0 0.0
  %520 = vmatpush1.msra.mxu0 1.0
  %521 = vmatprep.subr.mxu0 0.0
  %522 = vmatpush1.msra.mxu0 1.0
  %523 = vmatprep.subr.mxu0 0.0
  %524 = vmatpush1.msra.mxu0 1.0
  %525 = vmatprep.subr.mxu0 0.0
  %526 = vmatpush1.msra.mxu0 1.0
  %527 = vmatprep.subr.mxu0 0.0
  %528 = vmatpush1.msra.mxu0 1.0
  %529 = vmatprep.subr.mxu0 0.0
  %530 = vmatpush1.msra.mxu0 1.0
  %531 = vmatprep.subr.mxu0 0.0
  %532 = vmatpush1.msra.mxu0 1.0
  %533 = vmatprep.subr.mxu0 0.0
  %534 = vmatpush1.msra.mxu0 1.0
  %535 = vmatprep.subr.mxu0 0.0
  %536 = vmatpush1.msra.mxu0 1.0
  %537 = vmatprep.subr.mxu0 0.0
  %538 = vmatpush1.msra.mxu0 1.0
  %539 = vmatprep.subr.mxu0 0.0
  %540 = vmatpush1.msra.mxu0 1.0
  %541 = vmatprep.subr.mxu0 0.0
  %542 = vmatpush1.msra.mxu0 1.0
  %543 = vmatprep.subr.mxu0 0.0
  %544 = vmatpush1.msra.mxu0 1.0
  %545 = vmatprep.subr.mxu0 0.0
  %546 = vmatpush1.msra.mxu0 1.0
  %547 = vmatprep.subr.mxu0 0.0
  %548 = vmatpush1.msra.mxu0 1.0
  %549 = vmatprep.subr.mxu0 0.0
  %550 = vmatpush1.msra.mxu0 1.0
  %551 = vmatprep.subr.mxu0 0.0
  %552 = vmatpush1.msra.mxu0 1.0
  %553 = vmatprep.subr.mxu0 0.0
  %554 = vmatpush1.msra.mxu0 1.0
  %555 = vmatprep.subr.mxu0 0.0
  %556 = vmatpush1.msra.mxu0 1.0
  %557 = vmatprep.subr.mxu0 0.0
  %558 = vmatpush1.msra.mxu0 1.0
  %559 = vmatprep.subr.mxu0 0.0
  %560 = vmatpush1.msra.mxu0 1.0
  %561 = vmatprep.subr.mxu0 0.0
  %562 = vmatpush1.msra.mxu0 1.0
  %563 = vmatprep.subr.mxu0 0.0
  %564 = vmatpush1.msra.mxu0 1.0
  %565 = vmatprep.subr.mxu0 0.0
  %566 = vmatpush1.msra.mxu0 1.0
  %567 = vmatprep.subr.mxu0 0.0
  %568 = vmatpush1.msra.mxu0 1.0
  %569 = vmatprep.subr.mxu0 0.0
  %570 = vmatpush1.msra.mxu0 1.0
  %571 = vmatprep.subr.mxu0 0.0
  %572 = vmatpush1.msra.mxu0 1.0
  %573 = vmatprep.subr.mxu0 0.0
  %574 = vmatpush1.msra.mxu0 1.0
  %575 = vmatprep.subr.mxu0 0.0
  %576 = vmatpush1.msra.mxu0 1.0
  %577 = vmatprep.subr.mxu0 0.0
  %578 = vmatpush1.msra.mxu0 1.0
  %579 = vmatprep.subr.mxu0 0.0
  %580 = vmatpush1.msra.mxu0 1.0
  %581 = vmatprep.subr.mxu0 0.0
  %582 = vmatpush1.msra.mxu0 1.0
  %v583 = vand.u32 %v107, 4294901760
  %v584 = vsub.f32 %v107, %v583
  %v585 = vand.u32 %v584, 4294901760
  %586 = vmatprep.mubr.f32.mxu0 %v585
  %v587 = vand.u32 %v105, 4294901760
  %v588 = vsub.f32 %v105, %v587
  %v589 = vand.u32 %v588, 4294901760
  %590 = vmatmul.mubr.f32.gmra.mrb[0].mxu0 %v589
  %v591 = vpop.f32.mrb[0].mxu0
  %v592 = vadd.f32 %v489, %v591
  %v593 = vpop.f32.mrb[0].mxu0
  %v594 = vand.u32 %v113, 4294901760
  %v595 = vsub.f32 %v113, %v594
  %v596 = vand.u32 %v595, 4294901760
  %597 = vmatprep.mubr.f32.mxu0 %v596
  %v598 = vand.u32 %v111, 4294901760
  %v599 = vsub.f32 %v111, %v598
  %v600 = vand.u32 %v599, 4294901760
  %601 = vmatmul.mubr.f32.gmra.mrb[0].mxu0 %v600
  %v602 = vpop.f32.mrb[0].mxu0
  %v603 = vadd.f32 %v498, %v602
  %v604 = vpop.f32.mrb[0].mxu0
  %v605 = vand.u32 %v193, 4294901760
  %v606 = vsub.f32 %v193, %v605
  %v607 = vand.u32 %v606, 4294901760
  %608 = vmatprep.mubr.f32.mxu0 %v607
  %v609 = vand.u32 %v192, 4294901760
  %v610 = vsub.f32 %v192, %v609
  %v611 = vand.u32 %v610, 4294901760
  %612 = vmatmul.mubr.f32.gmra.mrb[0].mxu0 %v611
  %v613 = vpop.f32.mrb[0].mxu0
  %v614 = vadd.f32 %v507, %v613
  %v615 = vpop.f32.mrb[0].mxu0
  %v616 = vand.u32 %v197, 4294901760
  %v617 = vsub.f32 %v197, %v616
  %v618 = vand.u32 %v617, 4294901760
  %619 = vmatprep.mubr.f32.mxu0 %v618
  %v620 = vand.u32 %v196, 4294901760
  %v621 = vsub.f32 %v196, %v620
  %v622 = vand.u32 %v621, 4294901760
  %623 = vmatmul.mubr.f32.gmra.mrb[0].mxu0 %v622
  %v624 = vpop.f32.mrb[0].mxu0
  %v625 = vadd.f32 %v516, %v624
  %v626 = vpop.f32.mrb[0].mxu0
  %627 = vdwg.mxu0
  %628 = vmatprep.subr.mxu0 0.0
  %629 = vmatpush1.msra.mxu0 0.0
  %630 = vmatprep.subr.mxu0 0.0
  %631 = vmatpush1.msra.mxu0 0.0
  %632 = vmatprep.subr.mxu0 0.0
  %633 = vmatpush1.msra.mxu0 0.0
  %634 = vmatprep.subr.mxu0 0.0
  %635 = vmatpush1.msra.mxu0 0.0
  %636 = vmatprep.subr.mxu0 0.0
  %637 = vmatpush1.msra.mxu0 0.0
  %638 = vmatprep.subr.mxu0 0.0
  %639 = vmatpush1.msra.mxu0 0.0
  %640 = vmatprep.subr.mxu0 0.0
  %641 = vmatpush1.msra.mxu0 0.0
  %642 = vmatprep.subr.mxu0 0.0
  %643 = vmatpush1.msra.mxu0 0.0
  %644 = vmatprep.subr.mxu0 0.0
  %645 = vmatpush1.msra.mxu0 0.0
  %646 = vmatprep.subr.mxu0 0.0
  %647 = vmatpush1.msra.mxu0 0.0
  %648 = vmatprep.subr.mxu0 0.0
  %649 = vmatpush1.msra.mxu0 0.0
  %650 = vmatprep.subr.mxu0 0.0
  %651 = vmatpush1.msra.mxu0 0.0
  %652 = vmatprep.subr.mxu0 0.0
  %653 = vmatpush1.msra.mxu0 0.0
  %654 = vmatprep.subr.mxu0 0.0
  %655 = vmatpush1.msra.mxu0 0.0
  %656 = vmatprep.subr.mxu0 0.0
  %657 = vmatpush1.msra.mxu0 0.0
  %658 = vmatprep.subr.mxu0 0.0
  %659 = vmatpush1.msra.mxu0 0.0
  %660 = vmatprep.subr.mxu0 0.0
  %661 = vmatpush1.msra.mxu0 0.0
  %662 = vmatprep.subr.mxu0 0.0
  %663 = vmatpush1.msra.mxu0 0.0
  %664 = vmatprep.subr.mxu0 0.0
  %665 = vmatpush1.msra.mxu0 0.0
  %666 = vmatprep.subr.mxu0 0.0
  %667 = vmatpush1.msra.mxu0 0.0
  %668 = vmatprep.subr.mxu0 0.0
  %669 = vmatpush1.msra.mxu0 0.0
  %670 = vmatprep.subr.mxu0 0.0
  %671 = vmatpush1.msra.mxu0 0.0
  %672 = vmatprep.subr.mxu0 0.0
  %673 = vmatpush1.msra.mxu0 0.0
  %674 = vmatprep.subr.mxu0 0.0
  %675 = vmatpush1.msra.mxu0 0.0
  %676 = vmatprep.subr.mxu0 0.0
  %677 = vmatpush1.msra.mxu0 0.0
  %678 = vmatprep.subr.mxu0 0.0
  %679 = vmatpush1.msra.mxu0 0.0
  %680 = vmatprep.subr.mxu0 0.0
  %681 = vmatpush1.msra.mxu0 0.0
  %682 = vmatprep.subr.mxu0 0.0
  %683 = vmatpush1.msra.mxu0 0.0
  %684 = vmatprep.subr.mxu0 0.0
  %685 = vmatpush1.msra.mxu0 0.0
  %686 = vmatprep.subr.mxu0 0.0
  %687 = vmatpush1.msra.mxu0 0.0
  %688 = vmatprep.subr.mxu0 0.0
  %689 = vmatpush1.msra.mxu0 0.0
  %690 = vmatprep.subr.mxu0 0.0
  %691 = vmatpush1.msra.mxu0 0.0
  %v692 = vand.u32 %v107, 4294901760
  %693 = vmatprep.mubr.f32.mxu0 %v692
  %v694 = vand.u32 %v105, 4294901760
  %695 = vmatmul.mubr.f32.gmra.mrb[0].mxu0 %v694
  %v696 = vpop.f32.mrb[0].mxu0
  %v697 = vadd.f32 %v592, %v696
  %v698 = vpop.f32.mrb[0].mxu0
  %v699 = vand.u32 %v113, 4294901760
  %700 = vmatprep.mubr.f32.mxu0 %v699
  %v701 = vand.u32 %v111, 4294901760
  %702 = vmatmul.mubr.f32.gmra.mrb[0].mxu0 %v701
  %v703 = vpop.f32.mrb[0].mxu0
  %v704 = vadd.f32 %v603, %v703
  %v705 = vpop.f32.mrb[0].mxu0
  %v706 = vand.u32 %v193, 4294901760
  %707 = vmatprep.mubr.f32.mxu0 %v706
  %v708 = vand.u32 %v192, 4294901760
  %709 = vmatmul.mubr.f32.gmra.mrb[0].mxu0 %v708
  %v710 = vpop.f32.mrb[0].mxu0
  %v711 = vadd.f32 %v614, %v710
  %v712 = vpop.f32.mrb[0].mxu0
  %v713 = vand.u32 %v197, 4294901760
  %714 = vmatprep.mubr.f32.mxu0 %v713
  %v715 = vand.u32 %v196, 4294901760
  %716 = vmatmul.mubr.f32.gmra.mrb[0].mxu0 %v715
  %v717 = vpop.f32.mrb[0].mxu0
  %v718 = vadd.f32 %v625, %v717
  %v719 = vpop.f32.mrb[0].mxu0
  %720 = vdwg.mxu0
  %721 = vmatprep.subr.mxu0 0.0
  %722 = vmatpush1.msra.mxu0 1.0
  %723 = vmatprep.subr.mxu0 0.0
  %724 = vmatpush1.msra.mxu0 1.0
  %725 = vmatprep.subr.mxu0 0.0
  %726 = vmatpush1.msra.mxu0 1.0
  %727 = vmatprep.subr.mxu0 0.0
  %728 = vmatpush1.msra.mxu0 1.0
  %729 = vmatprep.subr.mxu0 0.0
  %730 = vmatpush1.msra.mxu0 1.0
  %731 = vmatprep.subr.mxu0 0.0
  %732 = vmatpush1.msra.mxu0 1.0
  %733 = vmatprep.subr.mxu0 0.0
  %734 = vmatpush1.msra.mxu0 1.0
  %735 = vmatprep.subr.mxu0 0.0
  %736 = vmatpush1.msra.mxu0 1.0
  %737 = vmatprep.subr.mxu0 0.0
  %738 = vmatpush1.msra.mxu0 1.0
  %739 = vmatprep.subr.mxu0 0.0
  %740 = vmatpush1.msra.mxu0 1.0
  %741 = vmatprep.subr.mxu0 0.0
  %742 = vmatpush1.msra.mxu0 1.0
  %743 = vmatprep.subr.mxu0 0.0
  %744 = vmatpush1.msra.mxu0 1.0
  %745 = vmatprep.subr.mxu0 0.0
  %746 = vmatpush1.msra.mxu0 1.0
  %747 = vmatprep.subr.mxu0 0.0
  %748 = vmatpush1.msra.mxu0 1.0
  %749 = vmatprep.subr.mxu0 0.0
  %750 = vmatpush1.msra.mxu0 1.0
  %751 = vmatprep.subr.mxu0 0.0
  %752 = vmatpush1.msra.mxu0 1.0
  %753 = vmatprep.subr.mxu0 0.0
  %754 = vmatpush1.msra.mxu0 1.0
  %755 = vmatprep.subr.mxu0 0.0
  %756 = vmatpush1.msra.mxu0 1.0
  %757 = vmatprep.subr.mxu0 0.0
  %758 = vmatpush1.msra.mxu0 1.0
  %759 = vmatprep.subr.mxu0 0.0
  %760 = vmatpush1.msra.mxu0 1.0
  %761 = vmatprep.subr.mxu0 0.0
  %762 = vmatpush1.msra.mxu0 1.0
  %763 = vmatprep.subr.mxu0 0.0
  %764 = vmatpush1.msra.mxu0 1.0
  %765 = vmatprep.subr.mxu0 0.0
  %766 = vmatpush1.msra.mxu0 1.0
  %767 = vmatprep.subr.mxu0 0.0
  %768 = vmatpush1.msra.mxu0 1.0
  %769 = vmatprep.subr.mxu0 0.0
  %770 = vmatpush1.msra.mxu0 1.0
  %771 = vmatprep.subr.mxu0 0.0
  %772 = vmatpush1.msra.mxu0 1.0
  %773 = vmatprep.subr.mxu0 0.0
  %774 = vmatpush1.msra.mxu0 1.0
  %775 = vmatprep.subr.mxu0 0.0
  %776 = vmatpush1.msra.mxu0 1.0
  %777 = vmatprep.subr.mxu0 0.0
  %778 = vmatpush1.msra.mxu0 1.0
  %779 = vmatprep.subr.mxu0 0.0
  %780 = vmatpush1.msra.mxu0 1.0
  %781 = vmatprep.subr.mxu0 0.0
  %782 = vmatpush1.msra.mxu0 1.0
  %783 = vmatprep.subr.mxu0 0.0
  %784 = vmatpush1.msra.mxu0 1.0
  %v785 = vand.u32 %v107, 4294901760
  %786 = vmatprep.mubr.f32.mxu0 %v785
  %v787 = vand.u32 %v105, 4294901760
  %788 = vmatmul.mubr.f32.gmra.mrb[0].mxu0 %v787
  %v789 = vpop.f32.mrb[0].mxu0
  %v790 = vadd.f32 %v697, %v789
  %v791 = vpop.f32.mrb[0].mxu0
  %v792 = vand.u32 %v113, 4294901760
  %793 = vmatprep.mubr.f32.mxu0 %v792
  %v794 = vand.u32 %v111, 4294901760
  %795 = vmatmul.mubr.f32.gmra.mrb[0].mxu0 %v794
  %v796 = vpop.f32.mrb[0].mxu0
  %v797 = vadd.f32 %v704, %v796
  %v798 = vpop.f32.mrb[0].mxu0
  %v799 = vand.u32 %v193, 4294901760
  %800 = vmatprep.mubr.f32.mxu0 %v799
  %v801 = vand.u32 %v192, 4294901760
  %802 = vmatmul.mubr.f32.gmra.mrb[0].mxu0 %v801
  %v803 = vpop.f32.mrb[0].mxu0
  %v804 = vadd.f32 %v711, %v803
  %v805 = vpop.f32.mrb[0].mxu0
  %v806 = vand.u32 %v197, 4294901760
  %807 = vmatprep.mubr.f32.mxu0 %v806
  %v808 = vand.u32 %v196, 4294901760
  %809 = vmatmul.mubr.f32.gmra.mrb[0].mxu0 %v808
  %v810 = vpop.f32.mrb[0].mxu0
  %v811 = vadd.f32 %v718, %v810
  %v812 = vpop.f32.mrb[0].mxu0
  %813 = vdwg.mxu0
  %814 = vmatprep.subr.mxu0 0.0
  %815 = vmatpush1.msra.mxu0 1.0
  %816 = vmatprep.subr.mxu0 0.0
  %817 = vmatpush1.msra.mxu0 1.0
  %818 = vmatprep.subr.mxu0 0.0
  %819 = vmatpush1.msra.mxu0 1.0
  %820 = vmatprep.subr.mxu0 0.0
  %821 = vmatpush1.msra.mxu0 1.0
  %822 = vmatprep.subr.mxu0 0.0
  %823 = vmatpush1.msra.mxu0 1.0
  %824 = vmatprep.subr.mxu0 0.0
  %825 = vmatpush1.msra.mxu0 1.0
  %826 = vmatprep.subr.mxu0 0.0
  %827 = vmatpush1.msra.mxu0 1.0
  %828 = vmatprep.subr.mxu0 0.0
  %829 = vmatpush1.msra.mxu0 1.0
  %830 = vmatprep.subr.mxu0 0.0
  %831 = vmatpush1.msra.mxu0 1.0
  %832 = vmatprep.subr.mxu0 0.0
  %833 = vmatpush1.msra.mxu0 1.0
  %834 = vmatprep.subr.mxu0 0.0
  %835 = vmatpush1.msra.mxu0 1.0
  %836 = vmatprep.subr.mxu0 0.0
  %837 = vmatpush1.msra.mxu0 1.0
  %838 = vmatprep.subr.mxu0 0.0
  %839 = vmatpush1.msra.mxu0 1.0
  %840 = vmatprep.subr.mxu0 0.0
  %841 = vmatpush1.msra.mxu0 1.0
  %842 = vmatprep.subr.mxu0 0.0
  %843 = vmatpush1.msra.mxu0 1.0
  %844 = vmatprep.subr.mxu0 0.0
  %845 = vmatpush1.msra.mxu0 1.0
  %846 = vmatprep.subr.mxu0 0.0
  %847 = vmatpush1.msra.mxu0 1.0
  %848 = vmatprep.subr.mxu0 0.0
  %849 = vmatpush1.msra.mxu0 1.0
  %850 = vmatprep.subr.mxu0 0.0
  %851 = vmatpush1.msra.mxu0 1.0
  %852 = vmatprep.subr.mxu0 0.0
  %853 = vmatpush1.msra.mxu0 1.0
  %854 = vmatprep.subr.mxu0 0.0
  %855 = vmatpush1.msra.mxu0 1.0
  %856 = vmatprep.subr.mxu0 0.0
  %857 = vmatpush1.msra.mxu0 1.0
  %858 = vmatprep.subr.mxu0 0.0
  %859 = vmatpush1.msra.mxu0 1.0
  %860 = vmatprep.subr.mxu0 0.0
  %861 = vmatpush1.msra.mxu0 1.0
  %862 = vmatprep.subr.mxu0 0.0
  %863 = vmatpush1.msra.mxu0 1.0
  %864 = vmatprep.subr.mxu0 0.0
  %865 = vmatpush1.msra.mxu0 1.0
  %866 = vmatprep.subr.mxu0 0.0
  %867 = vmatpush1.msra.mxu0 1.0
  %868 = vmatprep.subr.mxu0 0.0
  %869 = vmatpush1.msra.mxu0 1.0
  %870 = vmatprep.subr.mxu0 0.0
  %871 = vmatpush1.msra.mxu0 1.0
  %872 = vmatprep.subr.mxu0 0.0
  %873 = vmatpush1.msra.mxu0 1.0
  %874 = vmatprep.subr.mxu0 0.0
  %875 = vmatpush1.msra.mxu0 1.0
  %876 = vmatprep.subr.mxu0 0.0
  %877 = vmatpush1.msra.mxu0 1.0
  %v878 = vand.u32 %v184, 4294901760
  %v879 = vsub.f32 %v184, %v878
  %v880 = vand.u32 %v879, 4294901760
  %v881 = vsub.f32 %v879, %v880
  %v882 = vand.u32 %v881, 4294901760
  %883 = vmatprep.mubr.f32.mxu0 %v882
  %v884 = vand.u32 %v182, 4294901760
  %v885 = vsub.f32 %v182, %v884
  %v886 = vand.u32 %v885, 4294901760
  %v887 = vsub.f32 %v885, %v886
  %v888 = vand.u32 %v887, 4294901760
  %889 = vmatmul.mubr.f32.gmra.mrb[0].mxu0 %v888
  %v890 = vpop.f32.mrb[0].mxu0
  %v891 = vadd.f32 %v790, %v890
  %v892 = vpop.f32.mrb[0].mxu0
  %v893 = vand.u32 %v190, 4294901760
  %v894 = vsub.f32 %v190, %v893
  %v895 = vand.u32 %v894, 4294901760
  %v896 = vsub.f32 %v894, %v895
  %v897 = vand.u32 %v896, 4294901760
  %898 = vmatprep.mubr.f32.mxu0 %v897
  %v899 = vand.u32 %v188, 4294901760
  %v900 = vsub.f32 %v188, %v899
  %v901 = vand.u32 %v900, 4294901760
  %v902 = vsub.f32 %v900, %v901
  %v903 = vand.u32 %v902, 4294901760
  %904 = vmatmul.mubr.f32.gmra.mrb[0].mxu0 %v903
  %v905 = vpop.f32.mrb[0].mxu0
  %v906 = vadd.f32 %v797, %v905
  %v907 = vpop.f32.mrb[0].mxu0
  %v908 = vand.u32 %v195, 4294901760
  %v909 = vsub.f32 %v195, %v908
  %v910 = vand.u32 %v909, 4294901760
  %v911 = vsub.f32 %v909, %v910
  %v912 = vand.u32 %v911, 4294901760
  %913 = vmatprep.mubr.f32.mxu0 %v912
  %v914 = vand.u32 %v194, 4294901760
  %v915 = vsub.f32 %v194, %v914
  %v916 = vand.u32 %v915, 4294901760
  %v917 = vsub.f32 %v915, %v916
  %v918 = vand.u32 %v917, 4294901760
  %919 = vmatmul.mubr.f32.gmra.mrb[0].mxu0 %v918
  %v920 = vpop.f32.mrb[0].mxu0
  %v921 = vadd.f32 %v804, %v920
  %v922 = vpop.f32.mrb[0].mxu0
  %v923 = vand.u32 %v199, 4294901760
  %v924 = vsub.f32 %v199, %v923
  %v925 = vand.u32 %v924, 4294901760
  %v926 = vsub.f32 %v924, %v925
  %v927 = vand.u32 %v926, 4294901760
  %928 = vmatprep.mubr.f32.mxu0 %v927
  %v929 = vand.u32 %v198, 4294901760
  %v930 = vsub.f32 %v198, %v929
  %v931 = vand.u32 %v930, 4294901760
  %v932 = vsub.f32 %v930, %v931
  %v933 = vand.u32 %v932, 4294901760
  %934 = vmatmul.mubr.f32.gmra.mrb[0].mxu0 %v933
  %v935 = vpop.f32.mrb[0].mxu0
  %v936 = vadd.f32 %v811, %v935
  %v937 = vpop.f32.mrb[0].mxu0
  %938 = vdwg.mxu0
  %939 = vmatprep.subr.mxu0 0.0
  %940 = vmatpush1.msra.mxu0 0.0
  %941 = vmatprep.subr.mxu0 0.0
  %942 = vmatpush1.msra.mxu0 0.0
  %943 = vmatprep.subr.mxu0 0.0
  %944 = vmatpush1.msra.mxu0 0.0
  %945 = vmatprep.subr.mxu0 0.0
  %946 = vmatpush1.msra.mxu0 0.0
  %947 = vmatprep.subr.mxu0 0.0
  %948 = vmatpush1.msra.mxu0 0.0
  %949 = vmatprep.subr.mxu0 0.0
  %950 = vmatpush1.msra.mxu0 0.0
  %951 = vmatprep.subr.mxu0 0.0
  %952 = vmatpush1.msra.mxu0 0.0
  %953 = vmatprep.subr.mxu0 0.0
  %954 = vmatpush1.msra.mxu0 0.0
  %955 = vmatprep.subr.mxu0 0.0
  %956 = vmatpush1.msra.mxu0 0.0
  %957 = vmatprep.subr.mxu0 0.0
  %958 = vmatpush1.msra.mxu0 0.0
  %959 = vmatprep.subr.mxu0 0.0
  %960 = vmatpush1.msra.mxu0 0.0
  %961 = vmatprep.subr.mxu0 0.0
  %962 = vmatpush1.msra.mxu0 0.0
  %963 = vmatprep.subr.mxu0 0.0
  %964 = vmatpush1.msra.mxu0 0.0
  %965 = vmatprep.subr.mxu0 0.0
  %966 = vmatpush1.msra.mxu0 0.0
  %967 = vmatprep.subr.mxu0 0.0
  %968 = vmatpush1.msra.mxu0 0.0
  %969 = vmatprep.subr.mxu0 0.0
  %970 = vmatpush1.msra.mxu0 0.0
  %971 = vmatprep.subr.mxu0 0.0
  %972 = vmatpush1.msra.mxu0 0.0
  %973 = vmatprep.subr.mxu0 0.0
  %974 = vmatpush1.msra.mxu0 0.0
  %975 = vmatprep.subr.mxu0 0.0
  %976 = vmatpush1.msra.mxu0 0.0
  %977 = vmatprep.subr.mxu0 0.0
  %978 = vmatpush1.msra.mxu0 0.0
  %979 = vmatprep.subr.mxu0 0.0
  %980 = vmatpush1.msra.mxu0 0.0
  %981 = vmatprep.subr.mxu0 0.0
  %982 = vmatpush1.msra.mxu0 0.0
  %983 = vmatprep.subr.mxu0 0.0
  %984 = vmatpush1.msra.mxu0 0.0
  %985 = vmatprep.subr.mxu0 0.0
  %986 = vmatpush1.msra.mxu0 0.0
  %987 = vmatprep.subr.mxu0 0.0
  %988 = vmatpush1.msra.mxu0 0.0
  %989 = vmatprep.subr.mxu0 0.0
  %990 = vmatpush1.msra.mxu0 0.0
  %991 = vmatprep.subr.mxu0 0.0
  %992 = vmatpush1.msra.mxu0 0.0
  %993 = vmatprep.subr.mxu0 0.0
  %994 = vmatpush1.msra.mxu0 0.0
  %995 = vmatprep.subr.mxu0 0.0
  %996 = vmatpush1.msra.mxu0 0.0
  %997 = vmatprep.subr.mxu0 0.0
  %998 = vmatpush1.msra.mxu0 0.0
  %999 = vmatprep.subr.mxu0 0.0
  %1000 = vmatpush1.msra.mxu0 0.0
  %1001 = vmatprep.subr.mxu0 0.0
  %1002 = vmatpush1.msra.mxu0 0.0
  %v1003 = vand.u32 %v184, 4294901760
  %1004 = vmatprep.mubr.f32.mxu0 %v1003
  %v1005 = vand.u32 %v182, 4294901760
  %1006 = vmatmul.mubr.f32.gmra.mrb[0].mxu0 %v1005
  %v1007 = vpop.f32.mrb[0].mxu0
  %v1008 = vadd.f32 %v891, %v1007
  %v1009 = vpop.f32.mrb[0].mxu0
  %v1010 = vand.u32 %v190, 4294901760
  %1011 = vmatprep.mubr.f32.mxu0 %v1010
  %v1012 = vand.u32 %v188, 4294901760
  %1013 = vmatmul.mubr.f32.gmra.mrb[0].mxu0 %v1012
  %v1014 = vpop.f32.mrb[0].mxu0
  %v1015 = vadd.f32 %v906, %v1014
  %v1016 = vpop.f32.mrb[0].mxu0
  %v1017 = vand.u32 %v195, 4294901760
  %1018 = vmatprep.mubr.f32.mxu0 %v1017
  %v1019 = vand.u32 %v194, 4294901760
  %1020 = vmatmul.mubr.f32.gmra.mrb[0].mxu0 %v1019
  %v1021 = vpop.f32.mrb[0].mxu0
  %v1022 = vadd.f32 %v921, %v1021
  %v1023 = vpop.f32.mrb[0].mxu0
  %v1024 = vand.u32 %v199, 4294901760
  %1025 = vmatprep.mubr.f32.mxu0 %v1024
  %v1026 = vand.u32 %v198, 4294901760
  %1027 = vmatmul.mubr.f32.gmra.mrb[0].mxu0 %v1026
  %v1028 = vpop.f32.mrb[0].mxu0
  %v1029 = vadd.f32 %v936, %v1028
  %v1030 = vpop.f32.mrb[0].mxu0
  %1031 = vdwg.mxu0
  %1032 = vmatprep.subr.mxu0 0.0
  %1033 = vmatpush1.msra.mxu0 0.0
  %1034 = vmatprep.subr.mxu0 0.0
  %1035 = vmatpush1.msra.mxu0 0.0
  %1036 = vmatprep.subr.mxu0 0.0
  %1037 = vmatpush1.msra.mxu0 0.0
  %1038 = vmatprep.subr.mxu0 0.0
  %1039 = vmatpush1.msra.mxu0 0.0
  %1040 = vmatprep.subr.mxu0 0.0
  %1041 = vmatpush1.msra.mxu0 0.0
  %1042 = vmatprep.subr.mxu0 0.0
  %1043 = vmatpush1.msra.mxu0 0.0
  %1044 = vmatprep.subr.mxu0 0.0
  %1045 = vmatpush1.msra.mxu0 0.0
  %1046 = vmatprep.subr.mxu0 0.0
  %1047 = vmatpush1.msra.mxu0 0.0
  %1048 = vmatprep.subr.mxu0 0.0
  %1049 = vmatpush1.msra.mxu0 0.0
  %1050 = vmatprep.subr.mxu0 0.0
  %1051 = vmatpush1.msra.mxu0 0.0
  %1052 = vmatprep.subr.mxu0 0.0
  %1053 = vmatpush1.msra.mxu0 0.0
  %1054 = vmatprep.subr.mxu0 0.0
  %1055 = vmatpush1.msra.mxu0 0.0
  %1056 = vmatprep.subr.mxu0 0.0
  %1057 = vmatpush1.msra.mxu0 0.0
  %1058 = vmatprep.subr.mxu0 0.0
  %1059 = vmatpush1.msra.mxu0 0.0
  %1060 = vmatprep.subr.mxu0 0.0
  %1061 = vmatpush1.msra.mxu0 0.0
  %1062 = vmatprep.subr.mxu0 0.0
  %1063 = vmatpush1.msra.mxu0 0.0
  %1064 = vmatprep.subr.mxu0 0.0
  %1065 = vmatpush1.msra.mxu0 0.0
  %1066 = vmatprep.subr.mxu0 0.0
  %1067 = vmatpush1.msra.mxu0 0.0
  %1068 = vmatprep.subr.mxu0 0.0
  %1069 = vmatpush1.msra.mxu0 0.0
  %1070 = vmatprep.subr.mxu0 0.0
  %1071 = vmatpush1.msra.mxu0 0.0
  %1072 = vmatprep.subr.mxu0 0.0
  %1073 = vmatpush1.msra.mxu0 0.0
  %1074 = vmatprep.subr.mxu0 0.0
  %1075 = vmatpush1.msra.mxu0 0.0
  %1076 = vmatprep.subr.mxu0 0.0
  %1077 = vmatpush1.msra.mxu0 0.0
  %1078 = vmatprep.subr.mxu0 0.0
  %1079 = vmatpush1.msra.mxu0 0.0
  %1080 = vmatprep.subr.mxu0 0.0
  %1081 = vmatpush1.msra.mxu0 0.0
  %1082 = vmatprep.subr.mxu0 0.0
  %1083 = vmatpush1.msra.mxu0 0.0
  %1084 = vmatprep.subr.mxu0 0.0
  %1085 = vmatpush1.msra.mxu0 0.0
  %1086 = vmatprep.subr.mxu0 0.0
  %1087 = vmatpush1.msra.mxu0 0.0
  %1088 = vmatprep.subr.mxu0 0.0
  %1089 = vmatpush1.msra.mxu0 0.0
  %1090 = vmatprep.subr.mxu0 0.0
  %1091 = vmatpush1.msra.mxu0 0.0
  %1092 = vmatprep.subr.mxu0 0.0
  %1093 = vmatpush1.msra.mxu0 0.0
  %1094 = vmatprep.subr.mxu0 0.0
  %1095 = vmatpush1.msra.mxu0 0.0
  %v1096 = vand.u32 %v184, 4294901760
  %v1097 = vsub.f32 %v184, %v1096
  %1098 = vmatprep.mubr.f32.mxu0 %v1097
  %v1099 = vand.u32 %v182, 4294901760
  %v1100 = vsub.f32 %v182, %v1099
  %1101 = vmatmul.mubr.f32.gmra.mrb[0].mxu0 %v1100
  %v1102 = vpop.f32.mrb[0].mxu0
  %v1103 = vadd.f32 %v1008, %v1102
  %v1104 = vpop.f32.mrb[0].mxu0
  %v1105 = vand.u32 %v190, 4294901760
  %v1106 = vsub.f32 %v190, %v1105
  %1107 = vmatprep.mubr.f32.mxu0 %v1106
  %v1108 = vand.u32 %v188, 4294901760
  %v1109 = vsub.f32 %v188, %v1108
  %1110 = vmatmul.mubr.f32.gmra.mrb[0].mxu0 %v1109
  %v1111 = vpop.f32.mrb[0].mxu0
  %v1112 = vadd.f32 %v1015, %v1111
  %v1113 = vpop.f32.mrb[0].mxu0
  %v1114 = vand.u32 %v195, 4294901760
  %v1115 = vsub.f32 %v195, %v1114
  %1116 = vmatprep.mubr.f32.mxu0 %v1115
  %v1117 = vand.u32 %v194, 4294901760
  %v1118 = vsub.f32 %v194, %v1117
  %1119 = vmatmul.mubr.f32.gmra.mrb[0].mxu0 %v1118
  %v1120 = vpop.f32.mrb[0].mxu0
  %v1121 = vadd.f32 %v1022, %v1120
  %v1122 = vpop.f32.mrb[0].mxu0
  %v1123 = vand.u32 %v199, 4294901760
  %v1124 = vsub.f32 %v199, %v1123
  %1125 = vmatprep.mubr.f32.mxu0 %v1124
  %v1126 = vand.u32 %v198, 4294901760
  %v1127 = vsub.f32 %v198, %v1126
  %1128 = vmatmul.mubr.f32.gmra.mrb[0].mxu0 %v1127
  %v1129 = vpop.f32.mrb[0].mxu0
  %v1130 = vadd.f32 %v1029, %v1129
  %v1131 = vpop.f32.mrb[0].mxu0
  %1132 = vdwg.mxu0
  %1133 = vmatprep.subr.mxu0 0.0
  %1134 = vmatpush1.msra.mxu0 1.0
  %1135 = vmatprep.subr.mxu0 0.0
  %1136 = vmatpush1.msra.mxu0 1.0
  %1137 = vmatprep.subr.mxu0 0.0
  %1138 = vmatpush1.msra.mxu0 1.0
  %1139 = vmatprep.subr.mxu0 0.0
  %1140 = vmatpush1.msra.mxu0 1.0
  %1141 = vmatprep.subr.mxu0 0.0
  %1142 = vmatpush1.msra.mxu0 1.0
  %1143 = vmatprep.subr.mxu0 0.0
  %1144 = vmatpush1.msra.mxu0 1.0
  %1145 = vmatprep.subr.mxu0 0.0
  %1146 = vmatpush1.msra.mxu0 1.0
  %1147 = vmatprep.subr.mxu0 0.0
  %1148 = vmatpush1.msra.mxu0 1.0
  %1149 = vmatprep.subr.mxu0 0.0
  %1150 = vmatpush1.msra.mxu0 1.0
  %1151 = vmatprep.subr.mxu0 0.0
  %1152 = vmatpush1.msra.mxu0 1.0
  %1153 = vmatprep.subr.mxu0 0.0
  %1154 = vmatpush1.msra.mxu0 1.0
  %1155 = vmatprep.subr.mxu0 0.0
  %1156 = vmatpush1.msra.mxu0 1.0
  %1157 = vmatprep.subr.mxu0 0.0
  %1158 = vmatpush1.msra.mxu0 1.0
  %1159 = vmatprep.subr.mxu0 0.0
  %1160 = vmatpush1.msra.mxu0 1.0
  %1161 = vmatprep.subr.mxu0 0.0
  %1162 = vmatpush1.msra.mxu0 1.0
  %1163 = vmatprep.subr.mxu0 0.0
  %1164 = vmatpush1.msra.mxu0 1.0
  %1165 = vmatprep.subr.mxu0 0.0
  %1166 = vmatpush1.msra.mxu0 1.0
  %1167 = vmatprep.subr.mxu0 0.0
  %1168 = vmatpush1.msra.mxu0 1.0
  %1169 = vmatprep.subr.mxu0 0.0
  %1170 = vmatpush1.msra.mxu0 1.0
  %1171 = vmatprep.subr.mxu0 0.0
  %1172 = vmatpush1.msra.mxu0 1.0
  %1173 = vmatprep.subr.mxu0 0.0
  %1174 = vmatpush1.msra.mxu0 1.0
  %1175 = vmatprep.subr.mxu0 0.0
  %1176 = vmatpush1.msra.mxu0 1.0
  %1177 = vmatprep.subr.mxu0 0.0
  %1178 = vmatpush1.msra.mxu0 1.0
  %1179 = vmatprep.subr.mxu0 0.0
  %1180 = vmatpush1.msra.mxu0 1.0
  %1181 = vmatprep.subr.mxu0 0.0
  %1182 = vmatpush1.msra.mxu0 1.0
  %1183 = vmatprep.subr.mxu0 0.0
  %1184 = vmatpush1.msra.mxu0 1.0
  %1185 = vmatprep.subr.mxu0 0.0
  %1186 = vmatpush1.msra.mxu0 1.0
  %1187 = vmatprep.subr.mxu0 0.0
  %1188 = vmatpush1.msra.mxu0 1.0
  %1189 = vmatprep.subr.mxu0 0.0
  %1190 = vmatpush1.msra.mxu0 1.0
  %1191 = vmatprep.subr.mxu0 0.0
  %1192 = vmatpush1.msra.mxu0 1.0
  %1193 = vmatprep.subr.mxu0 0.0
  %1194 = vmatpush1.msra.mxu0 1.0
  %1195 = vmatprep.subr.mxu0 0.0
  %1196 = vmatpush1.msra.mxu0 1.0
  %v1197 = vand.u32 %v184, 4294901760
  %v1198 = vsub.f32 %v184, %v1197
  %v1199 = vand.u32 %v1198, 4294901760
  %1200 = vmatprep.mubr.f32.mxu0 %v1199
  %v1201 = vand.u32 %v182, 4294901760
  %v1202 = vsub.f32 %v182, %v1201
  %v1203 = vand.u32 %v1202, 4294901760
  %1204 = vmatmul.mubr.f32.gmra.mrb[0].mxu0 %v1203
  %v1205 = vpop.f32.mrb[0].mxu0
  %v1206 = vadd.f32 %v1103, %v1205
  %v1207 = vpop.f32.mrb[0].mxu0
  %v1208 = vand.u32 %v190, 4294901760
  %v1209 = vsub.f32 %v190, %v1208
  %v1210 = vand.u32 %v1209, 4294901760
  %1211 = vmatprep.mubr.f32.mxu0 %v1210
  %v1212 = vand.u32 %v188, 4294901760
  %v1213 = vsub.f32 %v188, %v1212
  %v1214 = vand.u32 %v1213, 4294901760
  %1215 = vmatmul.mubr.f32.gmra.mrb[0].mxu0 %v1214
  %v1216 = vpop.f32.mrb[0].mxu0
  %v1217 = vadd.f32 %v1112, %v1216
  %v1218 = vpop.f32.mrb[0].mxu0
  %v1219 = vand.u32 %v195, 4294901760
  %v1220 = vsub.f32 %v195, %v1219
  %v1221 = vand.u32 %v1220, 4294901760
  %1222 = vmatprep.mubr.f32.mxu0 %v1221
  %v1223 = vand.u32 %v194, 4294901760
  %v1224 = vsub.f32 %v194, %v1223
  %v1225 = vand.u32 %v1224, 4294901760
  %1226 = vmatmul.mubr.f32.gmra.mrb[0].mxu0 %v1225
  %v1227 = vpop.f32.mrb[0].mxu0
  %v1228 = vadd.f32 %v1121, %v1227
  %v1229 = vpop.f32.mrb[0].mxu0
  %v1230 = vand.u32 %v199, 4294901760
  %v1231 = vsub.f32 %v199, %v1230
  %v1232 = vand.u32 %v1231, 4294901760
  %1233 = vmatprep.mubr.f32.mxu0 %v1232
  %v1234 = vand.u32 %v198, 4294901760
  %v1235 = vsub.f32 %v198, %v1234
  %v1236 = vand.u32 %v1235, 4294901760
  %1237 = vmatmul.mubr.f32.gmra.mrb[0].mxu0 %v1236
  %v1238 = vpop.f32.mrb[0].mxu0
  %v1239 = vadd.f32 %v1130, %v1238
  %v1240 = vpop.f32.mrb[0].mxu0
  %1241 = vdwg.mxu0
  %1242 = vmatprep.subr.mxu0 0.0
  %1243 = vmatpush1.msra.mxu0 0.0
  %1244 = vmatprep.subr.mxu0 0.0
  %1245 = vmatpush1.msra.mxu0 0.0
  %1246 = vmatprep.subr.mxu0 0.0
  %1247 = vmatpush1.msra.mxu0 0.0
  %1248 = vmatprep.subr.mxu0 0.0
  %1249 = vmatpush1.msra.mxu0 0.0
  %1250 = vmatprep.subr.mxu0 0.0
  %1251 = vmatpush1.msra.mxu0 0.0
  %1252 = vmatprep.subr.mxu0 0.0
  %1253 = vmatpush1.msra.mxu0 0.0
  %1254 = vmatprep.subr.mxu0 0.0
  %1255 = vmatpush1.msra.mxu0 0.0
  %1256 = vmatprep.subr.mxu0 0.0
  %1257 = vmatpush1.msra.mxu0 0.0
  %1258 = vmatprep.subr.mxu0 0.0
  %1259 = vmatpush1.msra.mxu0 0.0
  %1260 = vmatprep.subr.mxu0 0.0
  %1261 = vmatpush1.msra.mxu0 0.0
  %1262 = vmatprep.subr.mxu0 0.0
  %1263 = vmatpush1.msra.mxu0 0.0
  %1264 = vmatprep.subr.mxu0 0.0
  %1265 = vmatpush1.msra.mxu0 0.0
  %1266 = vmatprep.subr.mxu0 0.0
  %1267 = vmatpush1.msra.mxu0 0.0
  %1268 = vmatprep.subr.mxu0 0.0
  %1269 = vmatpush1.msra.mxu0 0.0
  %1270 = vmatprep.subr.mxu0 0.0
  %1271 = vmatpush1.msra.mxu0 0.0
  %1272 = vmatprep.subr.mxu0 0.0
  %1273 = vmatpush1.msra.mxu0 0.0
  %1274 = vmatprep.subr.mxu0 0.0
  %1275 = vmatpush1.msra.mxu0 0.0
  %1276 = vmatprep.subr.mxu0 0.0
  %1277 = vmatpush1.msra.mxu0 0.0
  %1278 = vmatprep.subr.mxu0 0.0
  %1279 = vmatpush1.msra.mxu0 0.0
  %1280 = vmatprep.subr.mxu0 0.0
  %1281 = vmatpush1.msra.mxu0 0.0
  %1282 = vmatprep.subr.mxu0 0.0
  %1283 = vmatpush1.msra.mxu0 0.0
  %1284 = vmatprep.subr.mxu0 0.0
  %1285 = vmatpush1.msra.mxu0 0.0
  %1286 = vmatprep.subr.mxu0 0.0
  %1287 = vmatpush1.msra.mxu0 0.0
  %1288 = vmatprep.subr.mxu0 0.0
  %1289 = vmatpush1.msra.mxu0 0.0
  %1290 = vmatprep.subr.mxu0 0.0
  %1291 = vmatpush1.msra.mxu0 0.0
  %1292 = vmatprep.subr.mxu0 0.0
  %1293 = vmatpush1.msra.mxu0 0.0
  %1294 = vmatprep.subr.mxu0 0.0
  %1295 = vmatpush1.msra.mxu0 0.0
  %1296 = vmatprep.subr.mxu0 0.0
  %1297 = vmatpush1.msra.mxu0 0.0
  %1298 = vmatprep.subr.mxu0 0.0
  %1299 = vmatpush1.msra.mxu0 0.0
  %1300 = vmatprep.subr.mxu0 0.0
  %1301 = vmatpush1.msra.mxu0 0.0
  %1302 = vmatprep.subr.mxu0 0.0
  %1303 = vmatpush1.msra.mxu0 0.0
  %1304 = vmatprep.subr.mxu0 0.0
  %1305 = vmatpush1.msra.mxu0 0.0
  %v1306 = vand.u32 %v184, 4294901760
  %1307 = vmatprep.mubr.f32.mxu0 %v1306
  %v1308 = vand.u32 %v182, 4294901760
  %1309 = vmatmul.mubr.f32.gmra.mrb[0].mxu0 %v1308
  %v1310 = vpop.f32.mrb[0].mxu0
  %v1311 = vadd.f32 %v1206, %v1310
  %v1312 = vpop.f32.mrb[0].mxu0
  %v1313 = vand.u32 %v190, 4294901760
  %1314 = vmatprep.mubr.f32.mxu0 %v1313
  %v1315 = vand.u32 %v188, 4294901760
  %1316 = vmatmul.mubr.f32.gmra.mrb[0].mxu0 %v1315
  %v1317 = vpop.f32.mrb[0].mxu0
  %v1318 = vadd.f32 %v1217, %v1317
  %v1319 = vpop.f32.mrb[0].mxu0
  %v1320 = vand.u32 %v195, 4294901760
  %1321 = vmatprep.mubr.f32.mxu0 %v1320
  %v1322 = vand.u32 %v194, 4294901760
  %1323 = vmatmul.mubr.f32.gmra.mrb[0].mxu0 %v1322
  %v1324 = vpop.f32.mrb[0].mxu0
  %v1325 = vadd.f32 %v1228, %v1324
  %v1326 = vpop.f32.mrb[0].mxu0
  %v1327 = vand.u32 %v199, 4294901760
  %1328 = vmatprep.mubr.f32.mxu0 %v1327
  %v1329 = vand.u32 %v198, 4294901760
  %1330 = vmatmul.mubr.f32.gmra.mrb[0].mxu0 %v1329
  %v1331 = vpop.f32.mrb[0].mxu0
  %v1332 = vadd.f32 %v1239, %v1331
  %v1333 = vpop.f32.mrb[0].mxu0
  %1334 = vdwg.mxu0
  %1335 = vmatprep.subr.mxu0 0.0
  %1336 = vmatpush1.msra.mxu0 1.0
  %1337 = vmatprep.subr.mxu0 0.0
  %1338 = vmatpush1.msra.mxu0 1.0
  %1339 = vmatprep.subr.mxu0 0.0
  %1340 = vmatpush1.msra.mxu0 1.0
  %1341 = vmatprep.subr.mxu0 0.0
  %1342 = vmatpush1.msra.mxu0 1.0
  %1343 = vmatprep.subr.mxu0 0.0
  %1344 = vmatpush1.msra.mxu0 1.0
  %1345 = vmatprep.subr.mxu0 0.0
  %1346 = vmatpush1.msra.mxu0 1.0
  %1347 = vmatprep.subr.mxu0 0.0
  %1348 = vmatpush1.msra.mxu0 1.0
  %1349 = vmatprep.subr.mxu0 0.0
  %1350 = vmatpush1.msra.mxu0 1.0
  %1351 = vmatprep.subr.mxu0 0.0
  %1352 = vmatpush1.msra.mxu0 1.0
  %1353 = vmatprep.subr.mxu0 0.0
  %1354 = vmatpush1.msra.mxu0 1.0
  %1355 = vmatprep.subr.mxu0 0.0
  %1356 = vmatpush1.msra.mxu0 1.0
  %1357 = vmatprep.subr.mxu0 0.0
  %1358 = vmatpush1.msra.mxu0 1.0
  %1359 = vmatprep.subr.mxu0 0.0
  %1360 = vmatpush1.msra.mxu0 1.0
  %1361 = vmatprep.subr.mxu0 0.0
  %1362 = vmatpush1.msra.mxu0 1.0
  %1363 = vmatprep.subr.mxu0 0.0
  %1364 = vmatpush1.msra.mxu0 1.0
  %1365 = vmatprep.subr.mxu0 0.0
  %1366 = vmatpush1.msra.mxu0 1.0
  %1367 = vmatprep.subr.mxu0 0.0
  %1368 = vmatpush1.msra.mxu0 1.0
  %1369 = vmatprep.subr.mxu0 0.0
  %1370 = vmatpush1.msra.mxu0 1.0
  %1371 = vmatprep.subr.mxu0 0.0
  %1372 = vmatpush1.msra.mxu0 1.0
  %1373 = vmatprep.subr.mxu0 0.0
  %1374 = vmatpush1.msra.mxu0 1.0
  %1375 = vmatprep.subr.mxu0 0.0
  %1376 = vmatpush1.msra.mxu0 1.0
  %1377 = vmatprep.subr.mxu0 0.0
  %1378 = vmatpush1.msra.mxu0 1.0
  %1379 = vmatprep.subr.mxu0 0.0
  %1380 = vmatpush1.msra.mxu0 1.0
  %1381 = vmatprep.subr.mxu0 0.0
  %1382 = vmatpush1.msra.mxu0 1.0
  %1383 = vmatprep.subr.mxu0 0.0
  %1384 = vmatpush1.msra.mxu0 1.0
  %1385 = vmatprep.subr.mxu0 0.0
  %1386 = vmatpush1.msra.mxu0 1.0
  %1387 = vmatprep.subr.mxu0 0.0
  %1388 = vmatpush1.msra.mxu0 1.0
  %1389 = vmatprep.subr.mxu0 0.0
  %1390 = vmatpush1.msra.mxu0 1.0
  %1391 = vmatprep.subr.mxu0 0.0
  %1392 = vmatpush1.msra.mxu0 1.0
  %1393 = vmatprep.subr.mxu0 0.0
  %1394 = vmatpush1.msra.mxu0 1.0
  %1395 = vmatprep.subr.mxu0 0.0
  %1396 = vmatpush1.msra.mxu0 1.0
  %1397 = vmatprep.subr.mxu0 0.0
  %1398 = vmatpush1.msra.mxu0 1.0
  %v1399 = vand.u32 %v184, 4294901760
  %1400 = vmatprep.mubr.f32.mxu0 %v1399
  %v1401 = vand.u32 %v182, 4294901760
  %1402 = vmatmul.mubr.f32.gmra.mrb[0].mxu0 %v1401
  %v1403 = vpop.f32.mrb[0].mxu0
  %v1404 = vadd.f32 %v1311, %v1403
  %v1405 = vpop.f32.mrb[0].mxu0
  %v1406 = vand.u32 %v190, 4294901760
  %1407 = vmatprep.mubr.f32.mxu0 %v1406
  %v1408 = vand.u32 %v188, 4294901760
  %1409 = vmatmul.mubr.f32.gmra.mrb[0].mxu0 %v1408
  %v1410 = vpop.f32.mrb[0].mxu0
  %v1411 = vadd.f32 %v1318, %v1410
  %v1412 = vpop.f32.mrb[0].mxu0
  %v1413 = vand.u32 %v195, 4294901760
  %1414 = vmatprep.mubr.f32.mxu0 %v1413
  %v1415 = vand.u32 %v194, 4294901760
  %1416 = vmatmul.mubr.f32.gmra.mrb[0].mxu0 %v1415
  %v1417 = vpop.f32.mrb[0].mxu0
  %v1418 = vadd.f32 %v1325, %v1417
  %v1419 = vpop.f32.mrb[0].mxu0
  %v1420 = vand.u32 %v199, 4294901760
  %1421 = vmatprep.mubr.f32.mxu0 %v1420
  %v1422 = vand.u32 %v198, 4294901760
  %1423 = vmatmul.mubr.f32.gmra.mrb[0].mxu0 %v1422
  %v1424 = vpop.f32.mrb[0].mxu0
  %v1425 = vadd.f32 %v1332, %v1424
  %v1426 = vpop.f32.mrb[0].mxu0
  %1427 = vdwg.mxu0
  %v1428 = vmul.f32 %v1404, 0.001953125
  %v1429 = vmul.f32 %v1411, 0.001953125
  %v1430 = vmul.f32 %v1418, 0.001953125
  %v1431 = vmul.f32 %v1425, 0.001953125
  %v1432 = vmul.f32 %v1428, %v1428
  %v1433 = vmul.f32 %v1429, %v1429
  %v1434 = vsub.f32 %v1430, %v1432
  %v1435 = vsub.f32 %v1431, %v1433
  %v1436 = vmax.f32 %v1434, 0.0
  %v1437 = vmax.f32 %v1435, 0.0
  %v1438 = vadd.f32 %v1436, 1e-05
  %v1439 = vadd.f32 %v1437, 1e-05
  %v1440 = vrsqrt.pop %v1438
  %v1441 = vrsqrt.pop %v1439
  %1444 = vrot.lane.b32.xlu0 %v1440, 68
  %v1445 = vpop.permute.xlu0 %1444
  %1446 = vrot.lane.b32.xlu0 %v1441, 68
  %v1447 = vpop.permute.xlu0 %1446
  %v1450 = vmul.f32 %v11, %v1445
  %v1451 = vmul.f32 %v12, %v1447
  %1454 = vrot.lane.b32.xlu0 %v1450, 60
  %v1455 = vpop.permute.xlu0 %1454
  %1456 = vrot.lane.b32.xlu0 %v1451, 60
  %v1457 = vpop.permute.xlu0 %1456
  %v1460 = vmul.f32 %v1428, %v1455
  %v1461 = vmul.f32 %v1429, %v1457
  %1464 = vrot.lane.b32.xlu0 %v1460, 69
  %v1465 = vpop.permute.xlu0 %1464
  %1466 = vrot.lane.b32.xlu0 %v1461, 69
  %v1467 = vpop.permute.xlu0 %1466
  %v1470 = vsub.f32 %v11, %v1465
  %v1471 = vsub.f32 %v12, %v1467
  %1472 = vset.pattern.permute.xlu0 68
  %1473 = vperm.xlu0 %1472, %v1450
  %v1474 = vpop.permute.xlu0 %1473
  %1476 = vset.pattern.permute.xlu0 68
  %1477 = vperm.xlu0 %1476, %v1451
  %v1478 = vpop.permute.xlu0 %1477
  %v1480 = vmul.f32 %v105, %v1474
  %v1481 = vmul.f32 %v107, %v1474
  %v1482 = vmul.f32 %v182, %v1474
  %v1483 = vmul.f32 %v184, %v1474
  %v1484 = vmul.f32 %v111, %v1478
  %v1485 = vmul.f32 %v113, %v1478
  %v1486 = vmul.f32 %v188, %v1478
  %v1487 = vmul.f32 %v190, %v1478
  %1489 = vset.pattern.permute.xlu0 69
  %1490 = vperm.xlu0 %1489, %v1470
  %v1491 = vpop.permute.xlu0 %1490
  %1494 = vset.pattern.permute.xlu0 69
  %1495 = vperm.xlu0 %1494, %v1471
  %v1496 = vpop.permute.xlu0 %1495
  %v1498 = vadd.f32 %v1480, %v1491
  %v1499 = vadd.f32 %v1481, %v1491
  %v1500 = vadd.f32 %v1482, %v1491
  %v1501 = vadd.f32 %v1483, %v1491
  %v1502 = vadd.f32 %v1484, %v1496
  %v1503 = vadd.f32 %v1485, %v1496
  %v1504 = vadd.f32 %v1486, %v1496
  %v1505 = vadd.f32 %v1487, %v1496
  %v1506 = vmax.f32 %v1498, 0.0
  %v1507 = vmax.f32 %v1499, 0.0
  %v1508 = vmax.f32 %v1500, 0.0
  %v1509 = vmax.f32 %v1501, 0.0
  %v1510 = vmax.f32 %v1502, 0.0
  %v1511 = vmax.f32 %v1503, 0.0
  %v1512 = vmax.f32 %v1504, 0.0
  %v1513 = vmax.f32 %v1505, 0.0
  %1516 = vrot.lane.b32.xlu0 %v11, 124
  %v1517 = vpop.permute.xlu0 %1516
  %1518 = vrot.lane.b32.xlu0 %v12, 124
  %v1519 = vpop.permute.xlu0 %1518
  %1520 = vrot.lane.b32.xlu0 %v13, 124
  %v1521 = vpop.permute.xlu0 %1520
  %1522 = vrot.lane.b32.xlu0 %v14, 124
  %v1523 = vpop.permute.xlu0 %1522
  %vm1524 = vcmask 130048
  %v1525 = vsel %vm1524, %v1517, 0
  %v1527 = vsel %vm1524, %v1519, 0
  %v1529 = vsel %vm1524, %v1521, 0
  %v1531 = vsel %vm1524, %v1523, 0
  %1533 = vmatprep.subr.mxu0 %v1507
  %1534 = vmatpush1.msra.mxu0 %v1506
  %1535 = vmatprep.subr.mxu0 %v1511
  %1536 = vmatpush1.msra.mxu0 %v1510
  %1537 = vmatprep.subr.mxu0 0.0
  %1538 = vmatpush1.msra.mxu0 0.0
  %1539 = vmatprep.subr.mxu0 0.0
  %1540 = vmatpush1.msra.mxu0 0.0
  %1541 = vmatprep.subr.mxu0 0.0
  %1542 = vmatpush1.msra.mxu0 0.0
  %1543 = vmatprep.subr.mxu0 0.0
  %1544 = vmatpush1.msra.mxu0 0.0
  %1545 = vmatprep.subr.mxu0 0.0
  %1546 = vmatpush1.msra.mxu0 0.0
  %1547 = vmatprep.subr.mxu0 0.0
  %1548 = vmatpush1.msra.mxu0 0.0
  %1549 = vmatprep.subr.mxu0 0.0
  %1550 = vmatpush1.msra.mxu0 0.0
  %1551 = vmatprep.subr.mxu0 0.0
  %1552 = vmatpush1.msra.mxu0 0.0
  %1553 = vmatprep.subr.mxu0 0.0
  %1554 = vmatpush1.msra.mxu0 0.0
  %1555 = vmatprep.subr.mxu0 0.0
  %1556 = vmatpush1.msra.mxu0 0.0
  %1557 = vmatprep.subr.mxu0 0.0
  %1558 = vmatpush1.msra.mxu0 0.0
  %1559 = vmatprep.subr.mxu0 0.0
  %1560 = vmatpush1.msra.mxu0 0.0
  %1561 = vmatprep.subr.mxu0 0.0
  %1562 = vmatpush1.msra.mxu0 0.0
  %1563 = vmatprep.subr.mxu0 0.0
  %1564 = vmatpush1.msra.mxu0 0.0
  %1565 = vmatprep.subr.mxu0 0.0
  %1566 = vmatpush1.msra.mxu0 0.0
  %1567 = vmatprep.subr.mxu0 0.0
  %1568 = vmatpush1.msra.mxu0 0.0
  %1569 = vmatprep.subr.mxu0 0.0
  %1570 = vmatpush1.msra.mxu0 0.0
  %1571 = vmatprep.subr.mxu0 0.0
  %1572 = vmatpush1.msra.mxu0 0.0
  %1573 = vmatprep.subr.mxu0 0.0
  %1574 = vmatpush1.msra.mxu0 0.0
  %1575 = vmatprep.subr.mxu0 0.0
  %1576 = vmatpush1.msra.mxu0 0.0
  %1577 = vmatprep.subr.mxu0 0.0
  %1578 = vmatpush1.msra.mxu0 0.0
  %1579 = vmatprep.subr.mxu0 0.0
  %1580 = vmatpush1.msra.mxu0 0.0
  %1581 = vmatprep.subr.mxu0 0.0
  %1582 = vmatpush1.msra.mxu0 0.0
  %1583 = vmatprep.subr.mxu0 0.0
  %1584 = vmatpush1.msra.mxu0 0.0
  %1585 = vmatprep.subr.mxu0 0.0
  %1586 = vmatpush1.msra.mxu0 0.0
  %1587 = vmatprep.subr.mxu0 0.0
  %1588 = vmatpush1.msra.mxu0 0.0
  %1589 = vmatprep.subr.mxu0 0.0
  %1590 = vmatpush1.msra.mxu0 0.0
  %1591 = vmatprep.subr.mxu0 0.0
  %1592 = vmatpush1.msra.mxu0 0.0
  %1593 = vmatprep.subr.mxu0 0.0
  %1594 = vmatpush1.msra.mxu0 0.0
  %1595 = vmatprep.subr.mxu0 0.0
  %1596 = vmatpush1.msra.mxu0 0.0
  %1597 = vmatprep.mubr.f32.mxu0 0.0
  %1598 = vmatmul.mubr.f32.gmra.mrb[0].mxu0 %v1525
  %v1599 = vpop.f32.mrb[0].mxu0
  %v1600 = vadd.f32 0.0, %v1599
  %v1601 = vpop.f32.mrb[0].mxu0
  %v1602 = vadd.f32 0.0, %v1601
  %1603 = vmatprep.mubr.f32.mxu0 0.0
  %1604 = vmatmul.mubr.f32.gmra.mrb[0].mxu0 %v1527
  %v1605 = vpop.f32.mrb[0].mxu0
  %v1606 = vadd.f32 0.0, %v1605
  %v1607 = vpop.f32.mrb[0].mxu0
  %v1608 = vadd.f32 0.0, %v1607
  %1609 = vmatprep.mubr.f32.mxu0 0.0
  %1610 = vmatmul.mubr.f32.gmra.mrb[0].mxu0 %v1529
  %v1611 = vpop.f32.mrb[0].mxu0
  %v1612 = vadd.f32 0.0, %v1611
  %v1613 = vpop.f32.mrb[0].mxu0
  %v1614 = vadd.f32 0.0, %v1613
  %1615 = vmatprep.mubr.f32.mxu0 0.0
  %1616 = vmatmul.mubr.f32.gmra.mrb[0].mxu0 %v1531
  %v1617 = vpop.f32.mrb[0].mxu0
  %v1618 = vadd.f32 0.0, %v1617
  %v1619 = vpop.f32.mrb[0].mxu0
  %v1620 = vadd.f32 0.0, %v1619
  %1621 = vdwg.mxu0
  %1622 = vmatprep.subr.mxu0 %v1509
  %1623 = vmatpush1.msra.mxu0 %v1508
  %1624 = vmatprep.subr.mxu0 %v1513
  %1625 = vmatpush1.msra.mxu0 %v1512
  %1626 = vmatprep.subr.mxu0 0.0
  %1627 = vmatpush1.msra.mxu0 0.0
  %1628 = vmatprep.subr.mxu0 0.0
  %1629 = vmatpush1.msra.mxu0 0.0
  %1630 = vmatprep.subr.mxu0 0.0
  %1631 = vmatpush1.msra.mxu0 0.0
  %1632 = vmatprep.subr.mxu0 0.0
  %1633 = vmatpush1.msra.mxu0 0.0
  %1634 = vmatprep.subr.mxu0 0.0
  %1635 = vmatpush1.msra.mxu0 0.0
  %1636 = vmatprep.subr.mxu0 0.0
  %1637 = vmatpush1.msra.mxu0 0.0
  %1638 = vmatprep.subr.mxu0 0.0
  %1639 = vmatpush1.msra.mxu0 0.0
  %1640 = vmatprep.subr.mxu0 0.0
  %1641 = vmatpush1.msra.mxu0 0.0
  %1642 = vmatprep.subr.mxu0 0.0
  %1643 = vmatpush1.msra.mxu0 0.0
  %1644 = vmatprep.subr.mxu0 0.0
  %1645 = vmatpush1.msra.mxu0 0.0
  %1646 = vmatprep.subr.mxu0 0.0
  %1647 = vmatpush1.msra.mxu0 0.0
  %1648 = vmatprep.subr.mxu0 0.0
  %1649 = vmatpush1.msra.mxu0 0.0
  %1650 = vmatprep.subr.mxu0 0.0
  %1651 = vmatpush1.msra.mxu0 0.0
  %1652 = vmatprep.subr.mxu0 0.0
  %1653 = vmatpush1.msra.mxu0 0.0
  %1654 = vmatprep.subr.mxu0 0.0
  %1655 = vmatpush1.msra.mxu0 0.0
  %1656 = vmatprep.subr.mxu0 0.0
  %1657 = vmatpush1.msra.mxu0 0.0
  %1658 = vmatprep.subr.mxu0 0.0
  %1659 = vmatpush1.msra.mxu0 0.0
  %1660 = vmatprep.subr.mxu0 0.0
  %1661 = vmatpush1.msra.mxu0 0.0
  %1662 = vmatprep.subr.mxu0 0.0
  %1663 = vmatpush1.msra.mxu0 0.0
  %1664 = vmatprep.subr.mxu0 0.0
  %1665 = vmatpush1.msra.mxu0 0.0
  %1666 = vmatprep.subr.mxu0 0.0
  %1667 = vmatpush1.msra.mxu0 0.0
  %1668 = vmatprep.subr.mxu0 0.0
  %1669 = vmatpush1.msra.mxu0 0.0
  %1670 = vmatprep.subr.mxu0 0.0
  %1671 = vmatpush1.msra.mxu0 0.0
  %1672 = vmatprep.subr.mxu0 0.0
  %1673 = vmatpush1.msra.mxu0 0.0
  %1674 = vmatprep.subr.mxu0 0.0
  %1675 = vmatpush1.msra.mxu0 0.0
  %1676 = vmatprep.subr.mxu0 0.0
  %1677 = vmatpush1.msra.mxu0 0.0
  %1678 = vmatprep.subr.mxu0 0.0
  %1679 = vmatpush1.msra.mxu0 0.0
  %1680 = vmatprep.subr.mxu0 0.0
  %1681 = vmatpush1.msra.mxu0 0.0
  %1682 = vmatprep.subr.mxu0 0.0
  %1683 = vmatpush1.msra.mxu0 0.0
  %1684 = vmatprep.subr.mxu0 0.0
  %1685 = vmatpush1.msra.mxu0 0.0
  %1686 = vmatprep.mubr.f32.mxu0 0.0
  %1687 = vmatmul.mubr.f32.gmra.mrb[0].mxu0 %v1525
  %v1688 = vpop.f32.mrb[0].mxu0
  %v1689 = vadd.f32 0.0, %v1688
  %v1690 = vpop.f32.mrb[0].mxu0
  %v1691 = vadd.f32 0.0, %v1690
  %1692 = vmatprep.mubr.f32.mxu0 0.0
  %1693 = vmatmul.mubr.f32.gmra.mrb[0].mxu0 %v1527
  %v1694 = vpop.f32.mrb[0].mxu0
  %v1695 = vadd.f32 0.0, %v1694
  %v1696 = vpop.f32.mrb[0].mxu0
  %v1697 = vadd.f32 0.0, %v1696
  %1698 = vmatprep.mubr.f32.mxu0 0.0
  %1699 = vmatmul.mubr.f32.gmra.mrb[0].mxu0 %v1529
  %v1700 = vpop.f32.mrb[0].mxu0
  %v1701 = vadd.f32 0.0, %v1700
  %v1702 = vpop.f32.mrb[0].mxu0
  %v1703 = vadd.f32 0.0, %v1702
  %1704 = vmatprep.mubr.f32.mxu0 0.0
  %1705 = vmatmul.mubr.f32.gmra.mrb[0].mxu0 %v1531
  %v1706 = vpop.f32.mrb[0].mxu0
  %v1707 = vadd.f32 0.0, %v1706
  %v1708 = vpop.f32.mrb[0].mxu0
  %v1709 = vadd.f32 0.0, %v1708
  %1710 = vdwg.mxu0
  %v1711 = vmul.f32 %v1600, %v1600
  %v1712 = vmul.f32 %v1602, %v1602
  %v1713 = vmul.f32 %v1689, %v1689
  %v1714 = vmul.f32 %v1691, %v1691
  %v1715 = vmul.f32 %v1606, %v1606
  %v1716 = vmul.f32 %v1608, %v1608
  %v1717 = vmul.f32 %v1695, %v1695
  %v1718 = vmul.f32 %v1697, %v1697
  %v1719 = vmul.f32 %v1612, %v1612
  %v1720 = vmul.f32 %v1614, %v1614
  %v1721 = vmul.f32 %v1701, %v1701
  %v1722 = vmul.f32 %v1703, %v1703
  %v1723 = vmul.f32 %v1618, %v1618
  %v1724 = vmul.f32 %v1620, %v1620
  %v1725 = vmul.f32 %v1707, %v1707
  %v1726 = vmul.f32 %v1709, %v1709
  %1727 = vmatprep.subr.mxu0 0.0
  %1728 = vmatpush1.msra.mxu0 1.0
  %1729 = vmatprep.subr.mxu0 0.0
  %1730 = vmatpush1.msra.mxu0 1.0
  %1731 = vmatprep.subr.mxu0 0.0
  %1732 = vmatpush1.msra.mxu0 1.0
  %1733 = vmatprep.subr.mxu0 0.0
  %1734 = vmatpush1.msra.mxu0 1.0
  %1735 = vmatprep.subr.mxu0 0.0
  %1736 = vmatpush1.msra.mxu0 1.0
  %1737 = vmatprep.subr.mxu0 0.0
  %1738 = vmatpush1.msra.mxu0 1.0
  %1739 = vmatprep.subr.mxu0 0.0
  %1740 = vmatpush1.msra.mxu0 1.0
  %1741 = vmatprep.subr.mxu0 0.0
  %1742 = vmatpush1.msra.mxu0 1.0
  %1743 = vmatprep.subr.mxu0 0.0
  %1744 = vmatpush1.msra.mxu0 1.0
  %1745 = vmatprep.subr.mxu0 0.0
  %1746 = vmatpush1.msra.mxu0 1.0
  %1747 = vmatprep.subr.mxu0 0.0
  %1748 = vmatpush1.msra.mxu0 1.0
  %1749 = vmatprep.subr.mxu0 0.0
  %1750 = vmatpush1.msra.mxu0 1.0
  %1751 = vmatprep.subr.mxu0 0.0
  %1752 = vmatpush1.msra.mxu0 1.0
  %1753 = vmatprep.subr.mxu0 0.0
  %1754 = vmatpush1.msra.mxu0 1.0
  %1755 = vmatprep.subr.mxu0 0.0
  %1756 = vmatpush1.msra.mxu0 1.0
  %1757 = vmatprep.subr.mxu0 0.0
  %1758 = vmatpush1.msra.mxu0 1.0
  %1759 = vmatprep.subr.mxu0 0.0
  %1760 = vmatpush1.msra.mxu0 1.0
  %1761 = vmatprep.subr.mxu0 0.0
  %1762 = vmatpush1.msra.mxu0 1.0
  %1763 = vmatprep.subr.mxu0 0.0
  %1764 = vmatpush1.msra.mxu0 1.0
  %1765 = vmatprep.subr.mxu0 0.0
  %1766 = vmatpush1.msra.mxu0 1.0
  %1767 = vmatprep.subr.mxu0 0.0
  %1768 = vmatpush1.msra.mxu0 1.0
  %1769 = vmatprep.subr.mxu0 0.0
  %1770 = vmatpush1.msra.mxu0 1.0
  %1771 = vmatprep.subr.mxu0 0.0
  %1772 = vmatpush1.msra.mxu0 1.0
  %1773 = vmatprep.subr.mxu0 0.0
  %1774 = vmatpush1.msra.mxu0 1.0
  %1775 = vmatprep.subr.mxu0 0.0
  %1776 = vmatpush1.msra.mxu0 1.0
  %1777 = vmatprep.subr.mxu0 0.0
  %1778 = vmatpush1.msra.mxu0 1.0
  %1779 = vmatprep.subr.mxu0 0.0
  %1780 = vmatpush1.msra.mxu0 1.0
  %1781 = vmatprep.subr.mxu0 0.0
  %1782 = vmatpush1.msra.mxu0 1.0
  %1783 = vmatprep.subr.mxu0 0.0
  %1784 = vmatpush1.msra.mxu0 1.0
  %1785 = vmatprep.subr.mxu0 0.0
  %1786 = vmatpush1.msra.mxu0 1.0
  %1787 = vmatprep.subr.mxu0 0.0
  %1788 = vmatpush1.msra.mxu0 1.0
  %1789 = vmatprep.subr.mxu0 0.0
  %1790 = vmatpush1.msra.mxu0 1.0
  %v1791 = vand.u32 %v1602, 4294901760
  %v1792 = vsub.f32 %v1602, %v1791
  %v1793 = vand.u32 %v1792, 4294901760
  %v1794 = vsub.f32 %v1792, %v1793
  %v1795 = vand.u32 %v1794, 4294901760
  %1796 = vmatprep.mubr.f32.mxu0 %v1795
  %v1797 = vand.u32 %v1600, 4294901760
  %v1798 = vsub.f32 %v1600, %v1797
  %v1799 = vand.u32 %v1798, 4294901760
  %v1800 = vsub.f32 %v1798, %v1799
  %v1801 = vand.u32 %v1800, 4294901760
  %1802 = vmatmul.mubr.f32.gmra.mrb[0].mxu0 %v1801
  %v1803 = vpop.f32.mrb[0].mxu0
  %v1804 = vadd.f32 0.0, %v1803
  %v1805 = vpop.f32.mrb[0].mxu0
  %v1806 = vand.u32 %v1608, 4294901760
  %v1807 = vsub.f32 %v1608, %v1806
  %v1808 = vand.u32 %v1807, 4294901760
  %v1809 = vsub.f32 %v1807, %v1808
  %v1810 = vand.u32 %v1809, 4294901760
  %1811 = vmatprep.mubr.f32.mxu0 %v1810
  %v1812 = vand.u32 %v1606, 4294901760
  %v1813 = vsub.f32 %v1606, %v1812
  %v1814 = vand.u32 %v1813, 4294901760
  %v1815 = vsub.f32 %v1813, %v1814
  %v1816 = vand.u32 %v1815, 4294901760
  %1817 = vmatmul.mubr.f32.gmra.mrb[0].mxu0 %v1816
  %v1818 = vpop.f32.mrb[0].mxu0
  %v1819 = vadd.f32 0.0, %v1818
  %v1820 = vpop.f32.mrb[0].mxu0
  %v1821 = vand.u32 %v1614, 4294901760
  %v1822 = vsub.f32 %v1614, %v1821
  %v1823 = vand.u32 %v1822, 4294901760
  %v1824 = vsub.f32 %v1822, %v1823
  %v1825 = vand.u32 %v1824, 4294901760
  %1826 = vmatprep.mubr.f32.mxu0 %v1825
  %v1827 = vand.u32 %v1612, 4294901760
  %v1828 = vsub.f32 %v1612, %v1827
  %v1829 = vand.u32 %v1828, 4294901760
  %v1830 = vsub.f32 %v1828, %v1829
  %v1831 = vand.u32 %v1830, 4294901760
  %1832 = vmatmul.mubr.f32.gmra.mrb[0].mxu0 %v1831
  %v1833 = vpop.f32.mrb[0].mxu0
  %v1834 = vadd.f32 0.0, %v1833
  %v1835 = vpop.f32.mrb[0].mxu0
  %v1836 = vand.u32 %v1620, 4294901760
  %v1837 = vsub.f32 %v1620, %v1836
  %v1838 = vand.u32 %v1837, 4294901760
  %v1839 = vsub.f32 %v1837, %v1838
  %v1840 = vand.u32 %v1839, 4294901760
  %1841 = vmatprep.mubr.f32.mxu0 %v1840
  %v1842 = vand.u32 %v1618, 4294901760
  %v1843 = vsub.f32 %v1618, %v1842
  %v1844 = vand.u32 %v1843, 4294901760
  %v1845 = vsub.f32 %v1843, %v1844
  %v1846 = vand.u32 %v1845, 4294901760
  %1847 = vmatmul.mubr.f32.gmra.mrb[0].mxu0 %v1846
  %v1848 = vpop.f32.mrb[0].mxu0
  %v1849 = vadd.f32 0.0, %v1848
  %v1850 = vpop.f32.mrb[0].mxu0
  %v1851 = vand.u32 %v1712, 4294901760
  %v1852 = vsub.f32 %v1712, %v1851
  %v1853 = vand.u32 %v1852, 4294901760
  %v1854 = vsub.f32 %v1852, %v1853
  %v1855 = vand.u32 %v1854, 4294901760
  %1856 = vmatprep.mubr.f32.mxu0 %v1855
  %v1857 = vand.u32 %v1711, 4294901760
  %v1858 = vsub.f32 %v1711, %v1857
  %v1859 = vand.u32 %v1858, 4294901760
  %v1860 = vsub.f32 %v1858, %v1859
  %v1861 = vand.u32 %v1860, 4294901760
  %1862 = vmatmul.mubr.f32.gmra.mrb[0].mxu0 %v1861
  %v1863 = vpop.f32.mrb[0].mxu0
  %v1864 = vadd.f32 0.0, %v1863
  %v1865 = vpop.f32.mrb[0].mxu0
  %v1866 = vand.u32 %v1716, 4294901760
  %v1867 = vsub.f32 %v1716, %v1866
  %v1868 = vand.u32 %v1867, 4294901760
  %v1869 = vsub.f32 %v1867, %v1868
  %v1870 = vand.u32 %v1869, 4294901760
  %1871 = vmatprep.mubr.f32.mxu0 %v1870
  %v1872 = vand.u32 %v1715, 4294901760
  %v1873 = vsub.f32 %v1715, %v1872
  %v1874 = vand.u32 %v1873, 4294901760
  %v1875 = vsub.f32 %v1873, %v1874
  %v1876 = vand.u32 %v1875, 4294901760
  %1877 = vmatmul.mubr.f32.gmra.mrb[0].mxu0 %v1876
  %v1878 = vpop.f32.mrb[0].mxu0
  %v1879 = vadd.f32 0.0, %v1878
  %v1880 = vpop.f32.mrb[0].mxu0
  %v1881 = vand.u32 %v1720, 4294901760
  %v1882 = vsub.f32 %v1720, %v1881
  %v1883 = vand.u32 %v1882, 4294901760
  %v1884 = vsub.f32 %v1882, %v1883
  %v1885 = vand.u32 %v1884, 4294901760
  %1886 = vmatprep.mubr.f32.mxu0 %v1885
  %v1887 = vand.u32 %v1719, 4294901760
  %v1888 = vsub.f32 %v1719, %v1887
  %v1889 = vand.u32 %v1888, 4294901760
  %v1890 = vsub.f32 %v1888, %v1889
  %v1891 = vand.u32 %v1890, 4294901760
  %1892 = vmatmul.mubr.f32.gmra.mrb[0].mxu0 %v1891
  %v1893 = vpop.f32.mrb[0].mxu0
  %v1894 = vadd.f32 0.0, %v1893
  %v1895 = vpop.f32.mrb[0].mxu0
  %v1896 = vand.u32 %v1724, 4294901760
  %v1897 = vsub.f32 %v1724, %v1896
  %v1898 = vand.u32 %v1897, 4294901760
  %v1899 = vsub.f32 %v1897, %v1898
  %v1900 = vand.u32 %v1899, 4294901760
  %1901 = vmatprep.mubr.f32.mxu0 %v1900
  %v1902 = vand.u32 %v1723, 4294901760
  %v1903 = vsub.f32 %v1723, %v1902
  %v1904 = vand.u32 %v1903, 4294901760
  %v1905 = vsub.f32 %v1903, %v1904
  %v1906 = vand.u32 %v1905, 4294901760
  %1907 = vmatmul.mubr.f32.gmra.mrb[0].mxu0 %v1906
  %v1908 = vpop.f32.mrb[0].mxu0
  %v1909 = vadd.f32 0.0, %v1908
  %v1910 = vpop.f32.mrb[0].mxu0
  %1911 = vdwg.mxu0
  %1912 = vmatprep.subr.mxu0 0.0
  %1913 = vmatpush1.msra.mxu0 0.0
  %1914 = vmatprep.subr.mxu0 0.0
  %1915 = vmatpush1.msra.mxu0 0.0
  %1916 = vmatprep.subr.mxu0 0.0
  %1917 = vmatpush1.msra.mxu0 0.0
  %1918 = vmatprep.subr.mxu0 0.0
  %1919 = vmatpush1.msra.mxu0 0.0
  %1920 = vmatprep.subr.mxu0 0.0
  %1921 = vmatpush1.msra.mxu0 0.0
  %1922 = vmatprep.subr.mxu0 0.0
  %1923 = vmatpush1.msra.mxu0 0.0
  %1924 = vmatprep.subr.mxu0 0.0
  %1925 = vmatpush1.msra.mxu0 0.0
  %1926 = vmatprep.subr.mxu0 0.0
  %1927 = vmatpush1.msra.mxu0 0.0
  %1928 = vmatprep.subr.mxu0 0.0
  %1929 = vmatpush1.msra.mxu0 0.0
  %1930 = vmatprep.subr.mxu0 0.0
  %1931 = vmatpush1.msra.mxu0 0.0
  %1932 = vmatprep.subr.mxu0 0.0
  %1933 = vmatpush1.msra.mxu0 0.0
  %1934 = vmatprep.subr.mxu0 0.0
  %1935 = vmatpush1.msra.mxu0 0.0
  %1936 = vmatprep.subr.mxu0 0.0
  %1937 = vmatpush1.msra.mxu0 0.0
  %1938 = vmatprep.subr.mxu0 0.0
  %1939 = vmatpush1.msra.mxu0 0.0
  %1940 = vmatprep.subr.mxu0 0.0
  %1941 = vmatpush1.msra.mxu0 0.0
  %1942 = vmatprep.subr.mxu0 0.0
  %1943 = vmatpush1.msra.mxu0 0.0
  %1944 = vmatprep.subr.mxu0 0.0
  %1945 = vmatpush1.msra.mxu0 0.0
  %1946 = vmatprep.subr.mxu0 0.0
  %1947 = vmatpush1.msra.mxu0 0.0
  %1948 = vmatprep.subr.mxu0 0.0
  %1949 = vmatpush1.msra.mxu0 0.0
  %1950 = vmatprep.subr.mxu0 0.0
  %1951 = vmatpush1.msra.mxu0 0.0
  %1952 = vmatprep.subr.mxu0 0.0
  %1953 = vmatpush1.msra.mxu0 0.0
  %1954 = vmatprep.subr.mxu0 0.0
  %1955 = vmatpush1.msra.mxu0 0.0
  %1956 = vmatprep.subr.mxu0 0.0
  %1957 = vmatpush1.msra.mxu0 0.0
  %1958 = vmatprep.subr.mxu0 0.0
  %1959 = vmatpush1.msra.mxu0 0.0
  %1960 = vmatprep.subr.mxu0 0.0
  %1961 = vmatpush1.msra.mxu0 0.0
  %1962 = vmatprep.subr.mxu0 0.0
  %1963 = vmatpush1.msra.mxu0 0.0
  %1964 = vmatprep.subr.mxu0 0.0
  %1965 = vmatpush1.msra.mxu0 0.0
  %1966 = vmatprep.subr.mxu0 0.0
  %1967 = vmatpush1.msra.mxu0 0.0
  %1968 = vmatprep.subr.mxu0 0.0
  %1969 = vmatpush1.msra.mxu0 0.0
  %1970 = vmatprep.subr.mxu0 0.0
  %1971 = vmatpush1.msra.mxu0 0.0
  %1972 = vmatprep.subr.mxu0 0.0
  %1973 = vmatpush1.msra.mxu0 0.0
  %1974 = vmatprep.subr.mxu0 0.0
  %1975 = vmatpush1.msra.mxu0 0.0
  %v1976 = vand.u32 %v1602, 4294901760
  %1977 = vmatprep.mubr.f32.mxu0 %v1976
  %v1978 = vand.u32 %v1600, 4294901760
  %1979 = vmatmul.mubr.f32.gmra.mrb[0].mxu0 %v1978
  %v1980 = vpop.f32.mrb[0].mxu0
  %v1981 = vadd.f32 %v1804, %v1980
  %v1982 = vpop.f32.mrb[0].mxu0
  %v1983 = vand.u32 %v1608, 4294901760
  %1984 = vmatprep.mubr.f32.mxu0 %v1983
  %v1985 = vand.u32 %v1606, 4294901760
  %1986 = vmatmul.mubr.f32.gmra.mrb[0].mxu0 %v1985
  %v1987 = vpop.f32.mrb[0].mxu0
  %v1988 = vadd.f32 %v1819, %v1987
  %v1989 = vpop.f32.mrb[0].mxu0
  %v1990 = vand.u32 %v1614, 4294901760
  %1991 = vmatprep.mubr.f32.mxu0 %v1990
  %v1992 = vand.u32 %v1612, 4294901760
  %1993 = vmatmul.mubr.f32.gmra.mrb[0].mxu0 %v1992
  %v1994 = vpop.f32.mrb[0].mxu0
  %v1995 = vadd.f32 %v1834, %v1994
  %v1996 = vpop.f32.mrb[0].mxu0
  %v1997 = vand.u32 %v1620, 4294901760
  %1998 = vmatprep.mubr.f32.mxu0 %v1997
  %v1999 = vand.u32 %v1618, 4294901760
  %2000 = vmatmul.mubr.f32.gmra.mrb[0].mxu0 %v1999
  %v2001 = vpop.f32.mrb[0].mxu0
  %v2002 = vadd.f32 %v1849, %v2001
  %v2003 = vpop.f32.mrb[0].mxu0
  %v2004 = vand.u32 %v1712, 4294901760
  %2005 = vmatprep.mubr.f32.mxu0 %v2004
  %v2006 = vand.u32 %v1711, 4294901760
  %2007 = vmatmul.mubr.f32.gmra.mrb[0].mxu0 %v2006
  %v2008 = vpop.f32.mrb[0].mxu0
  %v2009 = vadd.f32 %v1864, %v2008
  %v2010 = vpop.f32.mrb[0].mxu0
  %v2011 = vand.u32 %v1716, 4294901760
  %2012 = vmatprep.mubr.f32.mxu0 %v2011
  %v2013 = vand.u32 %v1715, 4294901760
  %2014 = vmatmul.mubr.f32.gmra.mrb[0].mxu0 %v2013
  %v2015 = vpop.f32.mrb[0].mxu0
  %v2016 = vadd.f32 %v1879, %v2015
  %v2017 = vpop.f32.mrb[0].mxu0
  %v2018 = vand.u32 %v1720, 4294901760
  %2019 = vmatprep.mubr.f32.mxu0 %v2018
  %v2020 = vand.u32 %v1719, 4294901760
  %2021 = vmatmul.mubr.f32.gmra.mrb[0].mxu0 %v2020
  %v2022 = vpop.f32.mrb[0].mxu0
  %v2023 = vadd.f32 %v1894, %v2022
  %v2024 = vpop.f32.mrb[0].mxu0
  %v2025 = vand.u32 %v1724, 4294901760
  %2026 = vmatprep.mubr.f32.mxu0 %v2025
  %v2027 = vand.u32 %v1723, 4294901760
  %2028 = vmatmul.mubr.f32.gmra.mrb[0].mxu0 %v2027
  %v2029 = vpop.f32.mrb[0].mxu0
  %v2030 = vadd.f32 %v1909, %v2029
  %v2031 = vpop.f32.mrb[0].mxu0
  %2032 = vdwg.mxu0
  %2033 = vmatprep.subr.mxu0 0.0
  %2034 = vmatpush1.msra.mxu0 0.0
  %2035 = vmatprep.subr.mxu0 0.0
  %2036 = vmatpush1.msra.mxu0 0.0
  %2037 = vmatprep.subr.mxu0 0.0
  %2038 = vmatpush1.msra.mxu0 0.0
  %2039 = vmatprep.subr.mxu0 0.0
  %2040 = vmatpush1.msra.mxu0 0.0
  %2041 = vmatprep.subr.mxu0 0.0
  %2042 = vmatpush1.msra.mxu0 0.0
  %2043 = vmatprep.subr.mxu0 0.0
  %2044 = vmatpush1.msra.mxu0 0.0
  %2045 = vmatprep.subr.mxu0 0.0
  %2046 = vmatpush1.msra.mxu0 0.0
  %2047 = vmatprep.subr.mxu0 0.0
  %2048 = vmatpush1.msra.mxu0 0.0
  %2049 = vmatprep.subr.mxu0 0.0
  %2050 = vmatpush1.msra.mxu0 0.0
  %2051 = vmatprep.subr.mxu0 0.0
  %2052 = vmatpush1.msra.mxu0 0.0
  %2053 = vmatprep.subr.mxu0 0.0
  %2054 = vmatpush1.msra.mxu0 0.0
  %2055 = vmatprep.subr.mxu0 0.0
  %2056 = vmatpush1.msra.mxu0 0.0
  %2057 = vmatprep.subr.mxu0 0.0
  %2058 = vmatpush1.msra.mxu0 0.0
  %2059 = vmatprep.subr.mxu0 0.0
  %2060 = vmatpush1.msra.mxu0 0.0
  %2061 = vmatprep.subr.mxu0 0.0
  %2062 = vmatpush1.msra.mxu0 0.0
  %2063 = vmatprep.subr.mxu0 0.0
  %2064 = vmatpush1.msra.mxu0 0.0
  %2065 = vmatprep.subr.mxu0 0.0
  %2066 = vmatpush1.msra.mxu0 0.0
  %2067 = vmatprep.subr.mxu0 0.0
  %2068 = vmatpush1.msra.mxu0 0.0
  %2069 = vmatprep.subr.mxu0 0.0
  %2070 = vmatpush1.msra.mxu0 0.0
  %2071 = vmatprep.subr.mxu0 0.0
  %2072 = vmatpush1.msra.mxu0 0.0
  %2073 = vmatprep.subr.mxu0 0.0
  %2074 = vmatpush1.msra.mxu0 0.0
  %2075 = vmatprep.subr.mxu0 0.0
  %2076 = vmatpush1.msra.mxu0 0.0
  %2077 = vmatprep.subr.mxu0 0.0
  %2078 = vmatpush1.msra.mxu0 0.0
  %2079 = vmatprep.subr.mxu0 0.0
  %2080 = vmatpush1.msra.mxu0 0.0
  %2081 = vmatprep.subr.mxu0 0.0
  %2082 = vmatpush1.msra.mxu0 0.0
  %2083 = vmatprep.subr.mxu0 0.0
  %2084 = vmatpush1.msra.mxu0 0.0
  %2085 = vmatprep.subr.mxu0 0.0
  %2086 = vmatpush1.msra.mxu0 0.0
  %2087 = vmatprep.subr.mxu0 0.0
  %2088 = vmatpush1.msra.mxu0 0.0
  %2089 = vmatprep.subr.mxu0 0.0
  %2090 = vmatpush1.msra.mxu0 0.0
  %2091 = vmatprep.subr.mxu0 0.0
  %2092 = vmatpush1.msra.mxu0 0.0
  %2093 = vmatprep.subr.mxu0 0.0
  %2094 = vmatpush1.msra.mxu0 0.0
  %2095 = vmatprep.subr.mxu0 0.0
  %2096 = vmatpush1.msra.mxu0 0.0
  %v2097 = vand.u32 %v1602, 4294901760
  %v2098 = vsub.f32 %v1602, %v2097
  %2099 = vmatprep.mubr.f32.mxu0 %v2098
  %v2100 = vand.u32 %v1600, 4294901760
  %v2101 = vsub.f32 %v1600, %v2100
  %2102 = vmatmul.mubr.f32.gmra.mrb[0].mxu0 %v2101
  %v2103 = vpop.f32.mrb[0].mxu0
  %v2104 = vadd.f32 %v1981, %v2103
  %v2105 = vpop.f32.mrb[0].mxu0
  %v2106 = vand.u32 %v1608, 4294901760
  %v2107 = vsub.f32 %v1608, %v2106
  %2108 = vmatprep.mubr.f32.mxu0 %v2107
  %v2109 = vand.u32 %v1606, 4294901760
  %v2110 = vsub.f32 %v1606, %v2109
  %2111 = vmatmul.mubr.f32.gmra.mrb[0].mxu0 %v2110
  %v2112 = vpop.f32.mrb[0].mxu0
  %v2113 = vadd.f32 %v1988, %v2112
  %v2114 = vpop.f32.mrb[0].mxu0
  %v2115 = vand.u32 %v1614, 4294901760
  %v2116 = vsub.f32 %v1614, %v2115
  %2117 = vmatprep.mubr.f32.mxu0 %v2116
  %v2118 = vand.u32 %v1612, 4294901760
  %v2119 = vsub.f32 %v1612, %v2118
  %2120 = vmatmul.mubr.f32.gmra.mrb[0].mxu0 %v2119
  %v2121 = vpop.f32.mrb[0].mxu0
  %v2122 = vadd.f32 %v1995, %v2121
  %v2123 = vpop.f32.mrb[0].mxu0
  %v2124 = vand.u32 %v1620, 4294901760
  %v2125 = vsub.f32 %v1620, %v2124
  %2126 = vmatprep.mubr.f32.mxu0 %v2125
  %v2127 = vand.u32 %v1618, 4294901760
  %v2128 = vsub.f32 %v1618, %v2127
  %2129 = vmatmul.mubr.f32.gmra.mrb[0].mxu0 %v2128
  %v2130 = vpop.f32.mrb[0].mxu0
  %v2131 = vadd.f32 %v2002, %v2130
  %v2132 = vpop.f32.mrb[0].mxu0
  %v2133 = vand.u32 %v1712, 4294901760
  %v2134 = vsub.f32 %v1712, %v2133
  %2135 = vmatprep.mubr.f32.mxu0 %v2134
  %v2136 = vand.u32 %v1711, 4294901760
  %v2137 = vsub.f32 %v1711, %v2136
  %2138 = vmatmul.mubr.f32.gmra.mrb[0].mxu0 %v2137
  %v2139 = vpop.f32.mrb[0].mxu0
  %v2140 = vadd.f32 %v2009, %v2139
  %v2141 = vpop.f32.mrb[0].mxu0
  %v2142 = vand.u32 %v1716, 4294901760
  %v2143 = vsub.f32 %v1716, %v2142
  %2144 = vmatprep.mubr.f32.mxu0 %v2143
  %v2145 = vand.u32 %v1715, 4294901760
  %v2146 = vsub.f32 %v1715, %v2145
  %2147 = vmatmul.mubr.f32.gmra.mrb[0].mxu0 %v2146
  %v2148 = vpop.f32.mrb[0].mxu0
  %v2149 = vadd.f32 %v2016, %v2148
  %v2150 = vpop.f32.mrb[0].mxu0
  %v2151 = vand.u32 %v1720, 4294901760
  %v2152 = vsub.f32 %v1720, %v2151
  %2153 = vmatprep.mubr.f32.mxu0 %v2152
  %v2154 = vand.u32 %v1719, 4294901760
  %v2155 = vsub.f32 %v1719, %v2154
  %2156 = vmatmul.mubr.f32.gmra.mrb[0].mxu0 %v2155
  %v2157 = vpop.f32.mrb[0].mxu0
  %v2158 = vadd.f32 %v2023, %v2157
  %v2159 = vpop.f32.mrb[0].mxu0
  %v2160 = vand.u32 %v1724, 4294901760
  %v2161 = vsub.f32 %v1724, %v2160
  %2162 = vmatprep.mubr.f32.mxu0 %v2161
  %v2163 = vand.u32 %v1723, 4294901760
  %v2164 = vsub.f32 %v1723, %v2163
  %2165 = vmatmul.mubr.f32.gmra.mrb[0].mxu0 %v2164
  %v2166 = vpop.f32.mrb[0].mxu0
  %v2167 = vadd.f32 %v2030, %v2166
  %v2168 = vpop.f32.mrb[0].mxu0
  %2169 = vdwg.mxu0
  %2170 = vmatprep.subr.mxu0 0.0
  %2171 = vmatpush1.msra.mxu0 1.0
  %2172 = vmatprep.subr.mxu0 0.0
  %2173 = vmatpush1.msra.mxu0 1.0
  %2174 = vmatprep.subr.mxu0 0.0
  %2175 = vmatpush1.msra.mxu0 1.0
  %2176 = vmatprep.subr.mxu0 0.0
  %2177 = vmatpush1.msra.mxu0 1.0
  %2178 = vmatprep.subr.mxu0 0.0
  %2179 = vmatpush1.msra.mxu0 1.0
  %2180 = vmatprep.subr.mxu0 0.0
  %2181 = vmatpush1.msra.mxu0 1.0
  %2182 = vmatprep.subr.mxu0 0.0
  %2183 = vmatpush1.msra.mxu0 1.0
  %2184 = vmatprep.subr.mxu0 0.0
  %2185 = vmatpush1.msra.mxu0 1.0
  %2186 = vmatprep.subr.mxu0 0.0
  %2187 = vmatpush1.msra.mxu0 1.0
  %2188 = vmatprep.subr.mxu0 0.0
  %2189 = vmatpush1.msra.mxu0 1.0
  %2190 = vmatprep.subr.mxu0 0.0
  %2191 = vmatpush1.msra.mxu0 1.0
  %2192 = vmatprep.subr.mxu0 0.0
  %2193 = vmatpush1.msra.mxu0 1.0
  %2194 = vmatprep.subr.mxu0 0.0
  %2195 = vmatpush1.msra.mxu0 1.0
  %2196 = vmatprep.subr.mxu0 0.0
  %2197 = vmatpush1.msra.mxu0 1.0
  %2198 = vmatprep.subr.mxu0 0.0
  %2199 = vmatpush1.msra.mxu0 1.0
  %2200 = vmatprep.subr.mxu0 0.0
  %2201 = vmatpush1.msra.mxu0 1.0
  %2202 = vmatprep.subr.mxu0 0.0
  %2203 = vmatpush1.msra.mxu0 1.0
  %2204 = vmatprep.subr.mxu0 0.0
  %2205 = vmatpush1.msra.mxu0 1.0
  %2206 = vmatprep.subr.mxu0 0.0
  %2207 = vmatpush1.msra.mxu0 1.0
  %2208 = vmatprep.subr.mxu0 0.0
  %2209 = vmatpush1.msra.mxu0 1.0
  %2210 = vmatprep.subr.mxu0 0.0
  %2211 = vmatpush1.msra.mxu0 1.0
  %2212 = vmatprep.subr.mxu0 0.0
  %2213 = vmatpush1.msra.mxu0 1.0
  %2214 = vmatprep.subr.mxu0 0.0
  %2215 = vmatpush1.msra.mxu0 1.0
  %2216 = vmatprep.subr.mxu0 0.0
  %2217 = vmatpush1.msra.mxu0 1.0
  %2218 = vmatprep.subr.mxu0 0.0
  %2219 = vmatpush1.msra.mxu0 1.0
  %2220 = vmatprep.subr.mxu0 0.0
  %2221 = vmatpush1.msra.mxu0 1.0
  %2222 = vmatprep.subr.mxu0 0.0
  %2223 = vmatpush1.msra.mxu0 1.0
  %2224 = vmatprep.subr.mxu0 0.0
  %2225 = vmatpush1.msra.mxu0 1.0
  %2226 = vmatprep.subr.mxu0 0.0
  %2227 = vmatpush1.msra.mxu0 1.0
  %2228 = vmatprep.subr.mxu0 0.0
  %2229 = vmatpush1.msra.mxu0 1.0
  %2230 = vmatprep.subr.mxu0 0.0
  %2231 = vmatpush1.msra.mxu0 1.0
  %2232 = vmatprep.subr.mxu0 0.0
  %2233 = vmatpush1.msra.mxu0 1.0
  %v2234 = vand.u32 %v1602, 4294901760
  %v2235 = vsub.f32 %v1602, %v2234
  %v2236 = vand.u32 %v2235, 4294901760
  %2237 = vmatprep.mubr.f32.mxu0 %v2236
  %v2238 = vand.u32 %v1600, 4294901760
  %v2239 = vsub.f32 %v1600, %v2238
  %v2240 = vand.u32 %v2239, 4294901760
  %2241 = vmatmul.mubr.f32.gmra.mrb[0].mxu0 %v2240
  %v2242 = vpop.f32.mrb[0].mxu0
  %v2243 = vadd.f32 %v2104, %v2242
  %v2244 = vpop.f32.mrb[0].mxu0
  %v2245 = vand.u32 %v1608, 4294901760
  %v2246 = vsub.f32 %v1608, %v2245
  %v2247 = vand.u32 %v2246, 4294901760
  %2248 = vmatprep.mubr.f32.mxu0 %v2247
  %v2249 = vand.u32 %v1606, 4294901760
  %v2250 = vsub.f32 %v1606, %v2249
  %v2251 = vand.u32 %v2250, 4294901760
  %2252 = vmatmul.mubr.f32.gmra.mrb[0].mxu0 %v2251
  %v2253 = vpop.f32.mrb[0].mxu0
  %v2254 = vadd.f32 %v2113, %v2253
  %v2255 = vpop.f32.mrb[0].mxu0
  %v2256 = vand.u32 %v1614, 4294901760
  %v2257 = vsub.f32 %v1614, %v2256
  %v2258 = vand.u32 %v2257, 4294901760
  %2259 = vmatprep.mubr.f32.mxu0 %v2258
  %v2260 = vand.u32 %v1612, 4294901760
  %v2261 = vsub.f32 %v1612, %v2260
  %v2262 = vand.u32 %v2261, 4294901760
  %2263 = vmatmul.mubr.f32.gmra.mrb[0].mxu0 %v2262
  %v2264 = vpop.f32.mrb[0].mxu0
  %v2265 = vadd.f32 %v2122, %v2264
  %v2266 = vpop.f32.mrb[0].mxu0
  %v2267 = vand.u32 %v1620, 4294901760
  %v2268 = vsub.f32 %v1620, %v2267
  %v2269 = vand.u32 %v2268, 4294901760
  %2270 = vmatprep.mubr.f32.mxu0 %v2269
  %v2271 = vand.u32 %v1618, 4294901760
  %v2272 = vsub.f32 %v1618, %v2271
  %v2273 = vand.u32 %v2272, 4294901760
  %2274 = vmatmul.mubr.f32.gmra.mrb[0].mxu0 %v2273
  %v2275 = vpop.f32.mrb[0].mxu0
  %v2276 = vadd.f32 %v2131, %v2275
  %v2277 = vpop.f32.mrb[0].mxu0
  %v2278 = vand.u32 %v1712, 4294901760
  %v2279 = vsub.f32 %v1712, %v2278
  %v2280 = vand.u32 %v2279, 4294901760
  %2281 = vmatprep.mubr.f32.mxu0 %v2280
  %v2282 = vand.u32 %v1711, 4294901760
  %v2283 = vsub.f32 %v1711, %v2282
  %v2284 = vand.u32 %v2283, 4294901760
  %2285 = vmatmul.mubr.f32.gmra.mrb[0].mxu0 %v2284
  %v2286 = vpop.f32.mrb[0].mxu0
  %v2287 = vadd.f32 %v2140, %v2286
  %v2288 = vpop.f32.mrb[0].mxu0
  %v2289 = vand.u32 %v1716, 4294901760
  %v2290 = vsub.f32 %v1716, %v2289
  %v2291 = vand.u32 %v2290, 4294901760
  %2292 = vmatprep.mubr.f32.mxu0 %v2291
  %v2293 = vand.u32 %v1715, 4294901760
  %v2294 = vsub.f32 %v1715, %v2293
  %v2295 = vand.u32 %v2294, 4294901760
  %2296 = vmatmul.mubr.f32.gmra.mrb[0].mxu0 %v2295
  %v2297 = vpop.f32.mrb[0].mxu0
  %v2298 = vadd.f32 %v2149, %v2297
  %v2299 = vpop.f32.mrb[0].mxu0
  %v2300 = vand.u32 %v1720, 4294901760
  %v2301 = vsub.f32 %v1720, %v2300
  %v2302 = vand.u32 %v2301, 4294901760
  %2303 = vmatprep.mubr.f32.mxu0 %v2302
  %v2304 = vand.u32 %v1719, 4294901760
  %v2305 = vsub.f32 %v1719, %v2304
  %v2306 = vand.u32 %v2305, 4294901760
  %2307 = vmatmul.mubr.f32.gmra.mrb[0].mxu0 %v2306
  %v2308 = vpop.f32.mrb[0].mxu0
  %v2309 = vadd.f32 %v2158, %v2308
  %v2310 = vpop.f32.mrb[0].mxu0
  %v2311 = vand.u32 %v1724, 4294901760
  %v2312 = vsub.f32 %v1724, %v2311
  %v2313 = vand.u32 %v2312, 4294901760
  %2314 = vmatprep.mubr.f32.mxu0 %v2313
  %v2315 = vand.u32 %v1723, 4294901760
  %v2316 = vsub.f32 %v1723, %v2315
  %v2317 = vand.u32 %v2316, 4294901760
  %2318 = vmatmul.mubr.f32.gmra.mrb[0].mxu0 %v2317
  %v2319 = vpop.f32.mrb[0].mxu0
  %v2320 = vadd.f32 %v2167, %v2319
  %v2321 = vpop.f32.mrb[0].mxu0
  %2322 = vdwg.mxu0
  %2323 = vmatprep.subr.mxu0 0.0
  %2324 = vmatpush1.msra.mxu0 0.0
  %2325 = vmatprep.subr.mxu0 0.0
  %2326 = vmatpush1.msra.mxu0 0.0
  %2327 = vmatprep.subr.mxu0 0.0
  %2328 = vmatpush1.msra.mxu0 0.0
  %2329 = vmatprep.subr.mxu0 0.0
  %2330 = vmatpush1.msra.mxu0 0.0
  %2331 = vmatprep.subr.mxu0 0.0
  %2332 = vmatpush1.msra.mxu0 0.0
  %2333 = vmatprep.subr.mxu0 0.0
  %2334 = vmatpush1.msra.mxu0 0.0
  %2335 = vmatprep.subr.mxu0 0.0
  %2336 = vmatpush1.msra.mxu0 0.0
  %2337 = vmatprep.subr.mxu0 0.0
  %2338 = vmatpush1.msra.mxu0 0.0
  %2339 = vmatprep.subr.mxu0 0.0
  %2340 = vmatpush1.msra.mxu0 0.0
  %2341 = vmatprep.subr.mxu0 0.0
  %2342 = vmatpush1.msra.mxu0 0.0
  %2343 = vmatprep.subr.mxu0 0.0
  %2344 = vmatpush1.msra.mxu0 0.0
  %2345 = vmatprep.subr.mxu0 0.0
  %2346 = vmatpush1.msra.mxu0 0.0
  %2347 = vmatprep.subr.mxu0 0.0
  %2348 = vmatpush1.msra.mxu0 0.0
  %2349 = vmatprep.subr.mxu0 0.0
  %2350 = vmatpush1.msra.mxu0 0.0
  %2351 = vmatprep.subr.mxu0 0.0
  %2352 = vmatpush1.msra.mxu0 0.0
  %2353 = vmatprep.subr.mxu0 0.0
  %2354 = vmatpush1.msra.mxu0 0.0
  %2355 = vmatprep.subr.mxu0 0.0
  %2356 = vmatpush1.msra.mxu0 0.0
  %2357 = vmatprep.subr.mxu0 0.0
  %2358 = vmatpush1.msra.mxu0 0.0
  %2359 = vmatprep.subr.mxu0 0.0
  %2360 = vmatpush1.msra.mxu0 0.0
  %2361 = vmatprep.subr.mxu0 0.0
  %2362 = vmatpush1.msra.mxu0 0.0
  %2363 = vmatprep.subr.mxu0 0.0
  %2364 = vmatpush1.msra.mxu0 0.0
  %2365 = vmatprep.subr.mxu0 0.0
  %2366 = vmatpush1.msra.mxu0 0.0
  %2367 = vmatprep.subr.mxu0 0.0
  %2368 = vmatpush1.msra.mxu0 0.0
  %2369 = vmatprep.subr.mxu0 0.0
  %2370 = vmatpush1.msra.mxu0 0.0
  %2371 = vmatprep.subr.mxu0 0.0
  %2372 = vmatpush1.msra.mxu0 0.0
  %2373 = vmatprep.subr.mxu0 0.0
  %2374 = vmatpush1.msra.mxu0 0.0
  %2375 = vmatprep.subr.mxu0 0.0
  %2376 = vmatpush1.msra.mxu0 0.0
  %2377 = vmatprep.subr.mxu0 0.0
  %2378 = vmatpush1.msra.mxu0 0.0
  %2379 = vmatprep.subr.mxu0 0.0
  %2380 = vmatpush1.msra.mxu0 0.0
  %2381 = vmatprep.subr.mxu0 0.0
  %2382 = vmatpush1.msra.mxu0 0.0
  %2383 = vmatprep.subr.mxu0 0.0
  %2384 = vmatpush1.msra.mxu0 0.0
  %2385 = vmatprep.subr.mxu0 0.0
  %2386 = vmatpush1.msra.mxu0 0.0
  %v2387 = vand.u32 %v1602, 4294901760
  %2388 = vmatprep.mubr.f32.mxu0 %v2387
  %v2389 = vand.u32 %v1600, 4294901760
  %2390 = vmatmul.mubr.f32.gmra.mrb[0].mxu0 %v2389
  %v2391 = vpop.f32.mrb[0].mxu0
  %v2392 = vadd.f32 %v2243, %v2391
  %v2393 = vpop.f32.mrb[0].mxu0
  %v2394 = vand.u32 %v1608, 4294901760
  %2395 = vmatprep.mubr.f32.mxu0 %v2394
  %v2396 = vand.u32 %v1606, 4294901760
  %2397 = vmatmul.mubr.f32.gmra.mrb[0].mxu0 %v2396
  %v2398 = vpop.f32.mrb[0].mxu0
  %v2399 = vadd.f32 %v2254, %v2398
  %v2400 = vpop.f32.mrb[0].mxu0
  %v2401 = vand.u32 %v1614, 4294901760
  %2402 = vmatprep.mubr.f32.mxu0 %v2401
  %v2403 = vand.u32 %v1612, 4294901760
  %2404 = vmatmul.mubr.f32.gmra.mrb[0].mxu0 %v2403
  %v2405 = vpop.f32.mrb[0].mxu0
  %v2406 = vadd.f32 %v2265, %v2405
  %v2407 = vpop.f32.mrb[0].mxu0
  %v2408 = vand.u32 %v1620, 4294901760
  %2409 = vmatprep.mubr.f32.mxu0 %v2408
  %v2410 = vand.u32 %v1618, 4294901760
  %2411 = vmatmul.mubr.f32.gmra.mrb[0].mxu0 %v2410
  %v2412 = vpop.f32.mrb[0].mxu0
  %v2413 = vadd.f32 %v2276, %v2412
  %v2414 = vpop.f32.mrb[0].mxu0
  %v2415 = vand.u32 %v1712, 4294901760
  %2416 = vmatprep.mubr.f32.mxu0 %v2415
  %v2417 = vand.u32 %v1711, 4294901760
  %2418 = vmatmul.mubr.f32.gmra.mrb[0].mxu0 %v2417
  %v2419 = vpop.f32.mrb[0].mxu0
  %v2420 = vadd.f32 %v2287, %v2419
  %v2421 = vpop.f32.mrb[0].mxu0
  %v2422 = vand.u32 %v1716, 4294901760
  %2423 = vmatprep.mubr.f32.mxu0 %v2422
  %v2424 = vand.u32 %v1715, 4294901760
  %2425 = vmatmul.mubr.f32.gmra.mrb[0].mxu0 %v2424
  %v2426 = vpop.f32.mrb[0].mxu0
  %v2427 = vadd.f32 %v2298, %v2426
  %v2428 = vpop.f32.mrb[0].mxu0
  %v2429 = vand.u32 %v1720, 4294901760
  %2430 = vmatprep.mubr.f32.mxu0 %v2429
  %v2431 = vand.u32 %v1719, 4294901760
  %2432 = vmatmul.mubr.f32.gmra.mrb[0].mxu0 %v2431
  %v2433 = vpop.f32.mrb[0].mxu0
  %v2434 = vadd.f32 %v2309, %v2433
  %v2435 = vpop.f32.mrb[0].mxu0
  %v2436 = vand.u32 %v1724, 4294901760
  %2437 = vmatprep.mubr.f32.mxu0 %v2436
  %v2438 = vand.u32 %v1723, 4294901760
  %2439 = vmatmul.mubr.f32.gmra.mrb[0].mxu0 %v2438
  %v2440 = vpop.f32.mrb[0].mxu0
  %v2441 = vadd.f32 %v2320, %v2440
  %v2442 = vpop.f32.mrb[0].mxu0
  %2443 = vdwg.mxu0
  %2444 = vmatprep.subr.mxu0 0.0
  %2445 = vmatpush1.msra.mxu0 1.0
  %2446 = vmatprep.subr.mxu0 0.0
  %2447 = vmatpush1.msra.mxu0 1.0
  %2448 = vmatprep.subr.mxu0 0.0
  %2449 = vmatpush1.msra.mxu0 1.0
  %2450 = vmatprep.subr.mxu0 0.0
  %2451 = vmatpush1.msra.mxu0 1.0
  %2452 = vmatprep.subr.mxu0 0.0
  %2453 = vmatpush1.msra.mxu0 1.0
  %2454 = vmatprep.subr.mxu0 0.0
  %2455 = vmatpush1.msra.mxu0 1.0
  %2456 = vmatprep.subr.mxu0 0.0
  %2457 = vmatpush1.msra.mxu0 1.0
  %2458 = vmatprep.subr.mxu0 0.0
  %2459 = vmatpush1.msra.mxu0 1.0
  %2460 = vmatprep.subr.mxu0 0.0
  %2461 = vmatpush1.msra.mxu0 1.0
  %2462 = vmatprep.subr.mxu0 0.0
  %2463 = vmatpush1.msra.mxu0 1.0
  %2464 = vmatprep.subr.mxu0 0.0
  %2465 = vmatpush1.msra.mxu0 1.0
  %2466 = vmatprep.subr.mxu0 0.0
  %2467 = vmatpush1.msra.mxu0 1.0
  %2468 = vmatprep.subr.mxu0 0.0
  %2469 = vmatpush1.msra.mxu0 1.0
  %2470 = vmatprep.subr.mxu0 0.0
  %2471 = vmatpush1.msra.mxu0 1.0
  %2472 = vmatprep.subr.mxu0 0.0
  %2473 = vmatpush1.msra.mxu0 1.0
  %2474 = vmatprep.subr.mxu0 0.0
  %2475 = vmatpush1.msra.mxu0 1.0
  %2476 = vmatprep.subr.mxu0 0.0
  %2477 = vmatpush1.msra.mxu0 1.0
  %2478 = vmatprep.subr.mxu0 0.0
  %2479 = vmatpush1.msra.mxu0 1.0
  %2480 = vmatprep.subr.mxu0 0.0
  %2481 = vmatpush1.msra.mxu0 1.0
  %2482 = vmatprep.subr.mxu0 0.0
  %2483 = vmatpush1.msra.mxu0 1.0
  %2484 = vmatprep.subr.mxu0 0.0
  %2485 = vmatpush1.msra.mxu0 1.0
  %2486 = vmatprep.subr.mxu0 0.0
  %2487 = vmatpush1.msra.mxu0 1.0
  %2488 = vmatprep.subr.mxu0 0.0
  %2489 = vmatpush1.msra.mxu0 1.0
  %2490 = vmatprep.subr.mxu0 0.0
  %2491 = vmatpush1.msra.mxu0 1.0
  %2492 = vmatprep.subr.mxu0 0.0
  %2493 = vmatpush1.msra.mxu0 1.0
  %2494 = vmatprep.subr.mxu0 0.0
  %2495 = vmatpush1.msra.mxu0 1.0
  %2496 = vmatprep.subr.mxu0 0.0
  %2497 = vmatpush1.msra.mxu0 1.0
  %2498 = vmatprep.subr.mxu0 0.0
  %2499 = vmatpush1.msra.mxu0 1.0
  %2500 = vmatprep.subr.mxu0 0.0
  %2501 = vmatpush1.msra.mxu0 1.0
  %2502 = vmatprep.subr.mxu0 0.0
  %2503 = vmatpush1.msra.mxu0 1.0
  %2504 = vmatprep.subr.mxu0 0.0
  %2505 = vmatpush1.msra.mxu0 1.0
  %2506 = vmatprep.subr.mxu0 0.0
  %2507 = vmatpush1.msra.mxu0 1.0
  %v2508 = vand.u32 %v1602, 4294901760
  %2509 = vmatprep.mubr.f32.mxu0 %v2508
  %v2510 = vand.u32 %v1600, 4294901760
  %2511 = vmatmul.mubr.f32.gmra.mrb[0].mxu0 %v2510
  %v2512 = vpop.f32.mrb[0].mxu0
  %v2513 = vadd.f32 %v2392, %v2512
  %v2514 = vpop.f32.mrb[0].mxu0
  %v2515 = vand.u32 %v1608, 4294901760
  %2516 = vmatprep.mubr.f32.mxu0 %v2515
  %v2517 = vand.u32 %v1606, 4294901760
  %2518 = vmatmul.mubr.f32.gmra.mrb[0].mxu0 %v2517
  %v2519 = vpop.f32.mrb[0].mxu0
  %v2520 = vadd.f32 %v2399, %v2519
  %v2521 = vpop.f32.mrb[0].mxu0
  %v2522 = vand.u32 %v1614, 4294901760
  %2523 = vmatprep.mubr.f32.mxu0 %v2522
  %v2524 = vand.u32 %v1612, 4294901760
  %2525 = vmatmul.mubr.f32.gmra.mrb[0].mxu0 %v2524
  %v2526 = vpop.f32.mrb[0].mxu0
  %v2527 = vadd.f32 %v2406, %v2526
  %v2528 = vpop.f32.mrb[0].mxu0
  %v2529 = vand.u32 %v1620, 4294901760
  %2530 = vmatprep.mubr.f32.mxu0 %v2529
  %v2531 = vand.u32 %v1618, 4294901760
  %2532 = vmatmul.mubr.f32.gmra.mrb[0].mxu0 %v2531
  %v2533 = vpop.f32.mrb[0].mxu0
  %v2534 = vadd.f32 %v2413, %v2533
  %v2535 = vpop.f32.mrb[0].mxu0
  %v2536 = vand.u32 %v1712, 4294901760
  %2537 = vmatprep.mubr.f32.mxu0 %v2536
  %v2538 = vand.u32 %v1711, 4294901760
  %2539 = vmatmul.mubr.f32.gmra.mrb[0].mxu0 %v2538
  %v2540 = vpop.f32.mrb[0].mxu0
  %v2541 = vadd.f32 %v2420, %v2540
  %v2542 = vpop.f32.mrb[0].mxu0
  %v2543 = vand.u32 %v1716, 4294901760
  %2544 = vmatprep.mubr.f32.mxu0 %v2543
  %v2545 = vand.u32 %v1715, 4294901760
  %2546 = vmatmul.mubr.f32.gmra.mrb[0].mxu0 %v2545
  %v2547 = vpop.f32.mrb[0].mxu0
  %v2548 = vadd.f32 %v2427, %v2547
  %v2549 = vpop.f32.mrb[0].mxu0
  %v2550 = vand.u32 %v1720, 4294901760
  %2551 = vmatprep.mubr.f32.mxu0 %v2550
  %v2552 = vand.u32 %v1719, 4294901760
  %2553 = vmatmul.mubr.f32.gmra.mrb[0].mxu0 %v2552
  %v2554 = vpop.f32.mrb[0].mxu0
  %v2555 = vadd.f32 %v2434, %v2554
  %v2556 = vpop.f32.mrb[0].mxu0
  %v2557 = vand.u32 %v1724, 4294901760
  %2558 = vmatprep.mubr.f32.mxu0 %v2557
  %v2559 = vand.u32 %v1723, 4294901760
  %2560 = vmatmul.mubr.f32.gmra.mrb[0].mxu0 %v2559
  %v2561 = vpop.f32.mrb[0].mxu0
  %v2562 = vadd.f32 %v2441, %v2561
  %v2563 = vpop.f32.mrb[0].mxu0
  %2564 = vdwg.mxu0
  %2565 = vmatprep.subr.mxu0 0.0
  %2566 = vmatpush1.msra.mxu0 1.0
  %2567 = vmatprep.subr.mxu0 0.0
  %2568 = vmatpush1.msra.mxu0 1.0
  %2569 = vmatprep.subr.mxu0 0.0
  %2570 = vmatpush1.msra.mxu0 1.0
  %2571 = vmatprep.subr.mxu0 0.0
  %2572 = vmatpush1.msra.mxu0 1.0
  %2573 = vmatprep.subr.mxu0 0.0
  %2574 = vmatpush1.msra.mxu0 1.0
  %2575 = vmatprep.subr.mxu0 0.0
  %2576 = vmatpush1.msra.mxu0 1.0
  %2577 = vmatprep.subr.mxu0 0.0
  %2578 = vmatpush1.msra.mxu0 1.0
  %2579 = vmatprep.subr.mxu0 0.0
  %2580 = vmatpush1.msra.mxu0 1.0
  %2581 = vmatprep.subr.mxu0 0.0
  %2582 = vmatpush1.msra.mxu0 1.0
  %2583 = vmatprep.subr.mxu0 0.0
  %2584 = vmatpush1.msra.mxu0 1.0
  %2585 = vmatprep.subr.mxu0 0.0
  %2586 = vmatpush1.msra.mxu0 1.0
  %2587 = vmatprep.subr.mxu0 0.0
  %2588 = vmatpush1.msra.mxu0 1.0
  %2589 = vmatprep.subr.mxu0 0.0
  %2590 = vmatpush1.msra.mxu0 1.0
  %2591 = vmatprep.subr.mxu0 0.0
  %2592 = vmatpush1.msra.mxu0 1.0
  %2593 = vmatprep.subr.mxu0 0.0
  %2594 = vmatpush1.msra.mxu0 1.0
  %2595 = vmatprep.subr.mxu0 0.0
  %2596 = vmatpush1.msra.mxu0 1.0
  %2597 = vmatprep.subr.mxu0 0.0
  %2598 = vmatpush1.msra.mxu0 1.0
  %2599 = vmatprep.subr.mxu0 0.0
  %2600 = vmatpush1.msra.mxu0 1.0
  %2601 = vmatprep.subr.mxu0 0.0
  %2602 = vmatpush1.msra.mxu0 1.0
  %2603 = vmatprep.subr.mxu0 0.0
  %2604 = vmatpush1.msra.mxu0 1.0
  %2605 = vmatprep.subr.mxu0 0.0
  %2606 = vmatpush1.msra.mxu0 1.0
  %2607 = vmatprep.subr.mxu0 0.0
  %2608 = vmatpush1.msra.mxu0 1.0
  %2609 = vmatprep.subr.mxu0 0.0
  %2610 = vmatpush1.msra.mxu0 1.0
  %2611 = vmatprep.subr.mxu0 0.0
  %2612 = vmatpush1.msra.mxu0 1.0
  %2613 = vmatprep.subr.mxu0 0.0
  %2614 = vmatpush1.msra.mxu0 1.0
  %2615 = vmatprep.subr.mxu0 0.0
  %2616 = vmatpush1.msra.mxu0 1.0
  %2617 = vmatprep.subr.mxu0 0.0
  %2618 = vmatpush1.msra.mxu0 1.0
  %2619 = vmatprep.subr.mxu0 0.0
  %2620 = vmatpush1.msra.mxu0 1.0
  %2621 = vmatprep.subr.mxu0 0.0
  %2622 = vmatpush1.msra.mxu0 1.0
  %2623 = vmatprep.subr.mxu0 0.0
  %2624 = vmatpush1.msra.mxu0 1.0
  %2625 = vmatprep.subr.mxu0 0.0
  %2626 = vmatpush1.msra.mxu0 1.0
  %2627 = vmatprep.subr.mxu0 0.0
  %2628 = vmatpush1.msra.mxu0 1.0
  %v2629 = vand.u32 %v1691, 4294901760
  %v2630 = vsub.f32 %v1691, %v2629
  %v2631 = vand.u32 %v2630, 4294901760
  %v2632 = vsub.f32 %v2630, %v2631
  %v2633 = vand.u32 %v2632, 4294901760
  %2634 = vmatprep.mubr.f32.mxu0 %v2633
  %v2635 = vand.u32 %v1689, 4294901760
  %v2636 = vsub.f32 %v1689, %v2635
  %v2637 = vand.u32 %v2636, 4294901760
  %v2638 = vsub.f32 %v2636, %v2637
  %v2639 = vand.u32 %v2638, 4294901760
  %2640 = vmatmul.mubr.f32.gmra.mrb[0].mxu0 %v2639
  %v2641 = vpop.f32.mrb[0].mxu0
  %v2642 = vadd.f32 %v2513, %v2641
  %v2643 = vpop.f32.mrb[0].mxu0
  %v2644 = vand.u32 %v1697, 4294901760
  %v2645 = vsub.f32 %v1697, %v2644
  %v2646 = vand.u32 %v2645, 4294901760
  %v2647 = vsub.f32 %v2645, %v2646
  %v2648 = vand.u32 %v2647, 4294901760
  %2649 = vmatprep.mubr.f32.mxu0 %v2648
  %v2650 = vand.u32 %v1695, 4294901760
  %v2651 = vsub.f32 %v1695, %v2650
  %v2652 = vand.u32 %v2651, 4294901760
  %v2653 = vsub.f32 %v2651, %v2652
  %v2654 = vand.u32 %v2653, 4294901760
  %2655 = vmatmul.mubr.f32.gmra.mrb[0].mxu0 %v2654
  %v2656 = vpop.f32.mrb[0].mxu0
  %v2657 = vadd.f32 %v2520, %v2656
  %v2658 = vpop.f32.mrb[0].mxu0
  %v2659 = vand.u32 %v1703, 4294901760
  %v2660 = vsub.f32 %v1703, %v2659
  %v2661 = vand.u32 %v2660, 4294901760
  %v2662 = vsub.f32 %v2660, %v2661
  %v2663 = vand.u32 %v2662, 4294901760
  %2664 = vmatprep.mubr.f32.mxu0 %v2663
  %v2665 = vand.u32 %v1701, 4294901760
  %v2666 = vsub.f32 %v1701, %v2665
  %v2667 = vand.u32 %v2666, 4294901760
  %v2668 = vsub.f32 %v2666, %v2667
  %v2669 = vand.u32 %v2668, 4294901760
  %2670 = vmatmul.mubr.f32.gmra.mrb[0].mxu0 %v2669
  %v2671 = vpop.f32.mrb[0].mxu0
  %v2672 = vadd.f32 %v2527, %v2671
  %v2673 = vpop.f32.mrb[0].mxu0
  %v2674 = vand.u32 %v1709, 4294901760
  %v2675 = vsub.f32 %v1709, %v2674
  %v2676 = vand.u32 %v2675, 4294901760
  %v2677 = vsub.f32 %v2675, %v2676
  %v2678 = vand.u32 %v2677, 4294901760
  %2679 = vmatprep.mubr.f32.mxu0 %v2678
  %v2680 = vand.u32 %v1707, 4294901760
  %v2681 = vsub.f32 %v1707, %v2680
  %v2682 = vand.u32 %v2681, 4294901760
  %v2683 = vsub.f32 %v2681, %v2682
  %v2684 = vand.u32 %v2683, 4294901760
  %2685 = vmatmul.mubr.f32.gmra.mrb[0].mxu0 %v2684
  %v2686 = vpop.f32.mrb[0].mxu0
  %v2687 = vadd.f32 %v2534, %v2686
  %v2688 = vpop.f32.mrb[0].mxu0
  %v2689 = vand.u32 %v1714, 4294901760
  %v2690 = vsub.f32 %v1714, %v2689
  %v2691 = vand.u32 %v2690, 4294901760
  %v2692 = vsub.f32 %v2690, %v2691
  %v2693 = vand.u32 %v2692, 4294901760
  %2694 = vmatprep.mubr.f32.mxu0 %v2693
  %v2695 = vand.u32 %v1713, 4294901760
  %v2696 = vsub.f32 %v1713, %v2695
  %v2697 = vand.u32 %v2696, 4294901760
  %v2698 = vsub.f32 %v2696, %v2697
  %v2699 = vand.u32 %v2698, 4294901760
  %2700 = vmatmul.mubr.f32.gmra.mrb[0].mxu0 %v2699
  %v2701 = vpop.f32.mrb[0].mxu0
  %v2702 = vadd.f32 %v2541, %v2701
  %v2703 = vpop.f32.mrb[0].mxu0
  %v2704 = vand.u32 %v1718, 4294901760
  %v2705 = vsub.f32 %v1718, %v2704
  %v2706 = vand.u32 %v2705, 4294901760
  %v2707 = vsub.f32 %v2705, %v2706
  %v2708 = vand.u32 %v2707, 4294901760
  %2709 = vmatprep.mubr.f32.mxu0 %v2708
  %v2710 = vand.u32 %v1717, 4294901760
  %v2711 = vsub.f32 %v1717, %v2710
  %v2712 = vand.u32 %v2711, 4294901760
  %v2713 = vsub.f32 %v2711, %v2712
  %v2714 = vand.u32 %v2713, 4294901760
  %2715 = vmatmul.mubr.f32.gmra.mrb[0].mxu0 %v2714
  %v2716 = vpop.f32.mrb[0].mxu0
  %v2717 = vadd.f32 %v2548, %v2716
  %v2718 = vpop.f32.mrb[0].mxu0
  %v2719 = vand.u32 %v1722, 4294901760
  %v2720 = vsub.f32 %v1722, %v2719
  %v2721 = vand.u32 %v2720, 4294901760
  %v2722 = vsub.f32 %v2720, %v2721
  %v2723 = vand.u32 %v2722, 4294901760
  %2724 = vmatprep.mubr.f32.mxu0 %v2723
  %v2725 = vand.u32 %v1721, 4294901760
  %v2726 = vsub.f32 %v1721, %v2725
  %v2727 = vand.u32 %v2726, 4294901760
  %v2728 = vsub.f32 %v2726, %v2727
  %v2729 = vand.u32 %v2728, 4294901760
  %2730 = vmatmul.mubr.f32.gmra.mrb[0].mxu0 %v2729
  %v2731 = vpop.f32.mrb[0].mxu0
  %v2732 = vadd.f32 %v2555, %v2731
  %v2733 = vpop.f32.mrb[0].mxu0
  %v2734 = vand.u32 %v1726, 4294901760
  %v2735 = vsub.f32 %v1726, %v2734
  %v2736 = vand.u32 %v2735, 4294901760
  %v2737 = vsub.f32 %v2735, %v2736
  %v2738 = vand.u32 %v2737, 4294901760
  %2739 = vmatprep.mubr.f32.mxu0 %v2738
  %v2740 = vand.u32 %v1725, 4294901760
  %v2741 = vsub.f32 %v1725, %v2740
  %v2742 = vand.u32 %v2741, 4294901760
  %v2743 = vsub.f32 %v2741, %v2742
  %v2744 = vand.u32 %v2743, 4294901760
  %2745 = vmatmul.mubr.f32.gmra.mrb[0].mxu0 %v2744
  %v2746 = vpop.f32.mrb[0].mxu0
  %v2747 = vadd.f32 %v2562, %v2746
  %v2748 = vpop.f32.mrb[0].mxu0
  %2749 = vdwg.mxu0
  %2750 = vmatprep.subr.mxu0 0.0
  %2751 = vmatpush1.msra.mxu0 0.0
  %2752 = vmatprep.subr.mxu0 0.0
  %2753 = vmatpush1.msra.mxu0 0.0
  %2754 = vmatprep.subr.mxu0 0.0
  %2755 = vmatpush1.msra.mxu0 0.0
  %2756 = vmatprep.subr.mxu0 0.0
  %2757 = vmatpush1.msra.mxu0 0.0
  %2758 = vmatprep.subr.mxu0 0.0
  %2759 = vmatpush1.msra.mxu0 0.0
  %2760 = vmatprep.subr.mxu0 0.0
  %2761 = vmatpush1.msra.mxu0 0.0
  %2762 = vmatprep.subr.mxu0 0.0
  %2763 = vmatpush1.msra.mxu0 0.0
  %2764 = vmatprep.subr.mxu0 0.0
  %2765 = vmatpush1.msra.mxu0 0.0
  %2766 = vmatprep.subr.mxu0 0.0
  %2767 = vmatpush1.msra.mxu0 0.0
  %2768 = vmatprep.subr.mxu0 0.0
  %2769 = vmatpush1.msra.mxu0 0.0
  %2770 = vmatprep.subr.mxu0 0.0
  %2771 = vmatpush1.msra.mxu0 0.0
  %2772 = vmatprep.subr.mxu0 0.0
  %2773 = vmatpush1.msra.mxu0 0.0
  %2774 = vmatprep.subr.mxu0 0.0
  %2775 = vmatpush1.msra.mxu0 0.0
  %2776 = vmatprep.subr.mxu0 0.0
  %2777 = vmatpush1.msra.mxu0 0.0
  %2778 = vmatprep.subr.mxu0 0.0
  %2779 = vmatpush1.msra.mxu0 0.0
  %2780 = vmatprep.subr.mxu0 0.0
  %2781 = vmatpush1.msra.mxu0 0.0
  %2782 = vmatprep.subr.mxu0 0.0
  %2783 = vmatpush1.msra.mxu0 0.0
  %2784 = vmatprep.subr.mxu0 0.0
  %2785 = vmatpush1.msra.mxu0 0.0
  %2786 = vmatprep.subr.mxu0 0.0
  %2787 = vmatpush1.msra.mxu0 0.0
  %2788 = vmatprep.subr.mxu0 0.0
  %2789 = vmatpush1.msra.mxu0 0.0
  %2790 = vmatprep.subr.mxu0 0.0
  %2791 = vmatpush1.msra.mxu0 0.0
  %2792 = vmatprep.subr.mxu0 0.0
  %2793 = vmatpush1.msra.mxu0 0.0
  %2794 = vmatprep.subr.mxu0 0.0
  %2795 = vmatpush1.msra.mxu0 0.0
  %2796 = vmatprep.subr.mxu0 0.0
  %2797 = vmatpush1.msra.mxu0 0.0
  %2798 = vmatprep.subr.mxu0 0.0
  %2799 = vmatpush1.msra.mxu0 0.0
  %2800 = vmatprep.subr.mxu0 0.0
  %2801 = vmatpush1.msra.mxu0 0.0
  %2802 = vmatprep.subr.mxu0 0.0
  %2803 = vmatpush1.msra.mxu0 0.0
  %2804 = vmatprep.subr.mxu0 0.0
  %2805 = vmatpush1.msra.mxu0 0.0
  %2806 = vmatprep.subr.mxu0 0.0
  %2807 = vmatpush1.msra.mxu0 0.0
  %2808 = vmatprep.subr.mxu0 0.0
  %2809 = vmatpush1.msra.mxu0 0.0
  %2810 = vmatprep.subr.mxu0 0.0
  %2811 = vmatpush1.msra.mxu0 0.0
  %2812 = vmatprep.subr.mxu0 0.0
  %2813 = vmatpush1.msra.mxu0 0.0
  %v2814 = vand.u32 %v1691, 4294901760
  %2815 = vmatprep.mubr.f32.mxu0 %v2814
  %v2816 = vand.u32 %v1689, 4294901760
  %2817 = vmatmul.mubr.f32.gmra.mrb[0].mxu0 %v2816
  %v2818 = vpop.f32.mrb[0].mxu0
  %v2819 = vadd.f32 %v2642, %v2818
  %v2820 = vpop.f32.mrb[0].mxu0
  %v2821 = vand.u32 %v1697, 4294901760
  %2822 = vmatprep.mubr.f32.mxu0 %v2821
  %v2823 = vand.u32 %v1695, 4294901760
  %2824 = vmatmul.mubr.f32.gmra.mrb[0].mxu0 %v2823
  %v2825 = vpop.f32.mrb[0].mxu0
  %v2826 = vadd.f32 %v2657, %v2825
  %v2827 = vpop.f32.mrb[0].mxu0
  %v2828 = vand.u32 %v1703, 4294901760
  %2829 = vmatprep.mubr.f32.mxu0 %v2828
  %v2830 = vand.u32 %v1701, 4294901760
  %2831 = vmatmul.mubr.f32.gmra.mrb[0].mxu0 %v2830
  %v2832 = vpop.f32.mrb[0].mxu0
  %v2833 = vadd.f32 %v2672, %v2832
  %v2834 = vpop.f32.mrb[0].mxu0
  %v2835 = vand.u32 %v1709, 4294901760
  %2836 = vmatprep.mubr.f32.mxu0 %v2835
  %v2837 = vand.u32 %v1707, 4294901760
  %2838 = vmatmul.mubr.f32.gmra.mrb[0].mxu0 %v2837
  %v2839 = vpop.f32.mrb[0].mxu0
  %v2840 = vadd.f32 %v2687, %v2839
  %v2841 = vpop.f32.mrb[0].mxu0
  %v2842 = vand.u32 %v1714, 4294901760
  %2843 = vmatprep.mubr.f32.mxu0 %v2842
  %v2844 = vand.u32 %v1713, 4294901760
  %2845 = vmatmul.mubr.f32.gmra.mrb[0].mxu0 %v2844
  %v2846 = vpop.f32.mrb[0].mxu0
  %v2847 = vadd.f32 %v2702, %v2846
  %v2848 = vpop.f32.mrb[0].mxu0
  %v2849 = vand.u32 %v1718, 4294901760
  %2850 = vmatprep.mubr.f32.mxu0 %v2849
  %v2851 = vand.u32 %v1717, 4294901760
  %2852 = vmatmul.mubr.f32.gmra.mrb[0].mxu0 %v2851
  %v2853 = vpop.f32.mrb[0].mxu0
  %v2854 = vadd.f32 %v2717, %v2853
  %v2855 = vpop.f32.mrb[0].mxu0
  %v2856 = vand.u32 %v1722, 4294901760
  %2857 = vmatprep.mubr.f32.mxu0 %v2856
  %v2858 = vand.u32 %v1721, 4294901760
  %2859 = vmatmul.mubr.f32.gmra.mrb[0].mxu0 %v2858
  %v2860 = vpop.f32.mrb[0].mxu0
  %v2861 = vadd.f32 %v2732, %v2860
  %v2862 = vpop.f32.mrb[0].mxu0
  %v2863 = vand.u32 %v1726, 4294901760
  %2864 = vmatprep.mubr.f32.mxu0 %v2863
  %v2865 = vand.u32 %v1725, 4294901760
  %2866 = vmatmul.mubr.f32.gmra.mrb[0].mxu0 %v2865
  %v2867 = vpop.f32.mrb[0].mxu0
  %v2868 = vadd.f32 %v2747, %v2867
  %v2869 = vpop.f32.mrb[0].mxu0
  %2870 = vdwg.mxu0
  %2871 = vmatprep.subr.mxu0 0.0
  %2872 = vmatpush1.msra.mxu0 0.0
  %2873 = vmatprep.subr.mxu0 0.0
  %2874 = vmatpush1.msra.mxu0 0.0
  %2875 = vmatprep.subr.mxu0 0.0
  %2876 = vmatpush1.msra.mxu0 0.0
  %2877 = vmatprep.subr.mxu0 0.0
  %2878 = vmatpush1.msra.mxu0 0.0
  %2879 = vmatprep.subr.mxu0 0.0
  %2880 = vmatpush1.msra.mxu0 0.0
  %2881 = vmatprep.subr.mxu0 0.0
  %2882 = vmatpush1.msra.mxu0 0.0
  %2883 = vmatprep.subr.mxu0 0.0
  %2884 = vmatpush1.msra.mxu0 0.0
  %2885 = vmatprep.subr.mxu0 0.0
  %2886 = vmatpush1.msra.mxu0 0.0
  %2887 = vmatprep.subr.mxu0 0.0
  %2888 = vmatpush1.msra.mxu0 0.0
  %2889 = vmatprep.subr.mxu0 0.0
  %2890 = vmatpush1.msra.mxu0 0.0
  %2891 = vmatprep.subr.mxu0 0.0
  %2892 = vmatpush1.msra.mxu0 0.0
  %2893 = vmatprep.subr.mxu0 0.0
  %2894 = vmatpush1.msra.mxu0 0.0
  %2895 = vmatprep.subr.mxu0 0.0
  %2896 = vmatpush1.msra.mxu0 0.0
  %2897 = vmatprep.subr.mxu0 0.0
  %2898 = vmatpush1.msra.mxu0 0.0
  %2899 = vmatprep.subr.mxu0 0.0
  %2900 = vmatpush1.msra.mxu0 0.0
  %2901 = vmatprep.subr.mxu0 0.0
  %2902 = vmatpush1.msra.mxu0 0.0
  %2903 = vmatprep.subr.mxu0 0.0
  %2904 = vmatpush1.msra.mxu0 0.0
  %2905 = vmatprep.subr.mxu0 0.0
  %2906 = vmatpush1.msra.mxu0 0.0
  %2907 = vmatprep.subr.mxu0 0.0
  %2908 = vmatpush1.msra.mxu0 0.0
  %2909 = vmatprep.subr.mxu0 0.0
  %2910 = vmatpush1.msra.mxu0 0.0
  %2911 = vmatprep.subr.mxu0 0.0
  %2912 = vmatpush1.msra.mxu0 0.0
  %2913 = vmatprep.subr.mxu0 0.0
  %2914 = vmatpush1.msra.mxu0 0.0
  %2915 = vmatprep.subr.mxu0 0.0
  %2916 = vmatpush1.msra.mxu0 0.0
  %2917 = vmatprep.subr.mxu0 0.0
  %2918 = vmatpush1.msra.mxu0 0.0
  %2919 = vmatprep.subr.mxu0 0.0
  %2920 = vmatpush1.msra.mxu0 0.0
  %2921 = vmatprep.subr.mxu0 0.0
  %2922 = vmatpush1.msra.mxu0 0.0
  %2923 = vmatprep.subr.mxu0 0.0
  %2924 = vmatpush1.msra.mxu0 0.0
  %2925 = vmatprep.subr.mxu0 0.0
  %2926 = vmatpush1.msra.mxu0 0.0
  %2927 = vmatprep.subr.mxu0 0.0
  %2928 = vmatpush1.msra.mxu0 0.0
  %2929 = vmatprep.subr.mxu0 0.0
  %2930 = vmatpush1.msra.mxu0 0.0
  %2931 = vmatprep.subr.mxu0 0.0
  %2932 = vmatpush1.msra.mxu0 0.0
  %2933 = vmatprep.subr.mxu0 0.0
  %2934 = vmatpush1.msra.mxu0 0.0
  %v2935 = vand.u32 %v1691, 4294901760
  %v2936 = vsub.f32 %v1691, %v2935
  %2937 = vmatprep.mubr.f32.mxu0 %v2936
  %v2938 = vand.u32 %v1689, 4294901760
  %v2939 = vsub.f32 %v1689, %v2938
  %2940 = vmatmul.mubr.f32.gmra.mrb[0].mxu0 %v2939
  %v2941 = vpop.f32.mrb[0].mxu0
  %v2942 = vadd.f32 %v2819, %v2941
  %v2943 = vpop.f32.mrb[0].mxu0
  %v2944 = vand.u32 %v1697, 4294901760
  %v2945 = vsub.f32 %v1697, %v2944
  %2946 = vmatprep.mubr.f32.mxu0 %v2945
  %v2947 = vand.u32 %v1695, 4294901760
  %v2948 = vsub.f32 %v1695, %v2947
  %2949 = vmatmul.mubr.f32.gmra.mrb[0].mxu0 %v2948
  %v2950 = vpop.f32.mrb[0].mxu0
  %v2951 = vadd.f32 %v2826, %v2950
  %v2952 = vpop.f32.mrb[0].mxu0
  %v2953 = vand.u32 %v1703, 4294901760
  %v2954 = vsub.f32 %v1703, %v2953
  %2955 = vmatprep.mubr.f32.mxu0 %v2954
  %v2956 = vand.u32 %v1701, 4294901760
  %v2957 = vsub.f32 %v1701, %v2956
  %2958 = vmatmul.mubr.f32.gmra.mrb[0].mxu0 %v2957
  %v2959 = vpop.f32.mrb[0].mxu0
  %v2960 = vadd.f32 %v2833, %v2959
  %v2961 = vpop.f32.mrb[0].mxu0
  %v2962 = vand.u32 %v1709, 4294901760
  %v2963 = vsub.f32 %v1709, %v2962
  %2964 = vmatprep.mubr.f32.mxu0 %v2963
  %v2965 = vand.u32 %v1707, 4294901760
  %v2966 = vsub.f32 %v1707, %v2965
  %2967 = vmatmul.mubr.f32.gmra.mrb[0].mxu0 %v2966
  %v2968 = vpop.f32.mrb[0].mxu0
  %v2969 = vadd.f32 %v2840, %v2968
  %v2970 = vpop.f32.mrb[0].mxu0
  %v2971 = vand.u32 %v1714, 4294901760
  %v2972 = vsub.f32 %v1714, %v2971
  %2973 = vmatprep.mubr.f32.mxu0 %v2972
  %v2974 = vand.u32 %v1713, 4294901760
  %v2975 = vsub.f32 %v1713, %v2974
  %2976 = vmatmul.mubr.f32.gmra.mrb[0].mxu0 %v2975
  %v2977 = vpop.f32.mrb[0].mxu0
  %v2978 = vadd.f32 %v2847, %v2977
  %v2979 = vpop.f32.mrb[0].mxu0
  %v2980 = vand.u32 %v1718, 4294901760
  %v2981 = vsub.f32 %v1718, %v2980
  %2982 = vmatprep.mubr.f32.mxu0 %v2981
  %v2983 = vand.u32 %v1717, 4294901760
  %v2984 = vsub.f32 %v1717, %v2983
  %2985 = vmatmul.mubr.f32.gmra.mrb[0].mxu0 %v2984
  %v2986 = vpop.f32.mrb[0].mxu0
  %v2987 = vadd.f32 %v2854, %v2986
  %v2988 = vpop.f32.mrb[0].mxu0
  %v2989 = vand.u32 %v1722, 4294901760
  %v2990 = vsub.f32 %v1722, %v2989
  %2991 = vmatprep.mubr.f32.mxu0 %v2990
  %v2992 = vand.u32 %v1721, 4294901760
  %v2993 = vsub.f32 %v1721, %v2992
  %2994 = vmatmul.mubr.f32.gmra.mrb[0].mxu0 %v2993
  %v2995 = vpop.f32.mrb[0].mxu0
  %v2996 = vadd.f32 %v2861, %v2995
  %v2997 = vpop.f32.mrb[0].mxu0
  %v2998 = vand.u32 %v1726, 4294901760
  %v2999 = vsub.f32 %v1726, %v2998
  %3000 = vmatprep.mubr.f32.mxu0 %v2999
  %v3001 = vand.u32 %v1725, 4294901760
  %v3002 = vsub.f32 %v1725, %v3001
  %3003 = vmatmul.mubr.f32.gmra.mrb[0].mxu0 %v3002
  %v3004 = vpop.f32.mrb[0].mxu0
  %v3005 = vadd.f32 %v2868, %v3004
  %v3006 = vpop.f32.mrb[0].mxu0
  %3007 = vdwg.mxu0
  %3008 = vmatprep.subr.mxu0 0.0
  %3009 = vmatpush1.msra.mxu0 1.0
  %3010 = vmatprep.subr.mxu0 0.0
  %3011 = vmatpush1.msra.mxu0 1.0
  %3012 = vmatprep.subr.mxu0 0.0
  %3013 = vmatpush1.msra.mxu0 1.0
  %3014 = vmatprep.subr.mxu0 0.0
  %3015 = vmatpush1.msra.mxu0 1.0
  %3016 = vmatprep.subr.mxu0 0.0
  %3017 = vmatpush1.msra.mxu0 1.0
  %3018 = vmatprep.subr.mxu0 0.0
  %3019 = vmatpush1.msra.mxu0 1.0
  %3020 = vmatprep.subr.mxu0 0.0
  %3021 = vmatpush1.msra.mxu0 1.0
  %3022 = vmatprep.subr.mxu0 0.0
  %3023 = vmatpush1.msra.mxu0 1.0
  %3024 = vmatprep.subr.mxu0 0.0
  %3025 = vmatpush1.msra.mxu0 1.0
  %3026 = vmatprep.subr.mxu0 0.0
  %3027 = vmatpush1.msra.mxu0 1.0
  %3028 = vmatprep.subr.mxu0 0.0
  %3029 = vmatpush1.msra.mxu0 1.0
  %3030 = vmatprep.subr.mxu0 0.0
  %3031 = vmatpush1.msra.mxu0 1.0
  %3032 = vmatprep.subr.mxu0 0.0
  %3033 = vmatpush1.msra.mxu0 1.0
  %3034 = vmatprep.subr.mxu0 0.0
  %3035 = vmatpush1.msra.mxu0 1.0
  %3036 = vmatprep.subr.mxu0 0.0
  %3037 = vmatpush1.msra.mxu0 1.0
  %3038 = vmatprep.subr.mxu0 0.0
  %3039 = vmatpush1.msra.mxu0 1.0
  %3040 = vmatprep.subr.mxu0 0.0
  %3041 = vmatpush1.msra.mxu0 1.0
  %3042 = vmatprep.subr.mxu0 0.0
  %3043 = vmatpush1.msra.mxu0 1.0
  %3044 = vmatprep.subr.mxu0 0.0
  %3045 = vmatpush1.msra.mxu0 1.0
  %3046 = vmatprep.subr.mxu0 0.0
  %3047 = vmatpush1.msra.mxu0 1.0
  %3048 = vmatprep.subr.mxu0 0.0
  %3049 = vmatpush1.msra.mxu0 1.0
  %3050 = vmatprep.subr.mxu0 0.0
  %3051 = vmatpush1.msra.mxu0 1.0
  %3052 = vmatprep.subr.mxu0 0.0
  %3053 = vmatpush1.msra.mxu0 1.0
  %3054 = vmatprep.subr.mxu0 0.0
  %3055 = vmatpush1.msra.mxu0 1.0
  %3056 = vmatprep.subr.mxu0 0.0
  %3057 = vmatpush1.msra.mxu0 1.0
  %3058 = vmatprep.subr.mxu0 0.0
  %3059 = vmatpush1.msra.mxu0 1.0
  %3060 = vmatprep.subr.mxu0 0.0
  %3061 = vmatpush1.msra.mxu0 1.0
  %3062 = vmatprep.subr.mxu0 0.0
  %3063 = vmatpush1.msra.mxu0 1.0
  %3064 = vmatprep.subr.mxu0 0.0
  %3065 = vmatpush1.msra.mxu0 1.0
  %3066 = vmatprep.subr.mxu0 0.0
  %3067 = vmatpush1.msra.mxu0 1.0
  %3068 = vmatprep.subr.mxu0 0.0
  %3069 = vmatpush1.msra.mxu0 1.0
  %3070 = vmatprep.subr.mxu0 0.0
  %3071 = vmatpush1.msra.mxu0 1.0
  %v3072 = vand.u32 %v1691, 4294901760
  %v3073 = vsub.f32 %v1691, %v3072
  %v3074 = vand.u32 %v3073, 4294901760
  %3075 = vmatprep.mubr.f32.mxu0 %v3074
  %v3076 = vand.u32 %v1689, 4294901760
  %v3077 = vsub.f32 %v1689, %v3076
  %v3078 = vand.u32 %v3077, 4294901760
  %3079 = vmatmul.mubr.f32.gmra.mrb[0].mxu0 %v3078
  %v3080 = vpop.f32.mrb[0].mxu0
  %v3081 = vadd.f32 %v2942, %v3080
  %v3082 = vpop.f32.mrb[0].mxu0
  %v3083 = vand.u32 %v1697, 4294901760
  %v3084 = vsub.f32 %v1697, %v3083
  %v3085 = vand.u32 %v3084, 4294901760
  %3086 = vmatprep.mubr.f32.mxu0 %v3085
  %v3087 = vand.u32 %v1695, 4294901760
  %v3088 = vsub.f32 %v1695, %v3087
  %v3089 = vand.u32 %v3088, 4294901760
  %3090 = vmatmul.mubr.f32.gmra.mrb[0].mxu0 %v3089
  %v3091 = vpop.f32.mrb[0].mxu0
  %v3092 = vadd.f32 %v2951, %v3091
  %v3093 = vpop.f32.mrb[0].mxu0
  %v3094 = vand.u32 %v1703, 4294901760
  %v3095 = vsub.f32 %v1703, %v3094
  %v3096 = vand.u32 %v3095, 4294901760
  %3097 = vmatprep.mubr.f32.mxu0 %v3096
  %v3098 = vand.u32 %v1701, 4294901760
  %v3099 = vsub.f32 %v1701, %v3098
  %v3100 = vand.u32 %v3099, 4294901760
  %3101 = vmatmul.mubr.f32.gmra.mrb[0].mxu0 %v3100
  %v3102 = vpop.f32.mrb[0].mxu0
  %v3103 = vadd.f32 %v2960, %v3102
  %v3104 = vpop.f32.mrb[0].mxu0
  %v3105 = vand.u32 %v1709, 4294901760
  %v3106 = vsub.f32 %v1709, %v3105
  %v3107 = vand.u32 %v3106, 4294901760
  %3108 = vmatprep.mubr.f32.mxu0 %v3107
  %v3109 = vand.u32 %v1707, 4294901760
  %v3110 = vsub.f32 %v1707, %v3109
  %v3111 = vand.u32 %v3110, 4294901760
  %3112 = vmatmul.mubr.f32.gmra.mrb[0].mxu0 %v3111
  %v3113 = vpop.f32.mrb[0].mxu0
  %v3114 = vadd.f32 %v2969, %v3113
  %v3115 = vpop.f32.mrb[0].mxu0
  %v3116 = vand.u32 %v1714, 4294901760
  %v3117 = vsub.f32 %v1714, %v3116
  %v3118 = vand.u32 %v3117, 4294901760
  %3119 = vmatprep.mubr.f32.mxu0 %v3118
  %v3120 = vand.u32 %v1713, 4294901760
  %v3121 = vsub.f32 %v1713, %v3120
  %v3122 = vand.u32 %v3121, 4294901760
  %3123 = vmatmul.mubr.f32.gmra.mrb[0].mxu0 %v3122
  %v3124 = vpop.f32.mrb[0].mxu0
  %v3125 = vadd.f32 %v2978, %v3124
  %v3126 = vpop.f32.mrb[0].mxu0
  %v3127 = vand.u32 %v1718, 4294901760
  %v3128 = vsub.f32 %v1718, %v3127
  %v3129 = vand.u32 %v3128, 4294901760
  %3130 = vmatprep.mubr.f32.mxu0 %v3129
  %v3131 = vand.u32 %v1717, 4294901760
  %v3132 = vsub.f32 %v1717, %v3131
  %v3133 = vand.u32 %v3132, 4294901760
  %3134 = vmatmul.mubr.f32.gmra.mrb[0].mxu0 %v3133
  %v3135 = vpop.f32.mrb[0].mxu0
  %v3136 = vadd.f32 %v2987, %v3135
  %v3137 = vpop.f32.mrb[0].mxu0
  %v3138 = vand.u32 %v1722, 4294901760
  %v3139 = vsub.f32 %v1722, %v3138
  %v3140 = vand.u32 %v3139, 4294901760
  %3141 = vmatprep.mubr.f32.mxu0 %v3140
  %v3142 = vand.u32 %v1721, 4294901760
  %v3143 = vsub.f32 %v1721, %v3142
  %v3144 = vand.u32 %v3143, 4294901760
  %3145 = vmatmul.mubr.f32.gmra.mrb[0].mxu0 %v3144
  %v3146 = vpop.f32.mrb[0].mxu0
  %v3147 = vadd.f32 %v2996, %v3146
  %v3148 = vpop.f32.mrb[0].mxu0
  %v3149 = vand.u32 %v1726, 4294901760
  %v3150 = vsub.f32 %v1726, %v3149
  %v3151 = vand.u32 %v3150, 4294901760
  %3152 = vmatprep.mubr.f32.mxu0 %v3151
  %v3153 = vand.u32 %v1725, 4294901760
  %v3154 = vsub.f32 %v1725, %v3153
  %v3155 = vand.u32 %v3154, 4294901760
  %3156 = vmatmul.mubr.f32.gmra.mrb[0].mxu0 %v3155
  %v3157 = vpop.f32.mrb[0].mxu0
  %v3158 = vadd.f32 %v3005, %v3157
  %v3159 = vpop.f32.mrb[0].mxu0
  %3160 = vdwg.mxu0
  %3161 = vmatprep.subr.mxu0 0.0
  %3162 = vmatpush1.msra.mxu0 0.0
  %3163 = vmatprep.subr.mxu0 0.0
  %3164 = vmatpush1.msra.mxu0 0.0
  %3165 = vmatprep.subr.mxu0 0.0
  %3166 = vmatpush1.msra.mxu0 0.0
  %3167 = vmatprep.subr.mxu0 0.0
  %3168 = vmatpush1.msra.mxu0 0.0
  %3169 = vmatprep.subr.mxu0 0.0
  %3170 = vmatpush1.msra.mxu0 0.0
  %3171 = vmatprep.subr.mxu0 0.0
  %3172 = vmatpush1.msra.mxu0 0.0
  %3173 = vmatprep.subr.mxu0 0.0
  %3174 = vmatpush1.msra.mxu0 0.0
  %3175 = vmatprep.subr.mxu0 0.0
  %3176 = vmatpush1.msra.mxu0 0.0
  %3177 = vmatprep.subr.mxu0 0.0
  %3178 = vmatpush1.msra.mxu0 0.0
  %3179 = vmatprep.subr.mxu0 0.0
  %3180 = vmatpush1.msra.mxu0 0.0
  %3181 = vmatprep.subr.mxu0 0.0
  %3182 = vmatpush1.msra.mxu0 0.0
  %3183 = vmatprep.subr.mxu0 0.0
  %3184 = vmatpush1.msra.mxu0 0.0
  %3185 = vmatprep.subr.mxu0 0.0
  %3186 = vmatpush1.msra.mxu0 0.0
  %3187 = vmatprep.subr.mxu0 0.0
  %3188 = vmatpush1.msra.mxu0 0.0
  %3189 = vmatprep.subr.mxu0 0.0
  %3190 = vmatpush1.msra.mxu0 0.0
  %3191 = vmatprep.subr.mxu0 0.0
  %3192 = vmatpush1.msra.mxu0 0.0
  %3193 = vmatprep.subr.mxu0 0.0
  %3194 = vmatpush1.msra.mxu0 0.0
  %3195 = vmatprep.subr.mxu0 0.0
  %3196 = vmatpush1.msra.mxu0 0.0
  %3197 = vmatprep.subr.mxu0 0.0
  %3198 = vmatpush1.msra.mxu0 0.0
  %3199 = vmatprep.subr.mxu0 0.0
  %3200 = vmatpush1.msra.mxu0 0.0
  %3201 = vmatprep.subr.mxu0 0.0
  %3202 = vmatpush1.msra.mxu0 0.0
  %3203 = vmatprep.subr.mxu0 0.0
  %3204 = vmatpush1.msra.mxu0 0.0
  %3205 = vmatprep.subr.mxu0 0.0
  %3206 = vmatpush1.msra.mxu0 0.0
  %3207 = vmatprep.subr.mxu0 0.0
  %3208 = vmatpush1.msra.mxu0 0.0
  %3209 = vmatprep.subr.mxu0 0.0
  %3210 = vmatpush1.msra.mxu0 0.0
  %3211 = vmatprep.subr.mxu0 0.0
  %3212 = vmatpush1.msra.mxu0 0.0
  %3213 = vmatprep.subr.mxu0 0.0
  %3214 = vmatpush1.msra.mxu0 0.0
  %3215 = vmatprep.subr.mxu0 0.0
  %3216 = vmatpush1.msra.mxu0 0.0
  %3217 = vmatprep.subr.mxu0 0.0
  %3218 = vmatpush1.msra.mxu0 0.0
  %3219 = vmatprep.subr.mxu0 0.0
  %3220 = vmatpush1.msra.mxu0 0.0
  %3221 = vmatprep.subr.mxu0 0.0
  %3222 = vmatpush1.msra.mxu0 0.0
  %3223 = vmatprep.subr.mxu0 0.0
  %3224 = vmatpush1.msra.mxu0 0.0
  %v3225 = vand.u32 %v1691, 4294901760
  %3226 = vmatprep.mubr.f32.mxu0 %v3225
  %v3227 = vand.u32 %v1689, 4294901760
  %3228 = vmatmul.mubr.f32.gmra.mrb[0].mxu0 %v3227
  %v3229 = vpop.f32.mrb[0].mxu0
  %v3230 = vadd.f32 %v3081, %v3229
  %v3231 = vpop.f32.mrb[0].mxu0
  %v3232 = vand.u32 %v1697, 4294901760
  %3233 = vmatprep.mubr.f32.mxu0 %v3232
  %v3234 = vand.u32 %v1695, 4294901760
  %3235 = vmatmul.mubr.f32.gmra.mrb[0].mxu0 %v3234
  %v3236 = vpop.f32.mrb[0].mxu0
  %v3237 = vadd.f32 %v3092, %v3236
  %v3238 = vpop.f32.mrb[0].mxu0
  %v3239 = vand.u32 %v1703, 4294901760
  %3240 = vmatprep.mubr.f32.mxu0 %v3239
  %v3241 = vand.u32 %v1701, 4294901760
  %3242 = vmatmul.mubr.f32.gmra.mrb[0].mxu0 %v3241
  %v3243 = vpop.f32.mrb[0].mxu0
  %v3244 = vadd.f32 %v3103, %v3243
  %v3245 = vpop.f32.mrb[0].mxu0
  %v3246 = vand.u32 %v1709, 4294901760
  %3247 = vmatprep.mubr.f32.mxu0 %v3246
  %v3248 = vand.u32 %v1707, 4294901760
  %3249 = vmatmul.mubr.f32.gmra.mrb[0].mxu0 %v3248
  %v3250 = vpop.f32.mrb[0].mxu0
  %v3251 = vadd.f32 %v3114, %v3250
  %v3252 = vpop.f32.mrb[0].mxu0
  %v3253 = vand.u32 %v1714, 4294901760
  %3254 = vmatprep.mubr.f32.mxu0 %v3253
  %v3255 = vand.u32 %v1713, 4294901760
  %3256 = vmatmul.mubr.f32.gmra.mrb[0].mxu0 %v3255
  %v3257 = vpop.f32.mrb[0].mxu0
  %v3258 = vadd.f32 %v3125, %v3257
  %v3259 = vpop.f32.mrb[0].mxu0
  %v3260 = vand.u32 %v1718, 4294901760
  %3261 = vmatprep.mubr.f32.mxu0 %v3260
  %v3262 = vand.u32 %v1717, 4294901760
  %3263 = vmatmul.mubr.f32.gmra.mrb[0].mxu0 %v3262
  %v3264 = vpop.f32.mrb[0].mxu0
  %v3265 = vadd.f32 %v3136, %v3264
  %v3266 = vpop.f32.mrb[0].mxu0
  %v3267 = vand.u32 %v1722, 4294901760
  %3268 = vmatprep.mubr.f32.mxu0 %v3267
  %v3269 = vand.u32 %v1721, 4294901760
  %3270 = vmatmul.mubr.f32.gmra.mrb[0].mxu0 %v3269
  %v3271 = vpop.f32.mrb[0].mxu0
  %v3272 = vadd.f32 %v3147, %v3271
  %v3273 = vpop.f32.mrb[0].mxu0
  %v3274 = vand.u32 %v1726, 4294901760
  %3275 = vmatprep.mubr.f32.mxu0 %v3274
  %v3276 = vand.u32 %v1725, 4294901760
  %3277 = vmatmul.mubr.f32.gmra.mrb[0].mxu0 %v3276
  %v3278 = vpop.f32.mrb[0].mxu0
  %v3279 = vadd.f32 %v3158, %v3278
  %v3280 = vpop.f32.mrb[0].mxu0
  %3281 = vdwg.mxu0
  %3282 = vmatprep.subr.mxu0 0.0
  %3283 = vmatpush1.msra.mxu0 1.0
  %3284 = vmatprep.subr.mxu0 0.0
  %3285 = vmatpush1.msra.mxu0 1.0
  %3286 = vmatprep.subr.mxu0 0.0
  %3287 = vmatpush1.msra.mxu0 1.0
  %3288 = vmatprep.subr.mxu0 0.0
  %3289 = vmatpush1.msra.mxu0 1.0
  %3290 = vmatprep.subr.mxu0 0.0
  %3291 = vmatpush1.msra.mxu0 1.0
  %3292 = vmatprep.subr.mxu0 0.0
  %3293 = vmatpush1.msra.mxu0 1.0
  %3294 = vmatprep.subr.mxu0 0.0
  %3295 = vmatpush1.msra.mxu0 1.0
  %3296 = vmatprep.subr.mxu0 0.0
  %3297 = vmatpush1.msra.mxu0 1.0
  %3298 = vmatprep.subr.mxu0 0.0
  %3299 = vmatpush1.msra.mxu0 1.0
  %3300 = vmatprep.subr.mxu0 0.0
  %3301 = vmatpush1.msra.mxu0 1.0
  %3302 = vmatprep.subr.mxu0 0.0
  %3303 = vmatpush1.msra.mxu0 1.0
  %3304 = vmatprep.subr.mxu0 0.0
  %3305 = vmatpush1.msra.mxu0 1.0
  %3306 = vmatprep.subr.mxu0 0.0
  %3307 = vmatpush1.msra.mxu0 1.0
  %3308 = vmatprep.subr.mxu0 0.0
  %3309 = vmatpush1.msra.mxu0 1.0
  %3310 = vmatprep.subr.mxu0 0.0
  %3311 = vmatpush1.msra.mxu0 1.0
  %3312 = vmatprep.subr.mxu0 0.0
  %3313 = vmatpush1.msra.mxu0 1.0
  %3314 = vmatprep.subr.mxu0 0.0
  %3315 = vmatpush1.msra.mxu0 1.0
  %3316 = vmatprep.subr.mxu0 0.0
  %3317 = vmatpush1.msra.mxu0 1.0
  %3318 = vmatprep.subr.mxu0 0.0
  %3319 = vmatpush1.msra.mxu0 1.0
  %3320 = vmatprep.subr.mxu0 0.0
  %3321 = vmatpush1.msra.mxu0 1.0
  %3322 = vmatprep.subr.mxu0 0.0
  %3323 = vmatpush1.msra.mxu0 1.0
  %3324 = vmatprep.subr.mxu0 0.0
  %3325 = vmatpush1.msra.mxu0 1.0
  %3326 = vmatprep.subr.mxu0 0.0
  %3327 = vmatpush1.msra.mxu0 1.0
  %3328 = vmatprep.subr.mxu0 0.0
  %3329 = vmatpush1.msra.mxu0 1.0
  %3330 = vmatprep.subr.mxu0 0.0
  %3331 = vmatpush1.msra.mxu0 1.0
  %3332 = vmatprep.subr.mxu0 0.0
  %3333 = vmatpush1.msra.mxu0 1.0
  %3334 = vmatprep.subr.mxu0 0.0
  %3335 = vmatpush1.msra.mxu0 1.0
  %3336 = vmatprep.subr.mxu0 0.0
  %3337 = vmatpush1.msra.mxu0 1.0
  %3338 = vmatprep.subr.mxu0 0.0
  %3339 = vmatpush1.msra.mxu0 1.0
  %3340 = vmatprep.subr.mxu0 0.0
  %3341 = vmatpush1.msra.mxu0 1.0
  %3342 = vmatprep.subr.mxu0 0.0
  %3343 = vmatpush1.msra.mxu0 1.0
  %3344 = vmatprep.subr.mxu0 0.0
  %3345 = vmatpush1.msra.mxu0 1.0
  %v3346 = vand.u32 %v1691, 4294901760
  %3347 = vmatprep.mubr.f32.mxu0 %v3346
  %v3348 = vand.u32 %v1689, 4294901760
  %3349 = vmatmul.mubr.f32.gmra.mrb[0].mxu0 %v3348
  %v3350 = vpop.f32.mrb[0].mxu0
  %v3351 = vadd.f32 %v3230, %v3350
  %v3352 = vpop.f32.mrb[0].mxu0
  %v3353 = vand.u32 %v1697, 4294901760
  %3354 = vmatprep.mubr.f32.mxu0 %v3353
  %v3355 = vand.u32 %v1695, 4294901760
  %3356 = vmatmul.mubr.f32.gmra.mrb[0].mxu0 %v3355
  %v3357 = vpop.f32.mrb[0].mxu0
  %v3358 = vadd.f32 %v3237, %v3357
  %v3359 = vpop.f32.mrb[0].mxu0
  %v3360 = vand.u32 %v1703, 4294901760
  %3361 = vmatprep.mubr.f32.mxu0 %v3360
  %v3362 = vand.u32 %v1701, 4294901760
  %3363 = vmatmul.mubr.f32.gmra.mrb[0].mxu0 %v3362
  %v3364 = vpop.f32.mrb[0].mxu0
  %v3365 = vadd.f32 %v3244, %v3364
  %v3366 = vpop.f32.mrb[0].mxu0
  %v3367 = vand.u32 %v1709, 4294901760
  %3368 = vmatprep.mubr.f32.mxu0 %v3367
  %v3369 = vand.u32 %v1707, 4294901760
  %3370 = vmatmul.mubr.f32.gmra.mrb[0].mxu0 %v3369
  %v3371 = vpop.f32.mrb[0].mxu0
  %v3372 = vadd.f32 %v3251, %v3371
  %v3373 = vpop.f32.mrb[0].mxu0
  %v3374 = vand.u32 %v1714, 4294901760
  %3375 = vmatprep.mubr.f32.mxu0 %v3374
  %v3376 = vand.u32 %v1713, 4294901760
  %3377 = vmatmul.mubr.f32.gmra.mrb[0].mxu0 %v3376
  %v3378 = vpop.f32.mrb[0].mxu0
  %v3379 = vadd.f32 %v3258, %v3378
  %v3380 = vpop.f32.mrb[0].mxu0
  %v3381 = vand.u32 %v1718, 4294901760
  %3382 = vmatprep.mubr.f32.mxu0 %v3381
  %v3383 = vand.u32 %v1717, 4294901760
  %3384 = vmatmul.mubr.f32.gmra.mrb[0].mxu0 %v3383
  %v3385 = vpop.f32.mrb[0].mxu0
  %v3386 = vadd.f32 %v3265, %v3385
  %v3387 = vpop.f32.mrb[0].mxu0
  %v3388 = vand.u32 %v1722, 4294901760
  %3389 = vmatprep.mubr.f32.mxu0 %v3388
  %v3390 = vand.u32 %v1721, 4294901760
  %3391 = vmatmul.mubr.f32.gmra.mrb[0].mxu0 %v3390
  %v3392 = vpop.f32.mrb[0].mxu0
  %v3393 = vadd.f32 %v3272, %v3392
  %v3394 = vpop.f32.mrb[0].mxu0
  %v3395 = vand.u32 %v1726, 4294901760
  %3396 = vmatprep.mubr.f32.mxu0 %v3395
  %v3397 = vand.u32 %v1725, 4294901760
  %3398 = vmatmul.mubr.f32.gmra.mrb[0].mxu0 %v3397
  %v3399 = vpop.f32.mrb[0].mxu0
  %v3400 = vadd.f32 %v3279, %v3399
  %v3401 = vpop.f32.mrb[0].mxu0
  %3402 = vdwg.mxu0
  %v3403 = vmul.f32 %v3351, 0.001953125
  %v3404 = vmul.f32 %v3358, 0.001953125
  %v3405 = vmul.f32 %v3365, 0.001953125
  %v3406 = vmul.f32 %v3372, 0.001953125
  %v3407 = vmul.f32 %v3379, 0.001953125
  %v3408 = vmul.f32 %v3386, 0.001953125
  %v3409 = vmul.f32 %v3393, 0.001953125
  %v3410 = vmul.f32 %v3400, 0.001953125
  %v3411 = vmul.f32 %v3403, %v3403
  %v3412 = vmul.f32 %v3404, %v3404
  %v3413 = vmul.f32 %v3405, %v3405
  %v3414 = vmul.f32 %v3406, %v3406
  %v3415 = vsub.f32 %v3407, %v3411
  %v3416 = vsub.f32 %v3408, %v3412
  %v3417 = vsub.f32 %v3409, %v3413
  %v3418 = vsub.f32 %v3410, %v3414
  %v3419 = vmax.f32 %v3415, 0.0
  %v3420 = vmax.f32 %v3416, 0.0
  %v3421 = vmax.f32 %v3417, 0.0
  %v3422 = vmax.f32 %v3418, 0.0
  %v3423 = vadd.f32 %v3419, 1e-05
  %v3424 = vadd.f32 %v3420, 1e-05
  %v3425 = vadd.f32 %v3421, 1e-05
  %v3426 = vadd.f32 %v3422, 1e-05
  %v3427 = vrsqrt.pop %v3423
  %v3428 = vrsqrt.pop %v3424
  %v3429 = vrsqrt.pop %v3425
  %v3430 = vrsqrt.pop %v3426
  %3435 = vrot.lane.b32.xlu0 %v3427, 70
  %v3436 = vpop.permute.xlu0 %3435
  %3437 = vrot.lane.b32.xlu0 %v3428, 70
  %v3438 = vpop.permute.xlu0 %3437
  %3439 = vrot.lane.b32.xlu0 %v3429, 70
  %v3440 = vpop.permute.xlu0 %3439
  %3441 = vrot.lane.b32.xlu0 %v3430, 70
  %v3442 = vpop.permute.xlu0 %3441
  %v3447 = vmul.f32 %v11, %v3436
  %v3448 = vmul.f32 %v12, %v3438
  %v3449 = vmul.f32 %v13, %v3440
  %v3450 = vmul.f32 %v14, %v3442
  %3455 = vrot.lane.b32.xlu0 %v3447, 58
  %v3456 = vpop.permute.xlu0 %3455
  %3457 = vrot.lane.b32.xlu0 %v3448, 58
  %v3458 = vpop.permute.xlu0 %3457
  %3459 = vrot.lane.b32.xlu0 %v3449, 58
  %v3460 = vpop.permute.xlu0 %3459
  %3461 = vrot.lane.b32.xlu0 %v3450, 58
  %v3462 = vpop.permute.xlu0 %3461
  %v3467 = vmul.f32 %v3403, %v3456
  %v3468 = vmul.f32 %v3404, %v3458
  %v3469 = vmul.f32 %v3405, %v3460
  %v3470 = vmul.f32 %v3406, %v3462
  %3475 = vrot.lane.b32.xlu0 %v3467, 71
  %v3476 = vpop.permute.xlu0 %3475
  %3477 = vrot.lane.b32.xlu0 %v3468, 71
  %v3478 = vpop.permute.xlu0 %3477
  %3479 = vrot.lane.b32.xlu0 %v3469, 71
  %v3480 = vpop.permute.xlu0 %3479
  %3481 = vrot.lane.b32.xlu0 %v3470, 71
  %v3482 = vpop.permute.xlu0 %3481
  %v3487 = vsub.f32 %v11, %v3476
  %v3488 = vsub.f32 %v12, %v3478
  %v3489 = vsub.f32 %v13, %v3480
  %v3490 = vsub.f32 %v14, %v3482
  %3491 = vset.pattern.permute.xlu0 70
  %3492 = vperm.xlu0 %3491, %v3447
  %v3493 = vpop.permute.xlu0 %3492
  %3495 = vset.pattern.permute.xlu0 70
  %3496 = vperm.xlu0 %3495, %v3448
  %v3497 = vpop.permute.xlu0 %3496
  %3499 = vset.pattern.permute.xlu0 70
  %3500 = vperm.xlu0 %3499, %v3449
  %v3501 = vpop.permute.xlu0 %3500
  %3503 = vset.pattern.permute.xlu0 70
  %3504 = vperm.xlu0 %3503, %v3450
  %v3505 = vpop.permute.xlu0 %3504
  %v3507 = vmul.f32 %v1600, %v3493
  %v3508 = vmul.f32 %v1602, %v3493
  %v3509 = vmul.f32 %v1689, %v3493
  %v3510 = vmul.f32 %v1691, %v3493
  %v3511 = vmul.f32 %v1606, %v3497
  %v3512 = vmul.f32 %v1608, %v3497
  %v3513 = vmul.f32 %v1695, %v3497
  %v3514 = vmul.f32 %v1697, %v3497
  %v3515 = vmul.f32 %v1612, %v3501
  %v3516 = vmul.f32 %v1614, %v3501
  %v3517 = vmul.f32 %v1701, %v3501
  %v3518 = vmul.f32 %v1703, %v3501
  %v3519 = vmul.f32 %v1618, %v3505
  %v3520 = vmul.f32 %v1620, %v3505
  %v3521 = vmul.f32 %v1707, %v3505
  %v3522 = vmul.f32 %v1709, %v3505
  %3524 = vset.pattern.permute.xlu0 71
  %3525 = vperm.xlu0 %3524, %v3487
  %v3526 = vpop.permute.xlu0 %3525
  %3529 = vset.pattern.permute.xlu0 71
  %3530 = vperm.xlu0 %3529, %v3488
  %v3531 = vpop.permute.xlu0 %3530
  %3534 = vset.pattern.permute.xlu0 71
  %3535 = vperm.xlu0 %3534, %v3489
  %v3536 = vpop.permute.xlu0 %3535
  %3539 = vset.pattern.permute.xlu0 71
  %3540 = vperm.xlu0 %3539, %v3490
  %v3541 = vpop.permute.xlu0 %3540
  %v3543 = vadd.f32 %v3507, %v3526
  %v3544 = vadd.f32 %v3508, %v3526
  %v3545 = vadd.f32 %v3509, %v3526
  %v3546 = vadd.f32 %v3510, %v3526
  %v3547 = vadd.f32 %v3511, %v3531
  %v3548 = vadd.f32 %v3512, %v3531
  %v3549 = vadd.f32 %v3513, %v3531
  %v3550 = vadd.f32 %v3514, %v3531
  %v3551 = vadd.f32 %v3515, %v3536
  %v3552 = vadd.f32 %v3516, %v3536
  %v3553 = vadd.f32 %v3517, %v3536
  %v3554 = vadd.f32 %v3518, %v3536
  %v3555 = vadd.f32 %v3519, %v3541
  %v3556 = vadd.f32 %v3520, %v3541
  %v3557 = vadd.f32 %v3521, %v3541
  %v3558 = vadd.f32 %v3522, %v3541
  %v3559 = vmax.f32 %v3543, 0.0
  %v3560 = vmax.f32 %v3544, 0.0
  %v3561 = vmax.f32 %v3545, 0.0
  %v3562 = vmax.f32 %v3546, 0.0
  %v3563 = vmax.f32 %v3547, 0.0
  %v3564 = vmax.f32 %v3548, 0.0
  %v3565 = vmax.f32 %v3549, 0.0
  %v3566 = vmax.f32 %v3550, 0.0
  %v3567 = vmax.f32 %v3551, 0.0
  %v3568 = vmax.f32 %v3552, 0.0
  %v3569 = vmax.f32 %v3553, 0.0
  %v3570 = vmax.f32 %v3554, 0.0
  %v3571 = vmax.f32 %v3555, 0.0
  %v3572 = vmax.f32 %v3556, 0.0
  %v3573 = vmax.f32 %v3557, 0.0
  %v3574 = vmax.f32 %v3558, 0.0
  %3575 = vrot.lane.b32.xlu0 %v11, 108
  %v3576 = vpop.permute.xlu0 %3575
  %3577 = vrot.lane.b32.xlu0 %v12, 108
  %v3578 = vpop.permute.xlu0 %3577
  %vm3579 = vcmask 261120
  %v3580 = vsel %vm3579, %v3576, 0
  %v3582 = vsel %vm3579, %v3578, 0
  %3584 = vmatprep.subr.mxu0 %v3560
  %3585 = vmatpush1.msra.mxu0 %v3559
  %3586 = vmatprep.subr.mxu0 %v3564
  %3587 = vmatpush1.msra.mxu0 %v3563
  %3588 = vmatprep.subr.mxu0 %v3568
  %3589 = vmatpush1.msra.mxu0 %v3567
  %3590 = vmatprep.subr.mxu0 %v3572
  %3591 = vmatpush1.msra.mxu0 %v3571
  %3592 = vmatprep.subr.mxu0 0.0
  %3593 = vmatpush1.msra.mxu0 0.0
  %3594 = vmatprep.subr.mxu0 0.0
  %3595 = vmatpush1.msra.mxu0 0.0
  %3596 = vmatprep.subr.mxu0 0.0
  %3597 = vmatpush1.msra.mxu0 0.0
  %3598 = vmatprep.subr.mxu0 0.0
  %3599 = vmatpush1.msra.mxu0 0.0
  %3600 = vmatprep.subr.mxu0 0.0
  %3601 = vmatpush1.msra.mxu0 0.0
  %3602 = vmatprep.subr.mxu0 0.0
  %3603 = vmatpush1.msra.mxu0 0.0
  %3604 = vmatprep.subr.mxu0 0.0
  %3605 = vmatpush1.msra.mxu0 0.0
  %3606 = vmatprep.subr.mxu0 0.0
  %3607 = vmatpush1.msra.mxu0 0.0
  %3608 = vmatprep.subr.mxu0 0.0
  %3609 = vmatpush1.msra.mxu0 0.0
  %3610 = vmatprep.subr.mxu0 0.0
  %3611 = vmatpush1.msra.mxu0 0.0
  %3612 = vmatprep.subr.mxu0 0.0
  %3613 = vmatpush1.msra.mxu0 0.0
  %3614 = vmatprep.subr.mxu0 0.0
  %3615 = vmatpush1.msra.mxu0 0.0
  %3616 = vmatprep.subr.mxu0 0.0
  %3617 = vmatpush1.msra.mxu0 0.0
  %3618 = vmatprep.subr.mxu0 0.0
  %3619 = vmatpush1.msra.mxu0 0.0
  %3620 = vmatprep.subr.mxu0 0.0
  %3621 = vmatpush1.msra.mxu0 0.0
  %3622 = vmatprep.subr.mxu0 0.0
  %3623 = vmatpush1.msra.mxu0 0.0
  %3624 = vmatprep.subr.mxu0 0.0
  %3625 = vmatpush1.msra.mxu0 0.0
  %3626 = vmatprep.subr.mxu0 0.0
  %3627 = vmatpush1.msra.mxu0 0.0
  %3628 = vmatprep.subr.mxu0 0.0
  %3629 = vmatpush1.msra.mxu0 0.0
  %3630 = vmatprep.subr.mxu0 0.0
  %3631 = vmatpush1.msra.mxu0 0.0
  %3632 = vmatprep.subr.mxu0 0.0
  %3633 = vmatpush1.msra.mxu0 0.0
  %3634 = vmatprep.subr.mxu0 0.0
  %3635 = vmatpush1.msra.mxu0 0.0
  %3636 = vmatprep.subr.mxu0 0.0
  %3637 = vmatpush1.msra.mxu0 0.0
  %3638 = vmatprep.subr.mxu0 0.0
  %3639 = vmatpush1.msra.mxu0 0.0
  %3640 = vmatprep.subr.mxu0 0.0
  %3641 = vmatpush1.msra.mxu0 0.0
  %3642 = vmatprep.subr.mxu0 0.0
  %3643 = vmatpush1.msra.mxu0 0.0
  %3644 = vmatprep.subr.mxu0 0.0
  %3645 = vmatpush1.msra.mxu0 0.0
  %3646 = vmatprep.subr.mxu0 0.0
  %3647 = vmatpush1.msra.mxu0 0.0
  %3648 = vmatprep.mubr.f32.mxu0 0.0
  %3649 = vmatmul.mubr.f32.gmra.mrb[0].mxu0 %v3580
  %v3650 = vpop.f32.mrb[0].mxu0
  %v3651 = vadd.f32 0.0, %v3650
  %v3652 = vpop.f32.mrb[0].mxu0
  %v3653 = vadd.f32 0.0, %v3652
  %3654 = vmatprep.mubr.f32.mxu0 0.0
  %3655 = vmatmul.mubr.f32.gmra.mrb[0].mxu0 %v3582
  %v3656 = vpop.f32.mrb[0].mxu0
  %v3657 = vadd.f32 0.0, %v3656
  %v3658 = vpop.f32.mrb[0].mxu0
  %v3659 = vadd.f32 0.0, %v3658
  %3660 = vdwg.mxu0
  %3661 = vmatprep.subr.mxu0 %v3562
  %3662 = vmatpush1.msra.mxu0 %v3561
  %3663 = vmatprep.subr.mxu0 %v3566
  %3664 = vmatpush1.msra.mxu0 %v3565
  %3665 = vmatprep.subr.mxu0 %v3570
  %3666 = vmatpush1.msra.mxu0 %v3569
  %3667 = vmatprep.subr.mxu0 %v3574
  %3668 = vmatpush1.msra.mxu0 %v3573
  %3669 = vmatprep.subr.mxu0 0.0
  %3670 = vmatpush1.msra.mxu0 0.0
  %3671 = vmatprep.subr.mxu0 0.0
  %3672 = vmatpush1.msra.mxu0 0.0
  %3673 = vmatprep.subr.mxu0 0.0
  %3674 = vmatpush1.msra.mxu0 0.0
  %3675 = vmatprep.subr.mxu0 0.0
  %3676 = vmatpush1.msra.mxu0 0.0
  %3677 = vmatprep.subr.mxu0 0.0
  %3678 = vmatpush1.msra.mxu0 0.0
  %3679 = vmatprep.subr.mxu0 0.0
  %3680 = vmatpush1.msra.mxu0 0.0
  %3681 = vmatprep.subr.mxu0 0.0
  %3682 = vmatpush1.msra.mxu0 0.0
  %3683 = vmatprep.subr.mxu0 0.0
  %3684 = vmatpush1.msra.mxu0 0.0
  %3685 = vmatprep.subr.mxu0 0.0
  %3686 = vmatpush1.msra.mxu0 0.0
  %3687 = vmatprep.subr.mxu0 0.0
  %3688 = vmatpush1.msra.mxu0 0.0
  %3689 = vmatprep.subr.mxu0 0.0
  %3690 = vmatpush1.msra.mxu0 0.0
  %3691 = vmatprep.subr.mxu0 0.0
  %3692 = vmatpush1.msra.mxu0 0.0
  %3693 = vmatprep.subr.mxu0 0.0
  %3694 = vmatpush1.msra.mxu0 0.0
  %3695 = vmatprep.subr.mxu0 0.0
  %3696 = vmatpush1.msra.mxu0 0.0
  %3697 = vmatprep.subr.mxu0 0.0
  %3698 = vmatpush1.msra.mxu0 0.0
  %3699 = vmatprep.subr.mxu0 0.0
  %3700 = vmatpush1.msra.mxu0 0.0
  %3701 = vmatprep.subr.mxu0 0.0
  %3702 = vmatpush1.msra.mxu0 0.0
  %3703 = vmatprep.subr.mxu0 0.0
  %3704 = vmatpush1.msra.mxu0 0.0
  %3705 = vmatprep.subr.mxu0 0.0
  %3706 = vmatpush1.msra.mxu0 0.0
  %3707 = vmatprep.subr.mxu0 0.0
  %3708 = vmatpush1.msra.mxu0 0.0
  %3709 = vmatprep.subr.mxu0 0.0
  %3710 = vmatpush1.msra.mxu0 0.0
  %3711 = vmatprep.subr.mxu0 0.0
  %3712 = vmatpush1.msra.mxu0 0.0
  %3713 = vmatprep.subr.mxu0 0.0
  %3714 = vmatpush1.msra.mxu0 0.0
  %3715 = vmatprep.subr.mxu0 0.0
  %3716 = vmatpush1.msra.mxu0 0.0
  %3717 = vmatprep.subr.mxu0 0.0
  %3718 = vmatpush1.msra.mxu0 0.0
  %3719 = vmatprep.subr.mxu0 0.0
  %3720 = vmatpush1.msra.mxu0 0.0
  %3721 = vmatprep.subr.mxu0 0.0
  %3722 = vmatpush1.msra.mxu0 0.0
  %3723 = vmatprep.subr.mxu0 0.0
  %3724 = vmatpush1.msra.mxu0 0.0
  %3725 = vmatprep.mubr.f32.mxu0 0.0
  %3726 = vmatmul.mubr.f32.gmra.mrb[0].mxu0 %v3580
  %v3727 = vpop.f32.mrb[0].mxu0
  %v3728 = vadd.f32 0.0, %v3727
  %v3729 = vpop.f32.mrb[0].mxu0
  %v3730 = vadd.f32 0.0, %v3729
  %3731 = vmatprep.mubr.f32.mxu0 0.0
  %3732 = vmatmul.mubr.f32.gmra.mrb[0].mxu0 %v3582
  %v3733 = vpop.f32.mrb[0].mxu0
  %v3734 = vadd.f32 0.0, %v3733
  %v3735 = vpop.f32.mrb[0].mxu0
  %v3736 = vadd.f32 0.0, %v3735
  %3737 = vdwg.mxu0
  %v3738 = vmul.f32 %v3651, %v3651
  %v3739 = vmul.f32 %v3653, %v3653
  %v3740 = vmul.f32 %v3728, %v3728
  %v3741 = vmul.f32 %v3730, %v3730
  %v3742 = vmul.f32 %v3657, %v3657
  %v3743 = vmul.f32 %v3659, %v3659
  %v3744 = vmul.f32 %v3734, %v3734
  %v3745 = vmul.f32 %v3736, %v3736
  %3746 = vmatprep.subr.mxu0 0.0
  %3747 = vmatpush1.msra.mxu0 1.0
  %3748 = vmatprep.subr.mxu0 0.0
  %3749 = vmatpush1.msra.mxu0 1.0
  %3750 = vmatprep.subr.mxu0 0.0
  %3751 = vmatpush1.msra.mxu0 1.0
  %3752 = vmatprep.subr.mxu0 0.0
  %3753 = vmatpush1.msra.mxu0 1.0
  %3754 = vmatprep.subr.mxu0 0.0
  %3755 = vmatpush1.msra.mxu0 1.0
  %3756 = vmatprep.subr.mxu0 0.0
  %3757 = vmatpush1.msra.mxu0 1.0
  %3758 = vmatprep.subr.mxu0 0.0
  %3759 = vmatpush1.msra.mxu0 1.0
  %3760 = vmatprep.subr.mxu0 0.0
  %3761 = vmatpush1.msra.mxu0 1.0
  %3762 = vmatprep.subr.mxu0 0.0
  %3763 = vmatpush1.msra.mxu0 1.0
  %3764 = vmatprep.subr.mxu0 0.0
  %3765 = vmatpush1.msra.mxu0 1.0
  %3766 = vmatprep.subr.mxu0 0.0
  %3767 = vmatpush1.msra.mxu0 1.0
  %3768 = vmatprep.subr.mxu0 0.0
  %3769 = vmatpush1.msra.mxu0 1.0
  %3770 = vmatprep.subr.mxu0 0.0
  %3771 = vmatpush1.msra.mxu0 1.0
  %3772 = vmatprep.subr.mxu0 0.0
  %3773 = vmatpush1.msra.mxu0 1.0
  %3774 = vmatprep.subr.mxu0 0.0
  %3775 = vmatpush1.msra.mxu0 1.0
  %3776 = vmatprep.subr.mxu0 0.0
  %3777 = vmatpush1.msra.mxu0 1.0
  %3778 = vmatprep.subr.mxu0 0.0
  %3779 = vmatpush1.msra.mxu0 1.0
  %3780 = vmatprep.subr.mxu0 0.0
  %3781 = vmatpush1.msra.mxu0 1.0
  %3782 = vmatprep.subr.mxu0 0.0
  %3783 = vmatpush1.msra.mxu0 1.0
  %3784 = vmatprep.subr.mxu0 0.0
  %3785 = vmatpush1.msra.mxu0 1.0
  %3786 = vmatprep.subr.mxu0 0.0
  %3787 = vmatpush1.msra.mxu0 1.0
  %3788 = vmatprep.subr.mxu0 0.0
  %3789 = vmatpush1.msra.mxu0 1.0
  %3790 = vmatprep.subr.mxu0 0.0
  %3791 = vmatpush1.msra.mxu0 1.0
  %3792 = vmatprep.subr.mxu0 0.0
  %3793 = vmatpush1.msra.mxu0 1.0
  %3794 = vmatprep.subr.mxu0 0.0
  %3795 = vmatpush1.msra.mxu0 1.0
  %3796 = vmatprep.subr.mxu0 0.0
  %3797 = vmatpush1.msra.mxu0 1.0
  %3798 = vmatprep.subr.mxu0 0.0
  %3799 = vmatpush1.msra.mxu0 1.0
  %3800 = vmatprep.subr.mxu0 0.0
  %3801 = vmatpush1.msra.mxu0 1.0
  %3802 = vmatprep.subr.mxu0 0.0
  %3803 = vmatpush1.msra.mxu0 1.0
  %3804 = vmatprep.subr.mxu0 0.0
  %3805 = vmatpush1.msra.mxu0 1.0
  %3806 = vmatprep.subr.mxu0 0.0
  %3807 = vmatpush1.msra.mxu0 1.0
  %3808 = vmatprep.subr.mxu0 0.0
  %3809 = vmatpush1.msra.mxu0 1.0
  %v3810 = vand.u32 %v3653, 4294901760
  %v3811 = vsub.f32 %v3653, %v3810
  %v3812 = vand.u32 %v3811, 4294901760
  %v3813 = vsub.f32 %v3811, %v3812
  %v3814 = vand.u32 %v3813, 4294901760
  %3815 = vmatprep.mubr.f32.mxu0 %v3814
  %v3816 = vand.u32 %v3651, 4294901760
  %v3817 = vsub.f32 %v3651, %v3816
  %v3818 = vand.u32 %v3817, 4294901760
  %v3819 = vsub.f32 %v3817, %v3818
  %v3820 = vand.u32 %v3819, 4294901760
  %3821 = vmatmul.mubr.f32.gmra.mrb[0].mxu0 %v3820
  %v3822 = vpop.f32.mrb[0].mxu0
  %v3823 = vadd.f32 0.0, %v3822
  %v3824 = vpop.f32.mrb[0].mxu0
  %v3825 = vand.u32 %v3659, 4294901760
  %v3826 = vsub.f32 %v3659, %v3825
  %v3827 = vand.u32 %v3826, 4294901760
  %v3828 = vsub.f32 %v3826, %v3827
  %v3829 = vand.u32 %v3828, 4294901760
  %3830 = vmatprep.mubr.f32.mxu0 %v3829
  %v3831 = vand.u32 %v3657, 4294901760
  %v3832 = vsub.f32 %v3657, %v3831
  %v3833 = vand.u32 %v3832, 4294901760
  %v3834 = vsub.f32 %v3832, %v3833
  %v3835 = vand.u32 %v3834, 4294901760
  %3836 = vmatmul.mubr.f32.gmra.mrb[0].mxu0 %v3835
  %v3837 = vpop.f32.mrb[0].mxu0
  %v3838 = vadd.f32 0.0, %v3837
  %v3839 = vpop.f32.mrb[0].mxu0
  %v3840 = vand.u32 %v3739, 4294901760
  %v3841 = vsub.f32 %v3739, %v3840
  %v3842 = vand.u32 %v3841, 4294901760
  %v3843 = vsub.f32 %v3841, %v3842
  %v3844 = vand.u32 %v3843, 4294901760
  %3845 = vmatprep.mubr.f32.mxu0 %v3844
  %v3846 = vand.u32 %v3738, 4294901760
  %v3847 = vsub.f32 %v3738, %v3846
  %v3848 = vand.u32 %v3847, 4294901760
  %v3849 = vsub.f32 %v3847, %v3848
  %v3850 = vand.u32 %v3849, 4294901760
  %3851 = vmatmul.mubr.f32.gmra.mrb[0].mxu0 %v3850
  %v3852 = vpop.f32.mrb[0].mxu0
  %v3853 = vadd.f32 0.0, %v3852
  %v3854 = vpop.f32.mrb[0].mxu0
  %v3855 = vand.u32 %v3743, 4294901760
  %v3856 = vsub.f32 %v3743, %v3855
  %v3857 = vand.u32 %v3856, 4294901760
  %v3858 = vsub.f32 %v3856, %v3857
  %v3859 = vand.u32 %v3858, 4294901760
  %3860 = vmatprep.mubr.f32.mxu0 %v3859
  %v3861 = vand.u32 %v3742, 4294901760
  %v3862 = vsub.f32 %v3742, %v3861
  %v3863 = vand.u32 %v3862, 4294901760
  %v3864 = vsub.f32 %v3862, %v3863
  %v3865 = vand.u32 %v3864, 4294901760
  %3866 = vmatmul.mubr.f32.gmra.mrb[0].mxu0 %v3865
  %v3867 = vpop.f32.mrb[0].mxu0
  %v3868 = vadd.f32 0.0, %v3867
  %v3869 = vpop.f32.mrb[0].mxu0
  %3870 = vdwg.mxu0
  %3871 = vmatprep.subr.mxu0 0.0
  %3872 = vmatpush1.msra.mxu0 0.0
  %3873 = vmatprep.subr.mxu0 0.0
  %3874 = vmatpush1.msra.mxu0 0.0
  %3875 = vmatprep.subr.mxu0 0.0
  %3876 = vmatpush1.msra.mxu0 0.0
  %3877 = vmatprep.subr.mxu0 0.0
  %3878 = vmatpush1.msra.mxu0 0.0
  %3879 = vmatprep.subr.mxu0 0.0
  %3880 = vmatpush1.msra.mxu0 0.0
  %3881 = vmatprep.subr.mxu0 0.0
  %3882 = vmatpush1.msra.mxu0 0.0
  %3883 = vmatprep.subr.mxu0 0.0
  %3884 = vmatpush1.msra.mxu0 0.0
  %3885 = vmatprep.subr.mxu0 0.0
  %3886 = vmatpush1.msra.mxu0 0.0
  %3887 = vmatprep.subr.mxu0 0.0
  %3888 = vmatpush1.msra.mxu0 0.0
  %3889 = vmatprep.subr.mxu0 0.0
  %3890 = vmatpush1.msra.mxu0 0.0
  %3891 = vmatprep.subr.mxu0 0.0
  %3892 = vmatpush1.msra.mxu0 0.0
  %3893 = vmatprep.subr.mxu0 0.0
  %3894 = vmatpush1.msra.mxu0 0.0
  %3895 = vmatprep.subr.mxu0 0.0
  %3896 = vmatpush1.msra.mxu0 0.0
  %3897 = vmatprep.subr.mxu0 0.0
  %3898 = vmatpush1.msra.mxu0 0.0
  %3899 = vmatprep.subr.mxu0 0.0
  %3900 = vmatpush1.msra.mxu0 0.0
  %3901 = vmatprep.subr.mxu0 0.0
  %3902 = vmatpush1.msra.mxu0 0.0
  %3903 = vmatprep.subr.mxu0 0.0
  %3904 = vmatpush1.msra.mxu0 0.0
  %3905 = vmatprep.subr.mxu0 0.0
  %3906 = vmatpush1.msra.mxu0 0.0
  %3907 = vmatprep.subr.mxu0 0.0
  %3908 = vmatpush1.msra.mxu0 0.0
  %3909 = vmatprep.subr.mxu0 0.0
  %3910 = vmatpush1.msra.mxu0 0.0
  %3911 = vmatprep.subr.mxu0 0.0
  %3912 = vmatpush1.msra.mxu0 0.0
  %3913 = vmatprep.subr.mxu0 0.0
  %3914 = vmatpush1.msra.mxu0 0.0
  %3915 = vmatprep.subr.mxu0 0.0
  %3916 = vmatpush1.msra.mxu0 0.0
  %3917 = vmatprep.subr.mxu0 0.0
  %3918 = vmatpush1.msra.mxu0 0.0
  %3919 = vmatprep.subr.mxu0 0.0
  %3920 = vmatpush1.msra.mxu0 0.0
  %3921 = vmatprep.subr.mxu0 0.0
  %3922 = vmatpush1.msra.mxu0 0.0
  %3923 = vmatprep.subr.mxu0 0.0
  %3924 = vmatpush1.msra.mxu0 0.0
  %3925 = vmatprep.subr.mxu0 0.0
  %3926 = vmatpush1.msra.mxu0 0.0
  %3927 = vmatprep.subr.mxu0 0.0
  %3928 = vmatpush1.msra.mxu0 0.0
  %3929 = vmatprep.subr.mxu0 0.0
  %3930 = vmatpush1.msra.mxu0 0.0
  %3931 = vmatprep.subr.mxu0 0.0
  %3932 = vmatpush1.msra.mxu0 0.0
  %3933 = vmatprep.subr.mxu0 0.0
  %3934 = vmatpush1.msra.mxu0 0.0
  %v3935 = vand.u32 %v3653, 4294901760
  %3936 = vmatprep.mubr.f32.mxu0 %v3935
  %v3937 = vand.u32 %v3651, 4294901760
  %3938 = vmatmul.mubr.f32.gmra.mrb[0].mxu0 %v3937
  %v3939 = vpop.f32.mrb[0].mxu0
  %v3940 = vadd.f32 %v3823, %v3939
  %v3941 = vpop.f32.mrb[0].mxu0
  %v3942 = vand.u32 %v3659, 4294901760
  %3943 = vmatprep.mubr.f32.mxu0 %v3942
  %v3944 = vand.u32 %v3657, 4294901760
  %3945 = vmatmul.mubr.f32.gmra.mrb[0].mxu0 %v3944
  %v3946 = vpop.f32.mrb[0].mxu0
  %v3947 = vadd.f32 %v3838, %v3946
  %v3948 = vpop.f32.mrb[0].mxu0
  %v3949 = vand.u32 %v3739, 4294901760
  %3950 = vmatprep.mubr.f32.mxu0 %v3949
  %v3951 = vand.u32 %v3738, 4294901760
  %3952 = vmatmul.mubr.f32.gmra.mrb[0].mxu0 %v3951
  %v3953 = vpop.f32.mrb[0].mxu0
  %v3954 = vadd.f32 %v3853, %v3953
  %v3955 = vpop.f32.mrb[0].mxu0
  %v3956 = vand.u32 %v3743, 4294901760
  %3957 = vmatprep.mubr.f32.mxu0 %v3956
  %v3958 = vand.u32 %v3742, 4294901760
  %3959 = vmatmul.mubr.f32.gmra.mrb[0].mxu0 %v3958
  %v3960 = vpop.f32.mrb[0].mxu0
  %v3961 = vadd.f32 %v3868, %v3960
  %v3962 = vpop.f32.mrb[0].mxu0
  %3963 = vdwg.mxu0
  %3964 = vmatprep.subr.mxu0 0.0
  %3965 = vmatpush1.msra.mxu0 0.0
  %3966 = vmatprep.subr.mxu0 0.0
  %3967 = vmatpush1.msra.mxu0 0.0
  %3968 = vmatprep.subr.mxu0 0.0
  %3969 = vmatpush1.msra.mxu0 0.0
  %3970 = vmatprep.subr.mxu0 0.0
  %3971 = vmatpush1.msra.mxu0 0.0
  %3972 = vmatprep.subr.mxu0 0.0
  %3973 = vmatpush1.msra.mxu0 0.0
  %3974 = vmatprep.subr.mxu0 0.0
  %3975 = vmatpush1.msra.mxu0 0.0
  %3976 = vmatprep.subr.mxu0 0.0
  %3977 = vmatpush1.msra.mxu0 0.0
  %3978 = vmatprep.subr.mxu0 0.0
  %3979 = vmatpush1.msra.mxu0 0.0
  %3980 = vmatprep.subr.mxu0 0.0
  %3981 = vmatpush1.msra.mxu0 0.0
  %3982 = vmatprep.subr.mxu0 0.0
  %3983 = vmatpush1.msra.mxu0 0.0
  %3984 = vmatprep.subr.mxu0 0.0
  %3985 = vmatpush1.msra.mxu0 0.0
  %3986 = vmatprep.subr.mxu0 0.0
  %3987 = vmatpush1.msra.mxu0 0.0
  %3988 = vmatprep.subr.mxu0 0.0
  %3989 = vmatpush1.msra.mxu0 0.0
  %3990 = vmatprep.subr.mxu0 0.0
  %3991 = vmatpush1.msra.mxu0 0.0
  %3992 = vmatprep.subr.mxu0 0.0
  %3993 = vmatpush1.msra.mxu0 0.0
  %3994 = vmatprep.subr.mxu0 0.0
  %3995 = vmatpush1.msra.mxu0 0.0
  %3996 = vmatprep.subr.mxu0 0.0
  %3997 = vmatpush1.msra.mxu0 0.0
  %3998 = vmatprep.subr.mxu0 0.0
  %3999 = vmatpush1.msra.mxu0 0.0
  %4000 = vmatprep.subr.mxu0 0.0
  %4001 = vmatpush1.msra.mxu0 0.0
  %4002 = vmatprep.subr.mxu0 0.0
  %4003 = vmatpush1.msra.mxu0 0.0
  %4004 = vmatprep.subr.mxu0 0.0
  %4005 = vmatpush1.msra.mxu0 0.0
  %4006 = vmatprep.subr.mxu0 0.0
  %4007 = vmatpush1.msra.mxu0 0.0
  %4008 = vmatprep.subr.mxu0 0.0
  %4009 = vmatpush1.msra.mxu0 0.0
  %4010 = vmatprep.subr.mxu0 0.0
  %4011 = vmatpush1.msra.mxu0 0.0
  %4012 = vmatprep.subr.mxu0 0.0
  %4013 = vmatpush1.msra.mxu0 0.0
  %4014 = vmatprep.subr.mxu0 0.0
  %4015 = vmatpush1.msra.mxu0 0.0
  %4016 = vmatprep.subr.mxu0 0.0
  %4017 = vmatpush1.msra.mxu0 0.0
  %4018 = vmatprep.subr.mxu0 0.0
  %4019 = vmatpush1.msra.mxu0 0.0
  %4020 = vmatprep.subr.mxu0 0.0
  %4021 = vmatpush1.msra.mxu0 0.0
  %4022 = vmatprep.subr.mxu0 0.0
  %4023 = vmatpush1.msra.mxu0 0.0
  %4024 = vmatprep.subr.mxu0 0.0
  %4025 = vmatpush1.msra.mxu0 0.0
  %4026 = vmatprep.subr.mxu0 0.0
  %4027 = vmatpush1.msra.mxu0 0.0
  %v4028 = vand.u32 %v3653, 4294901760
  %v4029 = vsub.f32 %v3653, %v4028
  %4030 = vmatprep.mubr.f32.mxu0 %v4029
  %v4031 = vand.u32 %v3651, 4294901760
  %v4032 = vsub.f32 %v3651, %v4031
  %4033 = vmatmul.mubr.f32.gmra.mrb[0].mxu0 %v4032
  %v4034 = vpop.f32.mrb[0].mxu0
  %v4035 = vadd.f32 %v3940, %v4034
  %v4036 = vpop.f32.mrb[0].mxu0
  %v4037 = vand.u32 %v3659, 4294901760
  %v4038 = vsub.f32 %v3659, %v4037
  %4039 = vmatprep.mubr.f32.mxu0 %v4038
  %v4040 = vand.u32 %v3657, 4294901760
  %v4041 = vsub.f32 %v3657, %v4040
  %4042 = vmatmul.mubr.f32.gmra.mrb[0].mxu0 %v4041
  %v4043 = vpop.f32.mrb[0].mxu0
  %v4044 = vadd.f32 %v3947, %v4043
  %v4045 = vpop.f32.mrb[0].mxu0
  %v4046 = vand.u32 %v3739, 4294901760
  %v4047 = vsub.f32 %v3739, %v4046
  %4048 = vmatprep.mubr.f32.mxu0 %v4047
  %v4049 = vand.u32 %v3738, 4294901760
  %v4050 = vsub.f32 %v3738, %v4049
  %4051 = vmatmul.mubr.f32.gmra.mrb[0].mxu0 %v4050
  %v4052 = vpop.f32.mrb[0].mxu0
  %v4053 = vadd.f32 %v3954, %v4052
  %v4054 = vpop.f32.mrb[0].mxu0
  %v4055 = vand.u32 %v3743, 4294901760
  %v4056 = vsub.f32 %v3743, %v4055
  %4057 = vmatprep.mubr.f32.mxu0 %v4056
  %v4058 = vand.u32 %v3742, 4294901760
  %v4059 = vsub.f32 %v3742, %v4058
  %4060 = vmatmul.mubr.f32.gmra.mrb[0].mxu0 %v4059
  %v4061 = vpop.f32.mrb[0].mxu0
  %v4062 = vadd.f32 %v3961, %v4061
  %v4063 = vpop.f32.mrb[0].mxu0
  %4064 = vdwg.mxu0
  %4065 = vmatprep.subr.mxu0 0.0
  %4066 = vmatpush1.msra.mxu0 1.0
  %4067 = vmatprep.subr.mxu0 0.0
  %4068 = vmatpush1.msra.mxu0 1.0
  %4069 = vmatprep.subr.mxu0 0.0
  %4070 = vmatpush1.msra.mxu0 1.0
  %4071 = vmatprep.subr.mxu0 0.0
  %4072 = vmatpush1.msra.mxu0 1.0
  %4073 = vmatprep.subr.mxu0 0.0
  %4074 = vmatpush1.msra.mxu0 1.0
  %4075 = vmatprep.subr.mxu0 0.0
  %4076 = vmatpush1.msra.mxu0 1.0
  %4077 = vmatprep.subr.mxu0 0.0
  %4078 = vmatpush1.msra.mxu0 1.0
  %4079 = vmatprep.subr.mxu0 0.0
  %4080 = vmatpush1.msra.mxu0 1.0
  %4081 = vmatprep.subr.mxu0 0.0
  %4082 = vmatpush1.msra.mxu0 1.0
  %4083 = vmatprep.subr.mxu0 0.0
  %4084 = vmatpush1.msra.mxu0 1.0
  %4085 = vmatprep.subr.mxu0 0.0
  %4086 = vmatpush1.msra.mxu0 1.0
  %4087 = vmatprep.subr.mxu0 0.0
  %4088 = vmatpush1.msra.mxu0 1.0
  %4089 = vmatprep.subr.mxu0 0.0
  %4090 = vmatpush1.msra.mxu0 1.0
  %4091 = vmatprep.subr.mxu0 0.0
  %4092 = vmatpush1.msra.mxu0 1.0
  %4093 = vmatprep.subr.mxu0 0.0
  %4094 = vmatpush1.msra.mxu0 1.0
  %4095 = vmatprep.subr.mxu0 0.0
  %4096 = vmatpush1.msra.mxu0 1.0
  %4097 = vmatprep.subr.mxu0 0.0
  %4098 = vmatpush1.msra.mxu0 1.0
  %4099 = vmatprep.subr.mxu0 0.0
  %4100 = vmatpush1.msra.mxu0 1.0
  %4101 = vmatprep.subr.mxu0 0.0
  %4102 = vmatpush1.msra.mxu0 1.0
  %4103 = vmatprep.subr.mxu0 0.0
  %4104 = vmatpush1.msra.mxu0 1.0
  %4105 = vmatprep.subr.mxu0 0.0
  %4106 = vmatpush1.msra.mxu0 1.0
  %4107 = vmatprep.subr.mxu0 0.0
  %4108 = vmatpush1.msra.mxu0 1.0
  %4109 = vmatprep.subr.mxu0 0.0
  %4110 = vmatpush1.msra.mxu0 1.0
  %4111 = vmatprep.subr.mxu0 0.0
  %4112 = vmatpush1.msra.mxu0 1.0
  %4113 = vmatprep.subr.mxu0 0.0
  %4114 = vmatpush1.msra.mxu0 1.0
  %4115 = vmatprep.subr.mxu0 0.0
  %4116 = vmatpush1.msra.mxu0 1.0
  %4117 = vmatprep.subr.mxu0 0.0
  %4118 = vmatpush1.msra.mxu0 1.0
  %4119 = vmatprep.subr.mxu0 0.0
  %4120 = vmatpush1.msra.mxu0 1.0
  %4121 = vmatprep.subr.mxu0 0.0
  %4122 = vmatpush1.msra.mxu0 1.0
  %4123 = vmatprep.subr.mxu0 0.0
  %4124 = vmatpush1.msra.mxu0 1.0
  %4125 = vmatprep.subr.mxu0 0.0
  %4126 = vmatpush1.msra.mxu0 1.0
  %4127 = vmatprep.subr.mxu0 0.0
  %4128 = vmatpush1.msra.mxu0 1.0
  %v4129 = vand.u32 %v3653, 4294901760
  %v4130 = vsub.f32 %v3653, %v4129
  %v4131 = vand.u32 %v4130, 4294901760
  %4132 = vmatprep.mubr.f32.mxu0 %v4131
  %v4133 = vand.u32 %v3651, 4294901760
  %v4134 = vsub.f32 %v3651, %v4133
  %v4135 = vand.u32 %v4134, 4294901760
  %4136 = vmatmul.mubr.f32.gmra.mrb[0].mxu0 %v4135
  %v4137 = vpop.f32.mrb[0].mxu0
  %v4138 = vadd.f32 %v4035, %v4137
  %v4139 = vpop.f32.mrb[0].mxu0
  %v4140 = vand.u32 %v3659, 4294901760
  %v4141 = vsub.f32 %v3659, %v4140
  %v4142 = vand.u32 %v4141, 4294901760
  %4143 = vmatprep.mubr.f32.mxu0 %v4142
  %v4144 = vand.u32 %v3657, 4294901760
  %v4145 = vsub.f32 %v3657, %v4144
  %v4146 = vand.u32 %v4145, 4294901760
  %4147 = vmatmul.mubr.f32.gmra.mrb[0].mxu0 %v4146
  %v4148 = vpop.f32.mrb[0].mxu0
  %v4149 = vadd.f32 %v4044, %v4148
  %v4150 = vpop.f32.mrb[0].mxu0
  %v4151 = vand.u32 %v3739, 4294901760
  %v4152 = vsub.f32 %v3739, %v4151
  %v4153 = vand.u32 %v4152, 4294901760
  %4154 = vmatprep.mubr.f32.mxu0 %v4153
  %v4155 = vand.u32 %v3738, 4294901760
  %v4156 = vsub.f32 %v3738, %v4155
  %v4157 = vand.u32 %v4156, 4294901760
  %4158 = vmatmul.mubr.f32.gmra.mrb[0].mxu0 %v4157
  %v4159 = vpop.f32.mrb[0].mxu0
  %v4160 = vadd.f32 %v4053, %v4159
  %v4161 = vpop.f32.mrb[0].mxu0
  %v4162 = vand.u32 %v3743, 4294901760
  %v4163 = vsub.f32 %v3743, %v4162
  %v4164 = vand.u32 %v4163, 4294901760
  %4165 = vmatprep.mubr.f32.mxu0 %v4164
  %v4166 = vand.u32 %v3742, 4294901760
  %v4167 = vsub.f32 %v3742, %v4166
  %v4168 = vand.u32 %v4167, 4294901760
  %4169 = vmatmul.mubr.f32.gmra.mrb[0].mxu0 %v4168
  %v4170 = vpop.f32.mrb[0].mxu0
  %v4171 = vadd.f32 %v4062, %v4170
  %v4172 = vpop.f32.mrb[0].mxu0
  %4173 = vdwg.mxu0
  %4174 = vmatprep.subr.mxu0 0.0
  %4175 = vmatpush1.msra.mxu0 0.0
  %4176 = vmatprep.subr.mxu0 0.0
  %4177 = vmatpush1.msra.mxu0 0.0
  %4178 = vmatprep.subr.mxu0 0.0
  %4179 = vmatpush1.msra.mxu0 0.0
  %4180 = vmatprep.subr.mxu0 0.0
  %4181 = vmatpush1.msra.mxu0 0.0
  %4182 = vmatprep.subr.mxu0 0.0
  %4183 = vmatpush1.msra.mxu0 0.0
  %4184 = vmatprep.subr.mxu0 0.0
  %4185 = vmatpush1.msra.mxu0 0.0
  %4186 = vmatprep.subr.mxu0 0.0
  %4187 = vmatpush1.msra.mxu0 0.0
  %4188 = vmatprep.subr.mxu0 0.0
  %4189 = vmatpush1.msra.mxu0 0.0
  %4190 = vmatprep.subr.mxu0 0.0
  %4191 = vmatpush1.msra.mxu0 0.0
  %4192 = vmatprep.subr.mxu0 0.0
  %4193 = vmatpush1.msra.mxu0 0.0
  %4194 = vmatprep.subr.mxu0 0.0
  %4195 = vmatpush1.msra.mxu0 0.0
  %4196 = vmatprep.subr.mxu0 0.0
  %4197 = vmatpush1.msra.mxu0 0.0
  %4198 = vmatprep.subr.mxu0 0.0
  %4199 = vmatpush1.msra.mxu0 0.0
  %4200 = vmatprep.subr.mxu0 0.0
  %4201 = vmatpush1.msra.mxu0 0.0
  %4202 = vmatprep.subr.mxu0 0.0
  %4203 = vmatpush1.msra.mxu0 0.0
  %4204 = vmatprep.subr.mxu0 0.0
  %4205 = vmatpush1.msra.mxu0 0.0
  %4206 = vmatprep.subr.mxu0 0.0
  %4207 = vmatpush1.msra.mxu0 0.0
  %4208 = vmatprep.subr.mxu0 0.0
  %4209 = vmatpush1.msra.mxu0 0.0
  %4210 = vmatprep.subr.mxu0 0.0
  %4211 = vmatpush1.msra.mxu0 0.0
  %4212 = vmatprep.subr.mxu0 0.0
  %4213 = vmatpush1.msra.mxu0 0.0
  %4214 = vmatprep.subr.mxu0 0.0
  %4215 = vmatpush1.msra.mxu0 0.0
  %4216 = vmatprep.subr.mxu0 0.0
  %4217 = vmatpush1.msra.mxu0 0.0
  %4218 = vmatprep.subr.mxu0 0.0
  %4219 = vmatpush1.msra.mxu0 0.0
  %4220 = vmatprep.subr.mxu0 0.0
  %4221 = vmatpush1.msra.mxu0 0.0
  %4222 = vmatprep.subr.mxu0 0.0
  %4223 = vmatpush1.msra.mxu0 0.0
  %4224 = vmatprep.subr.mxu0 0.0
  %4225 = vmatpush1.msra.mxu0 0.0
  %4226 = vmatprep.subr.mxu0 0.0
  %4227 = vmatpush1.msra.mxu0 0.0
  %4228 = vmatprep.subr.mxu0 0.0
  %4229 = vmatpush1.msra.mxu0 0.0
  %4230 = vmatprep.subr.mxu0 0.0
  %4231 = vmatpush1.msra.mxu0 0.0
  %4232 = vmatprep.subr.mxu0 0.0
  %4233 = vmatpush1.msra.mxu0 0.0
  %4234 = vmatprep.subr.mxu0 0.0
  %4235 = vmatpush1.msra.mxu0 0.0
  %4236 = vmatprep.subr.mxu0 0.0
  %4237 = vmatpush1.msra.mxu0 0.0
  %v4238 = vand.u32 %v3653, 4294901760
  %4239 = vmatprep.mubr.f32.mxu0 %v4238
  %v4240 = vand.u32 %v3651, 4294901760
  %4241 = vmatmul.mubr.f32.gmra.mrb[0].mxu0 %v4240
  %v4242 = vpop.f32.mrb[0].mxu0
  %v4243 = vadd.f32 %v4138, %v4242
  %v4244 = vpop.f32.mrb[0].mxu0
  %v4245 = vand.u32 %v3659, 4294901760
  %4246 = vmatprep.mubr.f32.mxu0 %v4245
  %v4247 = vand.u32 %v3657, 4294901760
  %4248 = vmatmul.mubr.f32.gmra.mrb[0].mxu0 %v4247
  %v4249 = vpop.f32.mrb[0].mxu0
  %v4250 = vadd.f32 %v4149, %v4249
  %v4251 = vpop.f32.mrb[0].mxu0
  %v4252 = vand.u32 %v3739, 4294901760
  %4253 = vmatprep.mubr.f32.mxu0 %v4252
  %v4254 = vand.u32 %v3738, 4294901760
  %4255 = vmatmul.mubr.f32.gmra.mrb[0].mxu0 %v4254
  %v4256 = vpop.f32.mrb[0].mxu0
  %v4257 = vadd.f32 %v4160, %v4256
  %v4258 = vpop.f32.mrb[0].mxu0
  %v4259 = vand.u32 %v3743, 4294901760
  %4260 = vmatprep.mubr.f32.mxu0 %v4259
  %v4261 = vand.u32 %v3742, 4294901760
  %4262 = vmatmul.mubr.f32.gmra.mrb[0].mxu0 %v4261
  %v4263 = vpop.f32.mrb[0].mxu0
  %v4264 = vadd.f32 %v4171, %v4263
  %v4265 = vpop.f32.mrb[0].mxu0
  %4266 = vdwg.mxu0
  %4267 = vmatprep.subr.mxu0 0.0
  %4268 = vmatpush1.msra.mxu0 1.0
  %4269 = vmatprep.subr.mxu0 0.0
  %4270 = vmatpush1.msra.mxu0 1.0
  %4271 = vmatprep.subr.mxu0 0.0
  %4272 = vmatpush1.msra.mxu0 1.0
  %4273 = vmatprep.subr.mxu0 0.0
  %4274 = vmatpush1.msra.mxu0 1.0
  %4275 = vmatprep.subr.mxu0 0.0
  %4276 = vmatpush1.msra.mxu0 1.0
  %4277 = vmatprep.subr.mxu0 0.0
  %4278 = vmatpush1.msra.mxu0 1.0
  %4279 = vmatprep.subr.mxu0 0.0
  %4280 = vmatpush1.msra.mxu0 1.0
  %4281 = vmatprep.subr.mxu0 0.0
  %4282 = vmatpush1.msra.mxu0 1.0
  %4283 = vmatprep.subr.mxu0 0.0
  %4284 = vmatpush1.msra.mxu0 1.0
  %4285 = vmatprep.subr.mxu0 0.0
  %4286 = vmatpush1.msra.mxu0 1.0
  %4287 = vmatprep.subr.mxu0 0.0
  %4288 = vmatpush1.msra.mxu0 1.0
  %4289 = vmatprep.subr.mxu0 0.0
  %4290 = vmatpush1.msra.mxu0 1.0
  %4291 = vmatprep.subr.mxu0 0.0
  %4292 = vmatpush1.msra.mxu0 1.0
  %4293 = vmatprep.subr.mxu0 0.0
  %4294 = vmatpush1.msra.mxu0 1.0
  %4295 = vmatprep.subr.mxu0 0.0
  %4296 = vmatpush1.msra.mxu0 1.0
  %4297 = vmatprep.subr.mxu0 0.0
  %4298 = vmatpush1.msra.mxu0 1.0
  %4299 = vmatprep.subr.mxu0 0.0
  %4300 = vmatpush1.msra.mxu0 1.0
  %4301 = vmatprep.subr.mxu0 0.0
  %4302 = vmatpush1.msra.mxu0 1.0
  %4303 = vmatprep.subr.mxu0 0.0
  %4304 = vmatpush1.msra.mxu0 1.0
  %4305 = vmatprep.subr.mxu0 0.0
  %4306 = vmatpush1.msra.mxu0 1.0
  %4307 = vmatprep.subr.mxu0 0.0
  %4308 = vmatpush1.msra.mxu0 1.0
  %4309 = vmatprep.subr.mxu0 0.0
  %4310 = vmatpush1.msra.mxu0 1.0
  %4311 = vmatprep.subr.mxu0 0.0
  %4312 = vmatpush1.msra.mxu0 1.0
  %4313 = vmatprep.subr.mxu0 0.0
  %4314 = vmatpush1.msra.mxu0 1.0
  %4315 = vmatprep.subr.mxu0 0.0
  %4316 = vmatpush1.msra.mxu0 1.0
  %4317 = vmatprep.subr.mxu0 0.0
  %4318 = vmatpush1.msra.mxu0 1.0
  %4319 = vmatprep.subr.mxu0 0.0
  %4320 = vmatpush1.msra.mxu0 1.0
  %4321 = vmatprep.subr.mxu0 0.0
  %4322 = vmatpush1.msra.mxu0 1.0
  %4323 = vmatprep.subr.mxu0 0.0
  %4324 = vmatpush1.msra.mxu0 1.0
  %4325 = vmatprep.subr.mxu0 0.0
  %4326 = vmatpush1.msra.mxu0 1.0
  %4327 = vmatprep.subr.mxu0 0.0
  %4328 = vmatpush1.msra.mxu0 1.0
  %4329 = vmatprep.subr.mxu0 0.0
  %4330 = vmatpush1.msra.mxu0 1.0
  %v4331 = vand.u32 %v3653, 4294901760
  %4332 = vmatprep.mubr.f32.mxu0 %v4331
  %v4333 = vand.u32 %v3651, 4294901760
  %4334 = vmatmul.mubr.f32.gmra.mrb[0].mxu0 %v4333
  %v4335 = vpop.f32.mrb[0].mxu0
  %v4336 = vadd.f32 %v4243, %v4335
  %v4337 = vpop.f32.mrb[0].mxu0
  %v4338 = vand.u32 %v3659, 4294901760
  %4339 = vmatprep.mubr.f32.mxu0 %v4338
  %v4340 = vand.u32 %v3657, 4294901760
  %4341 = vmatmul.mubr.f32.gmra.mrb[0].mxu0 %v4340
  %v4342 = vpop.f32.mrb[0].mxu0
  %v4343 = vadd.f32 %v4250, %v4342
  %v4344 = vpop.f32.mrb[0].mxu0
  %v4345 = vand.u32 %v3739, 4294901760
  %4346 = vmatprep.mubr.f32.mxu0 %v4345
  %v4347 = vand.u32 %v3738, 4294901760
  %4348 = vmatmul.mubr.f32.gmra.mrb[0].mxu0 %v4347
  %v4349 = vpop.f32.mrb[0].mxu0
  %v4350 = vadd.f32 %v4257, %v4349
  %v4351 = vpop.f32.mrb[0].mxu0
  %v4352 = vand.u32 %v3743, 4294901760
  %4353 = vmatprep.mubr.f32.mxu0 %v4352
  %v4354 = vand.u32 %v3742, 4294901760
  %4355 = vmatmul.mubr.f32.gmra.mrb[0].mxu0 %v4354
  %v4356 = vpop.f32.mrb[0].mxu0
  %v4357 = vadd.f32 %v4264, %v4356
  %v4358 = vpop.f32.mrb[0].mxu0
  %4359 = vdwg.mxu0
  %4360 = vmatprep.subr.mxu0 0.0
  %4361 = vmatpush1.msra.mxu0 1.0
  %4362 = vmatprep.subr.mxu0 0.0
  %4363 = vmatpush1.msra.mxu0 1.0
  %4364 = vmatprep.subr.mxu0 0.0
  %4365 = vmatpush1.msra.mxu0 1.0
  %4366 = vmatprep.subr.mxu0 0.0
  %4367 = vmatpush1.msra.mxu0 1.0
  %4368 = vmatprep.subr.mxu0 0.0
  %4369 = vmatpush1.msra.mxu0 1.0
  %4370 = vmatprep.subr.mxu0 0.0
  %4371 = vmatpush1.msra.mxu0 1.0
  %4372 = vmatprep.subr.mxu0 0.0
  %4373 = vmatpush1.msra.mxu0 1.0
  %4374 = vmatprep.subr.mxu0 0.0
  %4375 = vmatpush1.msra.mxu0 1.0
  %4376 = vmatprep.subr.mxu0 0.0
  %4377 = vmatpush1.msra.mxu0 1.0
  %4378 = vmatprep.subr.mxu0 0.0
  %4379 = vmatpush1.msra.mxu0 1.0
  %4380 = vmatprep.subr.mxu0 0.0
  %4381 = vmatpush1.msra.mxu0 1.0
  %4382 = vmatprep.subr.mxu0 0.0
  %4383 = vmatpush1.msra.mxu0 1.0
  %4384 = vmatprep.subr.mxu0 0.0
  %4385 = vmatpush1.msra.mxu0 1.0
  %4386 = vmatprep.subr.mxu0 0.0
  %4387 = vmatpush1.msra.mxu0 1.0
  %4388 = vmatprep.subr.mxu0 0.0
  %4389 = vmatpush1.msra.mxu0 1.0
  %4390 = vmatprep.subr.mxu0 0.0
  %4391 = vmatpush1.msra.mxu0 1.0
  %4392 = vmatprep.subr.mxu0 0.0
  %4393 = vmatpush1.msra.mxu0 1.0
  %4394 = vmatprep.subr.mxu0 0.0
  %4395 = vmatpush1.msra.mxu0 1.0
  %4396 = vmatprep.subr.mxu0 0.0
  %4397 = vmatpush1.msra.mxu0 1.0
  %4398 = vmatprep.subr.mxu0 0.0
  %4399 = vmatpush1.msra.mxu0 1.0
  %4400 = vmatprep.subr.mxu0 0.0
  %4401 = vmatpush1.msra.mxu0 1.0
  %4402 = vmatprep.subr.mxu0 0.0
  %4403 = vmatpush1.msra.mxu0 1.0
  %4404 = vmatprep.subr.mxu0 0.0
  %4405 = vmatpush1.msra.mxu0 1.0
  %4406 = vmatprep.subr.mxu0 0.0
  %4407 = vmatpush1.msra.mxu0 1.0
  %4408 = vmatprep.subr.mxu0 0.0
  %4409 = vmatpush1.msra.mxu0 1.0
  %4410 = vmatprep.subr.mxu0 0.0
  %4411 = vmatpush1.msra.mxu0 1.0
  %4412 = vmatprep.subr.mxu0 0.0
  %4413 = vmatpush1.msra.mxu0 1.0
  %4414 = vmatprep.subr.mxu0 0.0
  %4415 = vmatpush1.msra.mxu0 1.0
  %4416 = vmatprep.subr.mxu0 0.0
  %4417 = vmatpush1.msra.mxu0 1.0
  %4418 = vmatprep.subr.mxu0 0.0
  %4419 = vmatpush1.msra.mxu0 1.0
  %4420 = vmatprep.subr.mxu0 0.0
  %4421 = vmatpush1.msra.mxu0 1.0
  %4422 = vmatprep.subr.mxu0 0.0
  %4423 = vmatpush1.msra.mxu0 1.0
  %v4424 = vand.u32 %v3730, 4294901760
  %v4425 = vsub.f32 %v3730, %v4424
  %v4426 = vand.u32 %v4425, 4294901760
  %v4427 = vsub.f32 %v4425, %v4426
  %v4428 = vand.u32 %v4427, 4294901760
  %4429 = vmatprep.mubr.f32.mxu0 %v4428
  %v4430 = vand.u32 %v3728, 4294901760
  %v4431 = vsub.f32 %v3728, %v4430
  %v4432 = vand.u32 %v4431, 4294901760
  %v4433 = vsub.f32 %v4431, %v4432
  %v4434 = vand.u32 %v4433, 4294901760
  %4435 = vmatmul.mubr.f32.gmra.mrb[0].mxu0 %v4434
  %v4436 = vpop.f32.mrb[0].mxu0
  %v4437 = vadd.f32 %v4336, %v4436
  %v4438 = vpop.f32.mrb[0].mxu0
  %v4439 = vand.u32 %v3736, 4294901760
  %v4440 = vsub.f32 %v3736, %v4439
  %v4441 = vand.u32 %v4440, 4294901760
  %v4442 = vsub.f32 %v4440, %v4441
  %v4443 = vand.u32 %v4442, 4294901760
  %4444 = vmatprep.mubr.f32.mxu0 %v4443
  %v4445 = vand.u32 %v3734, 4294901760
  %v4446 = vsub.f32 %v3734, %v4445
  %v4447 = vand.u32 %v4446, 4294901760
  %v4448 = vsub.f32 %v4446, %v4447
  %v4449 = vand.u32 %v4448, 4294901760
  %4450 = vmatmul.mubr.f32.gmra.mrb[0].mxu0 %v4449
  %v4451 = vpop.f32.mrb[0].mxu0
  %v4452 = vadd.f32 %v4343, %v4451
  %v4453 = vpop.f32.mrb[0].mxu0
  %v4454 = vand.u32 %v3741, 4294901760
  %v4455 = vsub.f32 %v3741, %v4454
  %v4456 = vand.u32 %v4455, 4294901760
  %v4457 = vsub.f32 %v4455, %v4456
  %v4458 = vand.u32 %v4457, 4294901760
  %4459 = vmatprep.mubr.f32.mxu0 %v4458
  %v4460 = vand.u32 %v3740, 4294901760
  %v4461 = vsub.f32 %v3740, %v4460
  %v4462 = vand.u32 %v4461, 4294901760
  %v4463 = vsub.f32 %v4461, %v4462
  %v4464 = vand.u32 %v4463, 4294901760
  %4465 = vmatmul.mubr.f32.gmra.mrb[0].mxu0 %v4464
  %v4466 = vpop.f32.mrb[0].mxu0
  %v4467 = vadd.f32 %v4350, %v4466
  %v4468 = vpop.f32.mrb[0].mxu0
  %v4469 = vand.u32 %v3745, 4294901760
  %v4470 = vsub.f32 %v3745, %v4469
  %v4471 = vand.u32 %v4470, 4294901760
  %v4472 = vsub.f32 %v4470, %v4471
  %v4473 = vand.u32 %v4472, 4294901760
  %4474 = vmatprep.mubr.f32.mxu0 %v4473
  %v4475 = vand.u32 %v3744, 4294901760
  %v4476 = vsub.f32 %v3744, %v4475
  %v4477 = vand.u32 %v4476, 4294901760
  %v4478 = vsub.f32 %v4476, %v4477
  %v4479 = vand.u32 %v4478, 4294901760
  %4480 = vmatmul.mubr.f32.gmra.mrb[0].mxu0 %v4479
  %v4481 = vpop.f32.mrb[0].mxu0
  %v4482 = vadd.f32 %v4357, %v4481
  %v4483 = vpop.f32.mrb[0].mxu0
  %4484 = vdwg.mxu0
  %4485 = vmatprep.subr.mxu0 0.0
  %4486 = vmatpush1.msra.mxu0 0.0
  %4487 = vmatprep.subr.mxu0 0.0
  %4488 = vmatpush1.msra.mxu0 0.0
  %4489 = vmatprep.subr.mxu0 0.0
  %4490 = vmatpush1.msra.mxu0 0.0
  %4491 = vmatprep.subr.mxu0 0.0
  %4492 = vmatpush1.msra.mxu0 0.0
  %4493 = vmatprep.subr.mxu0 0.0
  %4494 = vmatpush1.msra.mxu0 0.0
  %4495 = vmatprep.subr.mxu0 0.0
  %4496 = vmatpush1.msra.mxu0 0.0
  %4497 = vmatprep.subr.mxu0 0.0
  %4498 = vmatpush1.msra.mxu0 0.0
  %4499 = vmatprep.subr.mxu0 0.0
  %4500 = vmatpush1.msra.mxu0 0.0
  %4501 = vmatprep.subr.mxu0 0.0
  %4502 = vmatpush1.msra.mxu0 0.0
  %4503 = vmatprep.subr.mxu0 0.0
  %4504 = vmatpush1.msra.mxu0 0.0
  %4505 = vmatprep.subr.mxu0 0.0
  %4506 = vmatpush1.msra.mxu0 0.0
  %4507 = vmatprep.subr.mxu0 0.0
  %4508 = vmatpush1.msra.mxu0 0.0
  %4509 = vmatprep.subr.mxu0 0.0
  %4510 = vmatpush1.msra.mxu0 0.0
  %4511 = vmatprep.subr.mxu0 0.0
  %4512 = vmatpush1.msra.mxu0 0.0
  %4513 = vmatprep.subr.mxu0 0.0
  %4514 = vmatpush1.msra.mxu0 0.0
  %4515 = vmatprep.subr.mxu0 0.0
  %4516 = vmatpush1.msra.mxu0 0.0
  %4517 = vmatprep.subr.mxu0 0.0
  %4518 = vmatpush1.msra.mxu0 0.0
  %4519 = vmatprep.subr.mxu0 0.0
  %4520 = vmatpush1.msra.mxu0 0.0
  %4521 = vmatprep.subr.mxu0 0.0
  %4522 = vmatpush1.msra.mxu0 0.0
  %4523 = vmatprep.subr.mxu0 0.0
  %4524 = vmatpush1.msra.mxu0 0.0
  %4525 = vmatprep.subr.mxu0 0.0
  %4526 = vmatpush1.msra.mxu0 0.0
  %4527 = vmatprep.subr.mxu0 0.0
  %4528 = vmatpush1.msra.mxu0 0.0
  %4529 = vmatprep.subr.mxu0 0.0
  %4530 = vmatpush1.msra.mxu0 0.0
  %4531 = vmatprep.subr.mxu0 0.0
  %4532 = vmatpush1.msra.mxu0 0.0
  %4533 = vmatprep.subr.mxu0 0.0
  %4534 = vmatpush1.msra.mxu0 0.0
  %4535 = vmatprep.subr.mxu0 0.0
  %4536 = vmatpush1.msra.mxu0 0.0
  %4537 = vmatprep.subr.mxu0 0.0
  %4538 = vmatpush1.msra.mxu0 0.0
  %4539 = vmatprep.subr.mxu0 0.0
  %4540 = vmatpush1.msra.mxu0 0.0
  %4541 = vmatprep.subr.mxu0 0.0
  %4542 = vmatpush1.msra.mxu0 0.0
  %4543 = vmatprep.subr.mxu0 0.0
  %4544 = vmatpush1.msra.mxu0 0.0
  %4545 = vmatprep.subr.mxu0 0.0
  %4546 = vmatpush1.msra.mxu0 0.0
  %4547 = vmatprep.subr.mxu0 0.0
  %4548 = vmatpush1.msra.mxu0 0.0
  %v4549 = vand.u32 %v3730, 4294901760
  %4550 = vmatprep.mubr.f32.mxu0 %v4549
  %v4551 = vand.u32 %v3728, 4294901760
  %4552 = vmatmul.mubr.f32.gmra.mrb[0].mxu0 %v4551
  %v4553 = vpop.f32.mrb[0].mxu0
  %v4554 = vadd.f32 %v4437, %v4553
  %v4555 = vpop.f32.mrb[0].mxu0
  %v4556 = vand.u32 %v3736, 4294901760
  %4557 = vmatprep.mubr.f32.mxu0 %v4556
  %v4558 = vand.u32 %v3734, 4294901760
  %4559 = vmatmul.mubr.f32.gmra.mrb[0].mxu0 %v4558
  %v4560 = vpop.f32.mrb[0].mxu0
  %v4561 = vadd.f32 %v4452, %v4560
  %v4562 = vpop.f32.mrb[0].mxu0
  %v4563 = vand.u32 %v3741, 4294901760
  %4564 = vmatprep.mubr.f32.mxu0 %v4563
  %v4565 = vand.u32 %v3740, 4294901760
  %4566 = vmatmul.mubr.f32.gmra.mrb[0].mxu0 %v4565
  %v4567 = vpop.f32.mrb[0].mxu0
  %v4568 = vadd.f32 %v4467, %v4567
  %v4569 = vpop.f32.mrb[0].mxu0
  %v4570 = vand.u32 %v3745, 4294901760
  %4571 = vmatprep.mubr.f32.mxu0 %v4570
  %v4572 = vand.u32 %v3744, 4294901760
  %4573 = vmatmul.mubr.f32.gmra.mrb[0].mxu0 %v4572
  %v4574 = vpop.f32.mrb[0].mxu0
  %v4575 = vadd.f32 %v4482, %v4574
  %v4576 = vpop.f32.mrb[0].mxu0
  %4577 = vdwg.mxu0
  %4578 = vmatprep.subr.mxu0 0.0
  %4579 = vmatpush1.msra.mxu0 0.0
  %4580 = vmatprep.subr.mxu0 0.0
  %4581 = vmatpush1.msra.mxu0 0.0
  %4582 = vmatprep.subr.mxu0 0.0
  %4583 = vmatpush1.msra.mxu0 0.0
  %4584 = vmatprep.subr.mxu0 0.0
  %4585 = vmatpush1.msra.mxu0 0.0
  %4586 = vmatprep.subr.mxu0 0.0
  %4587 = vmatpush1.msra.mxu0 0.0
  %4588 = vmatprep.subr.mxu0 0.0
  %4589 = vmatpush1.msra.mxu0 0.0
  %4590 = vmatprep.subr.mxu0 0.0
  %4591 = vmatpush1.msra.mxu0 0.0
  %4592 = vmatprep.subr.mxu0 0.0
  %4593 = vmatpush1.msra.mxu0 0.0
  %4594 = vmatprep.subr.mxu0 0.0
  %4595 = vmatpush1.msra.mxu0 0.0
  %4596 = vmatprep.subr.mxu0 0.0
  %4597 = vmatpush1.msra.mxu0 0.0
  %4598 = vmatprep.subr.mxu0 0.0
  %4599 = vmatpush1.msra.mxu0 0.0
  %4600 = vmatprep.subr.mxu0 0.0
  %4601 = vmatpush1.msra.mxu0 0.0
  %4602 = vmatprep.subr.mxu0 0.0
  %4603 = vmatpush1.msra.mxu0 0.0
  %4604 = vmatprep.subr.mxu0 0.0
  %4605 = vmatpush1.msra.mxu0 0.0
  %4606 = vmatprep.subr.mxu0 0.0
  %4607 = vmatpush1.msra.mxu0 0.0
  %4608 = vmatprep.subr.mxu0 0.0
  %4609 = vmatpush1.msra.mxu0 0.0
  %4610 = vmatprep.subr.mxu0 0.0
  %4611 = vmatpush1.msra.mxu0 0.0
  %4612 = vmatprep.subr.mxu0 0.0
  %4613 = vmatpush1.msra.mxu0 0.0
  %4614 = vmatprep.subr.mxu0 0.0
  %4615 = vmatpush1.msra.mxu0 0.0
  %4616 = vmatprep.subr.mxu0 0.0
  %4617 = vmatpush1.msra.mxu0 0.0
  %4618 = vmatprep.subr.mxu0 0.0
  %4619 = vmatpush1.msra.mxu0 0.0
  %4620 = vmatprep.subr.mxu0 0.0
  %4621 = vmatpush1.msra.mxu0 0.0
  %4622 = vmatprep.subr.mxu0 0.0
  %4623 = vmatpush1.msra.mxu0 0.0
  %4624 = vmatprep.subr.mxu0 0.0
  %4625 = vmatpush1.msra.mxu0 0.0
  %4626 = vmatprep.subr.mxu0 0.0
  %4627 = vmatpush1.msra.mxu0 0.0
  %4628 = vmatprep.subr.mxu0 0.0
  %4629 = vmatpush1.msra.mxu0 0.0
  %4630 = vmatprep.subr.mxu0 0.0
  %4631 = vmatpush1.msra.mxu0 0.0
  %4632 = vmatprep.subr.mxu0 0.0
  %4633 = vmatpush1.msra.mxu0 0.0
  %4634 = vmatprep.subr.mxu0 0.0
  %4635 = vmatpush1.msra.mxu0 0.0
  %4636 = vmatprep.subr.mxu0 0.0
  %4637 = vmatpush1.msra.mxu0 0.0
  %4638 = vmatprep.subr.mxu0 0.0
  %4639 = vmatpush1.msra.mxu0 0.0
  %4640 = vmatprep.subr.mxu0 0.0
  %4641 = vmatpush1.msra.mxu0 0.0
  %v4642 = vand.u32 %v3730, 4294901760
  %v4643 = vsub.f32 %v3730, %v4642
  %4644 = vmatprep.mubr.f32.mxu0 %v4643
  %v4645 = vand.u32 %v3728, 4294901760
  %v4646 = vsub.f32 %v3728, %v4645
  %4647 = vmatmul.mubr.f32.gmra.mrb[0].mxu0 %v4646
  %v4648 = vpop.f32.mrb[0].mxu0
  %v4649 = vadd.f32 %v4554, %v4648
  %v4650 = vpop.f32.mrb[0].mxu0
  %v4651 = vand.u32 %v3736, 4294901760
  %v4652 = vsub.f32 %v3736, %v4651
  %4653 = vmatprep.mubr.f32.mxu0 %v4652
  %v4654 = vand.u32 %v3734, 4294901760
  %v4655 = vsub.f32 %v3734, %v4654
  %4656 = vmatmul.mubr.f32.gmra.mrb[0].mxu0 %v4655
  %v4657 = vpop.f32.mrb[0].mxu0
  %v4658 = vadd.f32 %v4561, %v4657
  %v4659 = vpop.f32.mrb[0].mxu0
  %v4660 = vand.u32 %v3741, 4294901760
  %v4661 = vsub.f32 %v3741, %v4660
  %4662 = vmatprep.mubr.f32.mxu0 %v4661
  %v4663 = vand.u32 %v3740, 4294901760
  %v4664 = vsub.f32 %v3740, %v4663
  %4665 = vmatmul.mubr.f32.gmra.mrb[0].mxu0 %v4664
  %v4666 = vpop.f32.mrb[0].mxu0
  %v4667 = vadd.f32 %v4568, %v4666
  %v4668 = vpop.f32.mrb[0].mxu0
  %v4669 = vand.u32 %v3745, 4294901760
  %v4670 = vsub.f32 %v3745, %v4669
  %4671 = vmatprep.mubr.f32.mxu0 %v4670
  %v4672 = vand.u32 %v3744, 4294901760
  %v4673 = vsub.f32 %v3744, %v4672
  %4674 = vmatmul.mubr.f32.gmra.mrb[0].mxu0 %v4673
  %v4675 = vpop.f32.mrb[0].mxu0
  %v4676 = vadd.f32 %v4575, %v4675
  %v4677 = vpop.f32.mrb[0].mxu0
  %4678 = vdwg.mxu0
  %4679 = vmatprep.subr.mxu0 0.0
  %4680 = vmatpush1.msra.mxu0 1.0
  %4681 = vmatprep.subr.mxu0 0.0
  %4682 = vmatpush1.msra.mxu0 1.0
  %4683 = vmatprep.subr.mxu0 0.0
  %4684 = vmatpush1.msra.mxu0 1.0
  %4685 = vmatprep.subr.mxu0 0.0
  %4686 = vmatpush1.msra.mxu0 1.0
  %4687 = vmatprep.subr.mxu0 0.0
  %4688 = vmatpush1.msra.mxu0 1.0
  %4689 = vmatprep.subr.mxu0 0.0
  %4690 = vmatpush1.msra.mxu0 1.0
  %4691 = vmatprep.subr.mxu0 0.0
  %4692 = vmatpush1.msra.mxu0 1.0
  %4693 = vmatprep.subr.mxu0 0.0
  %4694 = vmatpush1.msra.mxu0 1.0
  %4695 = vmatprep.subr.mxu0 0.0
  %4696 = vmatpush1.msra.mxu0 1.0
  %4697 = vmatprep.subr.mxu0 0.0
  %4698 = vmatpush1.msra.mxu0 1.0
  %4699 = vmatprep.subr.mxu0 0.0
  %4700 = vmatpush1.msra.mxu0 1.0
  %4701 = vmatprep.subr.mxu0 0.0
  %4702 = vmatpush1.msra.mxu0 1.0
  %4703 = vmatprep.subr.mxu0 0.0
  %4704 = vmatpush1.msra.mxu0 1.0
  %4705 = vmatprep.subr.mxu0 0.0
  %4706 = vmatpush1.msra.mxu0 1.0
  %4707 = vmatprep.subr.mxu0 0.0
  %4708 = vmatpush1.msra.mxu0 1.0
  %4709 = vmatprep.subr.mxu0 0.0
  %4710 = vmatpush1.msra.mxu0 1.0
  %4711 = vmatprep.subr.mxu0 0.0
  %4712 = vmatpush1.msra.mxu0 1.0
  %4713 = vmatprep.subr.mxu0 0.0
  %4714 = vmatpush1.msra.mxu0 1.0
  %4715 = vmatprep.subr.mxu0 0.0
  %4716 = vmatpush1.msra.mxu0 1.0
  %4717 = vmatprep.subr.mxu0 0.0
  %4718 = vmatpush1.msra.mxu0 1.0
  %4719 = vmatprep.subr.mxu0 0.0
  %4720 = vmatpush1.msra.mxu0 1.0
  %4721 = vmatprep.subr.mxu0 0.0
  %4722 = vmatpush1.msra.mxu0 1.0
  %4723 = vmatprep.subr.mxu0 0.0
  %4724 = vmatpush1.msra.mxu0 1.0
  %4725 = vmatprep.subr.mxu0 0.0
  %4726 = vmatpush1.msra.mxu0 1.0
  %4727 = vmatprep.subr.mxu0 0.0
  %4728 = vmatpush1.msra.mxu0 1.0
  %4729 = vmatprep.subr.mxu0 0.0
  %4730 = vmatpush1.msra.mxu0 1.0
  %4731 = vmatprep.subr.mxu0 0.0
  %4732 = vmatpush1.msra.mxu0 1.0
  %4733 = vmatprep.subr.mxu0 0.0
  %4734 = vmatpush1.msra.mxu0 1.0
  %4735 = vmatprep.subr.mxu0 0.0
  %4736 = vmatpush1.msra.mxu0 1.0
  %4737 = vmatprep.subr.mxu0 0.0
  %4738 = vmatpush1.msra.mxu0 1.0
  %4739 = vmatprep.subr.mxu0 0.0
  %4740 = vmatpush1.msra.mxu0 1.0
  %4741 = vmatprep.subr.mxu0 0.0
  %4742 = vmatpush1.msra.mxu0 1.0
  %v4743 = vand.u32 %v3730, 4294901760
  %v4744 = vsub.f32 %v3730, %v4743
  %v4745 = vand.u32 %v4744, 4294901760
  %4746 = vmatprep.mubr.f32.mxu0 %v4745
  %v4747 = vand.u32 %v3728, 4294901760
  %v4748 = vsub.f32 %v3728, %v4747
  %v4749 = vand.u32 %v4748, 4294901760
  %4750 = vmatmul.mubr.f32.gmra.mrb[0].mxu0 %v4749
  %v4751 = vpop.f32.mrb[0].mxu0
  %v4752 = vadd.f32 %v4649, %v4751
  %v4753 = vpop.f32.mrb[0].mxu0
  %v4754 = vand.u32 %v3736, 4294901760
  %v4755 = vsub.f32 %v3736, %v4754
  %v4756 = vand.u32 %v4755, 4294901760
  %4757 = vmatprep.mubr.f32.mxu0 %v4756
  %v4758 = vand.u32 %v3734, 4294901760
  %v4759 = vsub.f32 %v3734, %v4758
  %v4760 = vand.u32 %v4759, 4294901760
  %4761 = vmatmul.mubr.f32.gmra.mrb[0].mxu0 %v4760
  %v4762 = vpop.f32.mrb[0].mxu0
  %v4763 = vadd.f32 %v4658, %v4762
  %v4764 = vpop.f32.mrb[0].mxu0
  %v4765 = vand.u32 %v3741, 4294901760
  %v4766 = vsub.f32 %v3741, %v4765
  %v4767 = vand.u32 %v4766, 4294901760
  %4768 = vmatprep.mubr.f32.mxu0 %v4767
  %v4769 = vand.u32 %v3740, 4294901760
  %v4770 = vsub.f32 %v3740, %v4769
  %v4771 = vand.u32 %v4770, 4294901760
  %4772 = vmatmul.mubr.f32.gmra.mrb[0].mxu0 %v4771
  %v4773 = vpop.f32.mrb[0].mxu0
  %v4774 = vadd.f32 %v4667, %v4773
  %v4775 = vpop.f32.mrb[0].mxu0
  %v4776 = vand.u32 %v3745, 4294901760
  %v4777 = vsub.f32 %v3745, %v4776
  %v4778 = vand.u32 %v4777, 4294901760
  %4779 = vmatprep.mubr.f32.mxu0 %v4778
  %v4780 = vand.u32 %v3744, 4294901760
  %v4781 = vsub.f32 %v3744, %v4780
  %v4782 = vand.u32 %v4781, 4294901760
  %4783 = vmatmul.mubr.f32.gmra.mrb[0].mxu0 %v4782
  %v4784 = vpop.f32.mrb[0].mxu0
  %v4785 = vadd.f32 %v4676, %v4784
  %v4786 = vpop.f32.mrb[0].mxu0
  %4787 = vdwg.mxu0
  %4788 = vmatprep.subr.mxu0 0.0
  %4789 = vmatpush1.msra.mxu0 0.0
  %4790 = vmatprep.subr.mxu0 0.0
  %4791 = vmatpush1.msra.mxu0 0.0
  %4792 = vmatprep.subr.mxu0 0.0
  %4793 = vmatpush1.msra.mxu0 0.0
  %4794 = vmatprep.subr.mxu0 0.0
  %4795 = vmatpush1.msra.mxu0 0.0
  %4796 = vmatprep.subr.mxu0 0.0
  %4797 = vmatpush1.msra.mxu0 0.0
  %4798 = vmatprep.subr.mxu0 0.0
  %4799 = vmatpush1.msra.mxu0 0.0
  %4800 = vmatprep.subr.mxu0 0.0
  %4801 = vmatpush1.msra.mxu0 0.0
  %4802 = vmatprep.subr.mxu0 0.0
  %4803 = vmatpush1.msra.mxu0 0.0
  %4804 = vmatprep.subr.mxu0 0.0
  %4805 = vmatpush1.msra.mxu0 0.0
  %4806 = vmatprep.subr.mxu0 0.0
  %4807 = vmatpush1.msra.mxu0 0.0
  %4808 = vmatprep.subr.mxu0 0.0
  %4809 = vmatpush1.msra.mxu0 0.0
  %4810 = vmatprep.subr.mxu0 0.0
  %4811 = vmatpush1.msra.mxu0 0.0
  %4812 = vmatprep.subr.mxu0 0.0
  %4813 = vmatpush1.msra.mxu0 0.0
  %4814 = vmatprep.subr.mxu0 0.0
  %4815 = vmatpush1.msra.mxu0 0.0
  %4816 = vmatprep.subr.mxu0 0.0
  %4817 = vmatpush1.msra.mxu0 0.0
  %4818 = vmatprep.subr.mxu0 0.0
  %4819 = vmatpush1.msra.mxu0 0.0
  %4820 = vmatprep.subr.mxu0 0.0
  %4821 = vmatpush1.msra.mxu0 0.0
  %4822 = vmatprep.subr.mxu0 0.0
  %4823 = vmatpush1.msra.mxu0 0.0
  %4824 = vmatprep.subr.mxu0 0.0
  %4825 = vmatpush1.msra.mxu0 0.0
  %4826 = vmatprep.subr.mxu0 0.0
  %4827 = vmatpush1.msra.mxu0 0.0
  %4828 = vmatprep.subr.mxu0 0.0
  %4829 = vmatpush1.msra.mxu0 0.0
  %4830 = vmatprep.subr.mxu0 0.0
  %4831 = vmatpush1.msra.mxu0 0.0
  %4832 = vmatprep.subr.mxu0 0.0
  %4833 = vmatpush1.msra.mxu0 0.0
  %4834 = vmatprep.subr.mxu0 0.0
  %4835 = vmatpush1.msra.mxu0 0.0
  %4836 = vmatprep.subr.mxu0 0.0
  %4837 = vmatpush1.msra.mxu0 0.0
  %4838 = vmatprep.subr.mxu0 0.0
  %4839 = vmatpush1.msra.mxu0 0.0
  %4840 = vmatprep.subr.mxu0 0.0
  %4841 = vmatpush1.msra.mxu0 0.0
  %4842 = vmatprep.subr.mxu0 0.0
  %4843 = vmatpush1.msra.mxu0 0.0
  %4844 = vmatprep.subr.mxu0 0.0
  %4845 = vmatpush1.msra.mxu0 0.0
  %4846 = vmatprep.subr.mxu0 0.0
  %4847 = vmatpush1.msra.mxu0 0.0
  %4848 = vmatprep.subr.mxu0 0.0
  %4849 = vmatpush1.msra.mxu0 0.0
  %4850 = vmatprep.subr.mxu0 0.0
  %4851 = vmatpush1.msra.mxu0 0.0
  %v4852 = vand.u32 %v3730, 4294901760
  %4853 = vmatprep.mubr.f32.mxu0 %v4852
  %v4854 = vand.u32 %v3728, 4294901760
  %4855 = vmatmul.mubr.f32.gmra.mrb[0].mxu0 %v4854
  %v4856 = vpop.f32.mrb[0].mxu0
  %v4857 = vadd.f32 %v4752, %v4856
  %v4858 = vpop.f32.mrb[0].mxu0
  %v4859 = vand.u32 %v3736, 4294901760
  %4860 = vmatprep.mubr.f32.mxu0 %v4859
  %v4861 = vand.u32 %v3734, 4294901760
  %4862 = vmatmul.mubr.f32.gmra.mrb[0].mxu0 %v4861
  %v4863 = vpop.f32.mrb[0].mxu0
  %v4864 = vadd.f32 %v4763, %v4863
  %v4865 = vpop.f32.mrb[0].mxu0
  %v4866 = vand.u32 %v3741, 4294901760
  %4867 = vmatprep.mubr.f32.mxu0 %v4866
  %v4868 = vand.u32 %v3740, 4294901760
  %4869 = vmatmul.mubr.f32.gmra.mrb[0].mxu0 %v4868
  %v4870 = vpop.f32.mrb[0].mxu0
  %v4871 = vadd.f32 %v4774, %v4870
  %v4872 = vpop.f32.mrb[0].mxu0
  %v4873 = vand.u32 %v3745, 4294901760
  %4874 = vmatprep.mubr.f32.mxu0 %v4873
  %v4875 = vand.u32 %v3744, 4294901760
  %4876 = vmatmul.mubr.f32.gmra.mrb[0].mxu0 %v4875
  %v4877 = vpop.f32.mrb[0].mxu0
  %v4878 = vadd.f32 %v4785, %v4877
  %v4879 = vpop.f32.mrb[0].mxu0
  %4880 = vdwg.mxu0
  %4881 = vmatprep.subr.mxu0 0.0
  %4882 = vmatpush1.msra.mxu0 1.0
  %4883 = vmatprep.subr.mxu0 0.0
  %4884 = vmatpush1.msra.mxu0 1.0
  %4885 = vmatprep.subr.mxu0 0.0
  %4886 = vmatpush1.msra.mxu0 1.0
  %4887 = vmatprep.subr.mxu0 0.0
  %4888 = vmatpush1.msra.mxu0 1.0
  %4889 = vmatprep.subr.mxu0 0.0
  %4890 = vmatpush1.msra.mxu0 1.0
  %4891 = vmatprep.subr.mxu0 0.0
  %4892 = vmatpush1.msra.mxu0 1.0
  %4893 = vmatprep.subr.mxu0 0.0
  %4894 = vmatpush1.msra.mxu0 1.0
  %4895 = vmatprep.subr.mxu0 0.0
  %4896 = vmatpush1.msra.mxu0 1.0
  %4897 = vmatprep.subr.mxu0 0.0
  %4898 = vmatpush1.msra.mxu0 1.0
  %4899 = vmatprep.subr.mxu0 0.0
  %4900 = vmatpush1.msra.mxu0 1.0
  %4901 = vmatprep.subr.mxu0 0.0
  %4902 = vmatpush1.msra.mxu0 1.0
  %4903 = vmatprep.subr.mxu0 0.0
  %4904 = vmatpush1.msra.mxu0 1.0
  %4905 = vmatprep.subr.mxu0 0.0
  %4906 = vmatpush1.msra.mxu0 1.0
  %4907 = vmatprep.subr.mxu0 0.0
  %4908 = vmatpush1.msra.mxu0 1.0
  %4909 = vmatprep.subr.mxu0 0.0
  %4910 = vmatpush1.msra.mxu0 1.0
  %4911 = vmatprep.subr.mxu0 0.0
  %4912 = vmatpush1.msra.mxu0 1.0
  %4913 = vmatprep.subr.mxu0 0.0
  %4914 = vmatpush1.msra.mxu0 1.0
  %4915 = vmatprep.subr.mxu0 0.0
  %4916 = vmatpush1.msra.mxu0 1.0
  %4917 = vmatprep.subr.mxu0 0.0
  %4918 = vmatpush1.msra.mxu0 1.0
  %4919 = vmatprep.subr.mxu0 0.0
  %4920 = vmatpush1.msra.mxu0 1.0
  %4921 = vmatprep.subr.mxu0 0.0
  %4922 = vmatpush1.msra.mxu0 1.0
  %4923 = vmatprep.subr.mxu0 0.0
  %4924 = vmatpush1.msra.mxu0 1.0
  %4925 = vmatprep.subr.mxu0 0.0
  %4926 = vmatpush1.msra.mxu0 1.0
  %4927 = vmatprep.subr.mxu0 0.0
  %4928 = vmatpush1.msra.mxu0 1.0
  %4929 = vmatprep.subr.mxu0 0.0
  %4930 = vmatpush1.msra.mxu0 1.0
  %4931 = vmatprep.subr.mxu0 0.0
  %4932 = vmatpush1.msra.mxu0 1.0
  %4933 = vmatprep.subr.mxu0 0.0
  %4934 = vmatpush1.msra.mxu0 1.0
  %4935 = vmatprep.subr.mxu0 0.0
  %4936 = vmatpush1.msra.mxu0 1.0
  %4937 = vmatprep.subr.mxu0 0.0
  %4938 = vmatpush1.msra.mxu0 1.0
  %4939 = vmatprep.subr.mxu0 0.0
  %4940 = vmatpush1.msra.mxu0 1.0
  %4941 = vmatprep.subr.mxu0 0.0
  %4942 = vmatpush1.msra.mxu0 1.0
  %4943 = vmatprep.subr.mxu0 0.0
  %4944 = vmatpush1.msra.mxu0 1.0
  %v4945 = vand.u32 %v3730, 4294901760
  %4946 = vmatprep.mubr.f32.mxu0 %v4945
  %v4947 = vand.u32 %v3728, 4294901760
  %4948 = vmatmul.mubr.f32.gmra.mrb[0].mxu0 %v4947
  %v4949 = vpop.f32.mrb[0].mxu0
  %v4950 = vadd.f32 %v4857, %v4949
  %v4951 = vpop.f32.mrb[0].mxu0
  %v4952 = vand.u32 %v3736, 4294901760
  %4953 = vmatprep.mubr.f32.mxu0 %v4952
  %v4954 = vand.u32 %v3734, 4294901760
  %4955 = vmatmul.mubr.f32.gmra.mrb[0].mxu0 %v4954
  %v4956 = vpop.f32.mrb[0].mxu0
  %v4957 = vadd.f32 %v4864, %v4956
  %v4958 = vpop.f32.mrb[0].mxu0
  %v4959 = vand.u32 %v3741, 4294901760
  %4960 = vmatprep.mubr.f32.mxu0 %v4959
  %v4961 = vand.u32 %v3740, 4294901760
  %4962 = vmatmul.mubr.f32.gmra.mrb[0].mxu0 %v4961
  %v4963 = vpop.f32.mrb[0].mxu0
  %v4964 = vadd.f32 %v4871, %v4963
  %v4965 = vpop.f32.mrb[0].mxu0
  %v4966 = vand.u32 %v3745, 4294901760
  %4967 = vmatprep.mubr.f32.mxu0 %v4966
  %v4968 = vand.u32 %v3744, 4294901760
  %4969 = vmatmul.mubr.f32.gmra.mrb[0].mxu0 %v4968
  %v4970 = vpop.f32.mrb[0].mxu0
  %v4971 = vadd.f32 %v4878, %v4970
  %v4972 = vpop.f32.mrb[0].mxu0
  %4973 = vdwg.mxu0
  %v4974 = vmul.f32 %v4950, 0.001953125
  %v4975 = vmul.f32 %v4957, 0.001953125
  %v4976 = vmul.f32 %v4964, 0.001953125
  %v4977 = vmul.f32 %v4971, 0.001953125
  %v4978 = vmul.f32 %v4974, %v4974
  %v4979 = vmul.f32 %v4975, %v4975
  %v4980 = vsub.f32 %v4976, %v4978
  %v4981 = vsub.f32 %v4977, %v4979
  %v4982 = vmax.f32 %v4980, 0.0
  %v4983 = vmax.f32 %v4981, 0.0
  %v4984 = vadd.f32 %v4982, 1e-05
  %v4985 = vadd.f32 %v4983, 1e-05
  %v4986 = vrsqrt.pop %v4984
  %v4987 = vrsqrt.pop %v4985
  %4990 = vrot.lane.b32.xlu0 %v4986, 72
  %v4991 = vpop.permute.xlu0 %4990
  %4992 = vrot.lane.b32.xlu0 %v4987, 72
  %v4993 = vpop.permute.xlu0 %4992
  %v4996 = vmul.f32 %v11, %v4991
  %v4997 = vmul.f32 %v12, %v4993
  %5000 = vrot.lane.b32.xlu0 %v4996, 56
  %v5001 = vpop.permute.xlu0 %5000
  %5002 = vrot.lane.b32.xlu0 %v4997, 56
  %v5003 = vpop.permute.xlu0 %5002
  %v5006 = vmul.f32 %v4974, %v5001
  %v5007 = vmul.f32 %v4975, %v5003
  %5010 = vrot.lane.b32.xlu0 %v5006, 73
  %v5011 = vpop.permute.xlu0 %5010
  %5012 = vrot.lane.b32.xlu0 %v5007, 73
  %v5013 = vpop.permute.xlu0 %5012
  %v5016 = vsub.f32 %v11, %v5011
  %v5017 = vsub.f32 %v12, %v5013
  %5018 = vset.pattern.permute.xlu0 72
  %5019 = vperm.xlu0 %5018, %v4996
  %v5020 = vpop.permute.xlu0 %5019
  %5022 = vset.pattern.permute.xlu0 72
  %5023 = vperm.xlu0 %5022, %v4997
  %v5024 = vpop.permute.xlu0 %5023
  %v5026 = vmul.f32 %v3651, %v5020
  %v5027 = vmul.f32 %v3653, %v5020
  %v5028 = vmul.f32 %v3728, %v5020
  %v5029 = vmul.f32 %v3730, %v5020
  %v5030 = vmul.f32 %v3657, %v5024
  %v5031 = vmul.f32 %v3659, %v5024
  %v5032 = vmul.f32 %v3734, %v5024
  %v5033 = vmul.f32 %v3736, %v5024
  %5035 = vset.pattern.permute.xlu0 73
  %5036 = vperm.xlu0 %5035, %v5016
  %v5037 = vpop.permute.xlu0 %5036
  %5040 = vset.pattern.permute.xlu0 73
  %5041 = vperm.xlu0 %5040, %v5017
  %v5042 = vpop.permute.xlu0 %5041
  %v5044 = vadd.f32 %v5026, %v5037
  %v5045 = vadd.f32 %v5027, %v5037
  %v5046 = vadd.f32 %v5028, %v5037
  %v5047 = vadd.f32 %v5029, %v5037
  %v5048 = vadd.f32 %v5030, %v5042
  %v5049 = vadd.f32 %v5031, %v5042
  %v5050 = vadd.f32 %v5032, %v5042
  %v5051 = vadd.f32 %v5033, %v5042
  %v5052 = vmax.f32 %v5044, 0.0
  %v5053 = vmax.f32 %v5045, 0.0
  %v5054 = vmax.f32 %v5046, 0.0
  %v5055 = vmax.f32 %v5047, 0.0
  %v5056 = vmax.f32 %v5048, 0.0
  %v5057 = vmax.f32 %v5049, 0.0
  %v5058 = vmax.f32 %v5050, 0.0
  %v5059 = vmax.f32 %v5051, 0.0
  %5060 = vrot.lane.b32.xlu0 %v11, 76
  %v5061 = vpop.permute.xlu0 %5060
  %v5062 = vsel %vm1524, %v5061, 0
  %5064 = vmatprep.subr.mxu0 %v5053
  %5065 = vmatpush1.msra.mxu0 %v5052
  %5066 = vmatprep.subr.mxu0 %v5057
  %5067 = vmatpush1.msra.mxu0 %v5056
  %5068 = vmatprep.subr.mxu0 0.0
  %5069 = vmatpush1.msra.mxu0 0.0
  %5070 = vmatprep.subr.mxu0 0.0
  %5071 = vmatpush1.msra.mxu0 0.0
  %5072 = vmatprep.subr.mxu0 0.0
  %5073 = vmatpush1.msra.mxu0 0.0
  %5074 = vmatprep.subr.mxu0 0.0
  %5075 = vmatpush1.msra.mxu0 0.0
  %5076 = vmatprep.subr.mxu0 0.0
  %5077 = vmatpush1.msra.mxu0 0.0
  %5078 = vmatprep.subr.mxu0 0.0
  %5079 = vmatpush1.msra.mxu0 0.0
  %5080 = vmatprep.subr.mxu0 0.0
  %5081 = vmatpush1.msra.mxu0 0.0
  %5082 = vmatprep.subr.mxu0 0.0
  %5083 = vmatpush1.msra.mxu0 0.0
  %5084 = vmatprep.subr.mxu0 0.0
  %5085 = vmatpush1.msra.mxu0 0.0
  %5086 = vmatprep.subr.mxu0 0.0
  %5087 = vmatpush1.msra.mxu0 0.0
  %5088 = vmatprep.subr.mxu0 0.0
  %5089 = vmatpush1.msra.mxu0 0.0
  %5090 = vmatprep.subr.mxu0 0.0
  %5091 = vmatpush1.msra.mxu0 0.0
  %5092 = vmatprep.subr.mxu0 0.0
  %5093 = vmatpush1.msra.mxu0 0.0
  %5094 = vmatprep.subr.mxu0 0.0
  %5095 = vmatpush1.msra.mxu0 0.0
  %5096 = vmatprep.subr.mxu0 0.0
  %5097 = vmatpush1.msra.mxu0 0.0
  %5098 = vmatprep.subr.mxu0 0.0
  %5099 = vmatpush1.msra.mxu0 0.0
  %5100 = vmatprep.subr.mxu0 0.0
  %5101 = vmatpush1.msra.mxu0 0.0
  %5102 = vmatprep.subr.mxu0 0.0
  %5103 = vmatpush1.msra.mxu0 0.0
  %5104 = vmatprep.subr.mxu0 0.0
  %5105 = vmatpush1.msra.mxu0 0.0
  %5106 = vmatprep.subr.mxu0 0.0
  %5107 = vmatpush1.msra.mxu0 0.0
  %5108 = vmatprep.subr.mxu0 0.0
  %5109 = vmatpush1.msra.mxu0 0.0
  %5110 = vmatprep.subr.mxu0 0.0
  %5111 = vmatpush1.msra.mxu0 0.0
  %5112 = vmatprep.subr.mxu0 0.0
  %5113 = vmatpush1.msra.mxu0 0.0
  %5114 = vmatprep.subr.mxu0 0.0
  %5115 = vmatpush1.msra.mxu0 0.0
  %5116 = vmatprep.subr.mxu0 0.0
  %5117 = vmatpush1.msra.mxu0 0.0
  %5118 = vmatprep.subr.mxu0 0.0
  %5119 = vmatpush1.msra.mxu0 0.0
  %5120 = vmatprep.subr.mxu0 0.0
  %5121 = vmatpush1.msra.mxu0 0.0
  %5122 = vmatprep.subr.mxu0 0.0
  %5123 = vmatpush1.msra.mxu0 0.0
  %5124 = vmatprep.subr.mxu0 0.0
  %5125 = vmatpush1.msra.mxu0 0.0
  %5126 = vmatprep.subr.mxu0 0.0
  %5127 = vmatpush1.msra.mxu0 0.0
  %5128 = vmatprep.mubr.f32.mxu0 0.0
  %5129 = vmatmul.mubr.f32.gmra.mrb[0].mxu0 %v5062
  %v5130 = vpop.f32.mrb[0].mxu0
  %v5131 = vadd.f32 0.0, %v5130
  %v5132 = vpop.f32.mrb[0].mxu0
  %v5133 = vadd.f32 0.0, %v5132
  %5134 = vdwg.mxu0
  %5135 = vmatprep.subr.mxu0 %v5055
  %5136 = vmatpush1.msra.mxu0 %v5054
  %5137 = vmatprep.subr.mxu0 %v5059
  %5138 = vmatpush1.msra.mxu0 %v5058
  %5139 = vmatprep.subr.mxu0 0.0
  %5140 = vmatpush1.msra.mxu0 0.0
  %5141 = vmatprep.subr.mxu0 0.0
  %5142 = vmatpush1.msra.mxu0 0.0
  %5143 = vmatprep.subr.mxu0 0.0
  %5144 = vmatpush1.msra.mxu0 0.0
  %5145 = vmatprep.subr.mxu0 0.0
  %5146 = vmatpush1.msra.mxu0 0.0
  %5147 = vmatprep.subr.mxu0 0.0
  %5148 = vmatpush1.msra.mxu0 0.0
  %5149 = vmatprep.subr.mxu0 0.0
  %5150 = vmatpush1.msra.mxu0 0.0
  %5151 = vmatprep.subr.mxu0 0.0
  %5152 = vmatpush1.msra.mxu0 0.0
  %5153 = vmatprep.subr.mxu0 0.0
  %5154 = vmatpush1.msra.mxu0 0.0
  %5155 = vmatprep.subr.mxu0 0.0
  %5156 = vmatpush1.msra.mxu0 0.0
  %5157 = vmatprep.subr.mxu0 0.0
  %5158 = vmatpush1.msra.mxu0 0.0
  %5159 = vmatprep.subr.mxu0 0.0
  %5160 = vmatpush1.msra.mxu0 0.0
  %5161 = vmatprep.subr.mxu0 0.0
  %5162 = vmatpush1.msra.mxu0 0.0
  %5163 = vmatprep.subr.mxu0 0.0
  %5164 = vmatpush1.msra.mxu0 0.0
  %5165 = vmatprep.subr.mxu0 0.0
  %5166 = vmatpush1.msra.mxu0 0.0
  %5167 = vmatprep.subr.mxu0 0.0
  %5168 = vmatpush1.msra.mxu0 0.0
  %5169 = vmatprep.subr.mxu0 0.0
  %5170 = vmatpush1.msra.mxu0 0.0
  %5171 = vmatprep.subr.mxu0 0.0
  %5172 = vmatpush1.msra.mxu0 0.0
  %5173 = vmatprep.subr.mxu0 0.0
  %5174 = vmatpush1.msra.mxu0 0.0
  %5175 = vmatprep.subr.mxu0 0.0
  %5176 = vmatpush1.msra.mxu0 0.0
  %5177 = vmatprep.subr.mxu0 0.0
  %5178 = vmatpush1.msra.mxu0 0.0
  %5179 = vmatprep.subr.mxu0 0.0
  %5180 = vmatpush1.msra.mxu0 0.0
  %5181 = vmatprep.subr.mxu0 0.0
  %5182 = vmatpush1.msra.mxu0 0.0
  %5183 = vmatprep.subr.mxu0 0.0
  %5184 = vmatpush1.msra.mxu0 0.0
  %5185 = vmatprep.subr.mxu0 0.0
  %5186 = vmatpush1.msra.mxu0 0.0
  %5187 = vmatprep.subr.mxu0 0.0
  %5188 = vmatpush1.msra.mxu0 0.0
  %5189 = vmatprep.subr.mxu0 0.0
  %5190 = vmatpush1.msra.mxu0 0.0
  %5191 = vmatprep.subr.mxu0 0.0
  %5192 = vmatpush1.msra.mxu0 0.0
  %5193 = vmatprep.subr.mxu0 0.0
  %5194 = vmatpush1.msra.mxu0 0.0
  %5195 = vmatprep.subr.mxu0 0.0
  %5196 = vmatpush1.msra.mxu0 0.0
  %5197 = vmatprep.subr.mxu0 0.0
  %5198 = vmatpush1.msra.mxu0 0.0
  %5199 = vmatprep.mubr.f32.mxu0 0.0
  %5200 = vmatmul.mubr.f32.gmra.mrb[0].mxu0 %v5062
  %v5201 = vpop.f32.mrb[0].mxu0
  %v5202 = vadd.f32 0.0, %v5201
  %v5203 = vpop.f32.mrb[0].mxu0
  %v5204 = vadd.f32 0.0, %v5203
  %5205 = vdwg.mxu0
  %v5206 = vmul.f32 %v5131, %v5131
  %v5207 = vmul.f32 %v5133, %v5133
  %v5208 = vmul.f32 %v5202, %v5202
  %v5209 = vmul.f32 %v5204, %v5204
  %5210 = vmatprep.subr.mxu0 0.0
  %5211 = vmatpush1.msra.mxu0 1.0
  %5212 = vmatprep.subr.mxu0 0.0
  %5213 = vmatpush1.msra.mxu0 1.0
  %5214 = vmatprep.subr.mxu0 0.0
  %5215 = vmatpush1.msra.mxu0 1.0
  %5216 = vmatprep.subr.mxu0 0.0
  %5217 = vmatpush1.msra.mxu0 1.0
  %5218 = vmatprep.subr.mxu0 0.0
  %5219 = vmatpush1.msra.mxu0 1.0
  %5220 = vmatprep.subr.mxu0 0.0
  %5221 = vmatpush1.msra.mxu0 1.0
  %5222 = vmatprep.subr.mxu0 0.0
  %5223 = vmatpush1.msra.mxu0 1.0
  %5224 = vmatprep.subr.mxu0 0.0
  %5225 = vmatpush1.msra.mxu0 1.0
  %5226 = vmatprep.subr.mxu0 0.0
  %5227 = vmatpush1.msra.mxu0 1.0
  %5228 = vmatprep.subr.mxu0 0.0
  %5229 = vmatpush1.msra.mxu0 1.0
  %5230 = vmatprep.subr.mxu0 0.0
  %5231 = vmatpush1.msra.mxu0 1.0
  %5232 = vmatprep.subr.mxu0 0.0
  %5233 = vmatpush1.msra.mxu0 1.0
  %5234 = vmatprep.subr.mxu0 0.0
  %5235 = vmatpush1.msra.mxu0 1.0
  %5236 = vmatprep.subr.mxu0 0.0
  %5237 = vmatpush1.msra.mxu0 1.0
  %5238 = vmatprep.subr.mxu0 0.0
  %5239 = vmatpush1.msra.mxu0 1.0
  %5240 = vmatprep.subr.mxu0 0.0
  %5241 = vmatpush1.msra.mxu0 1.0
  %5242 = vmatprep.subr.mxu0 0.0
  %5243 = vmatpush1.msra.mxu0 1.0
  %5244 = vmatprep.subr.mxu0 0.0
  %5245 = vmatpush1.msra.mxu0 1.0
  %5246 = vmatprep.subr.mxu0 0.0
  %5247 = vmatpush1.msra.mxu0 1.0
  %5248 = vmatprep.subr.mxu0 0.0
  %5249 = vmatpush1.msra.mxu0 1.0
  %5250 = vmatprep.subr.mxu0 0.0
  %5251 = vmatpush1.msra.mxu0 1.0
  %5252 = vmatprep.subr.mxu0 0.0
  %5253 = vmatpush1.msra.mxu0 1.0
  %5254 = vmatprep.subr.mxu0 0.0
  %5255 = vmatpush1.msra.mxu0 1.0
  %5256 = vmatprep.subr.mxu0 0.0
  %5257 = vmatpush1.msra.mxu0 1.0
  %5258 = vmatprep.subr.mxu0 0.0
  %5259 = vmatpush1.msra.mxu0 1.0
  %5260 = vmatprep.subr.mxu0 0.0
  %5261 = vmatpush1.msra.mxu0 1.0
  %5262 = vmatprep.subr.mxu0 0.0
  %5263 = vmatpush1.msra.mxu0 1.0
  %5264 = vmatprep.subr.mxu0 0.0
  %5265 = vmatpush1.msra.mxu0 1.0
  %5266 = vmatprep.subr.mxu0 0.0
  %5267 = vmatpush1.msra.mxu0 1.0
  %5268 = vmatprep.subr.mxu0 0.0
  %5269 = vmatpush1.msra.mxu0 1.0
  %5270 = vmatprep.subr.mxu0 0.0
  %5271 = vmatpush1.msra.mxu0 1.0
  %5272 = vmatprep.subr.mxu0 0.0
  %5273 = vmatpush1.msra.mxu0 1.0
  %v5274 = vand.u32 %v5133, 4294901760
  %v5275 = vsub.f32 %v5133, %v5274
  %v5276 = vand.u32 %v5275, 4294901760
  %v5277 = vsub.f32 %v5275, %v5276
  %v5278 = vand.u32 %v5277, 4294901760
  %5279 = vmatprep.mubr.f32.mxu0 %v5278
  %v5280 = vand.u32 %v5131, 4294901760
  %v5281 = vsub.f32 %v5131, %v5280
  %v5282 = vand.u32 %v5281, 4294901760
  %v5283 = vsub.f32 %v5281, %v5282
  %v5284 = vand.u32 %v5283, 4294901760
  %5285 = vmatmul.mubr.f32.gmra.mrb[0].mxu0 %v5284
  %v5286 = vpop.f32.mrb[0].mxu0
  %v5287 = vadd.f32 0.0, %v5286
  %v5288 = vpop.f32.mrb[0].mxu0
  %v5289 = vand.u32 %v5207, 4294901760
  %v5290 = vsub.f32 %v5207, %v5289
  %v5291 = vand.u32 %v5290, 4294901760
  %v5292 = vsub.f32 %v5290, %v5291
  %v5293 = vand.u32 %v5292, 4294901760
  %5294 = vmatprep.mubr.f32.mxu0 %v5293
  %v5295 = vand.u32 %v5206, 4294901760
  %v5296 = vsub.f32 %v5206, %v5295
  %v5297 = vand.u32 %v5296, 4294901760
  %v5298 = vsub.f32 %v5296, %v5297
  %v5299 = vand.u32 %v5298, 4294901760
  %5300 = vmatmul.mubr.f32.gmra.mrb[0].mxu0 %v5299
  %v5301 = vpop.f32.mrb[0].mxu0
  %v5302 = vadd.f32 0.0, %v5301
  %v5303 = vpop.f32.mrb[0].mxu0
  %5304 = vdwg.mxu0
  %5305 = vmatprep.subr.mxu0 0.0
  %5306 = vmatpush1.msra.mxu0 0.0
  %5307 = vmatprep.subr.mxu0 0.0
  %5308 = vmatpush1.msra.mxu0 0.0
  %5309 = vmatprep.subr.mxu0 0.0
  %5310 = vmatpush1.msra.mxu0 0.0
  %5311 = vmatprep.subr.mxu0 0.0
  %5312 = vmatpush1.msra.mxu0 0.0
  %5313 = vmatprep.subr.mxu0 0.0
  %5314 = vmatpush1.msra.mxu0 0.0
  %5315 = vmatprep.subr.mxu0 0.0
  %5316 = vmatpush1.msra.mxu0 0.0
  %5317 = vmatprep.subr.mxu0 0.0
  %5318 = vmatpush1.msra.mxu0 0.0
  %5319 = vmatprep.subr.mxu0 0.0
  %5320 = vmatpush1.msra.mxu0 0.0
  %5321 = vmatprep.subr.mxu0 0.0
  %5322 = vmatpush1.msra.mxu0 0.0
  %5323 = vmatprep.subr.mxu0 0.0
  %5324 = vmatpush1.msra.mxu0 0.0
  %5325 = vmatprep.subr.mxu0 0.0
  %5326 = vmatpush1.msra.mxu0 0.0
  %5327 = vmatprep.subr.mxu0 0.0
  %5328 = vmatpush1.msra.mxu0 0.0
  %5329 = vmatprep.subr.mxu0 0.0
  %5330 = vmatpush1.msra.mxu0 0.0
  %5331 = vmatprep.subr.mxu0 0.0
  %5332 = vmatpush1.msra.mxu0 0.0
  %5333 = vmatprep.subr.mxu0 0.0
  %5334 = vmatpush1.msra.mxu0 0.0
  %5335 = vmatprep.subr.mxu0 0.0
  %5336 = vmatpush1.msra.mxu0 0.0
  %5337 = vmatprep.subr.mxu0 0.0
  %5338 = vmatpush1.msra.mxu0 0.0
  %5339 = vmatprep.subr.mxu0 0.0
  %5340 = vmatpush1.msra.mxu0 0.0
  %5341 = vmatprep.subr.mxu0 0.0
  %5342 = vmatpush1.msra.mxu0 0.0
  %5343 = vmatprep.subr.mxu0 0.0
  %5344 = vmatpush1.msra.mxu0 0.0
  %5345 = vmatprep.subr.mxu0 0.0
  %5346 = vmatpush1.msra.mxu0 0.0
  %5347 = vmatprep.subr.mxu0 0.0
  %5348 = vmatpush1.msra.mxu0 0.0
  %5349 = vmatprep.subr.mxu0 0.0
  %5350 = vmatpush1.msra.mxu0 0.0
  %5351 = vmatprep.subr.mxu0 0.0
  %5352 = vmatpush1.msra.mxu0 0.0
  %5353 = vmatprep.subr.mxu0 0.0
  %5354 = vmatpush1.msra.mxu0 0.0
  %5355 = vmatprep.subr.mxu0 0.0
  %5356 = vmatpush1.msra.mxu0 0.0
  %5357 = vmatprep.subr.mxu0 0.0
  %5358 = vmatpush1.msra.mxu0 0.0
  %5359 = vmatprep.subr.mxu0 0.0
  %5360 = vmatpush1.msra.mxu0 0.0
  %5361 = vmatprep.subr.mxu0 0.0
  %5362 = vmatpush1.msra.mxu0 0.0
  %5363 = vmatprep.subr.mxu0 0.0
  %5364 = vmatpush1.msra.mxu0 0.0
  %5365 = vmatprep.subr.mxu0 0.0
  %5366 = vmatpush1.msra.mxu0 0.0
  %5367 = vmatprep.subr.mxu0 0.0
  %5368 = vmatpush1.msra.mxu0 0.0
  %v5369 = vand.u32 %v5133, 4294901760
  %5370 = vmatprep.mubr.f32.mxu0 %v5369
  %v5371 = vand.u32 %v5131, 4294901760
  %5372 = vmatmul.mubr.f32.gmra.mrb[0].mxu0 %v5371
  %v5373 = vpop.f32.mrb[0].mxu0
  %v5374 = vadd.f32 %v5287, %v5373
  %v5375 = vpop.f32.mrb[0].mxu0
  %v5376 = vand.u32 %v5207, 4294901760
  %5377 = vmatprep.mubr.f32.mxu0 %v5376
  %v5378 = vand.u32 %v5206, 4294901760
  %5379 = vmatmul.mubr.f32.gmra.mrb[0].mxu0 %v5378
  %v5380 = vpop.f32.mrb[0].mxu0
  %v5381 = vadd.f32 %v5302, %v5380
  %v5382 = vpop.f32.mrb[0].mxu0
  %5383 = vdwg.mxu0
  %5384 = vmatprep.subr.mxu0 0.0
  %5385 = vmatpush1.msra.mxu0 0.0
  %5386 = vmatprep.subr.mxu0 0.0
  %5387 = vmatpush1.msra.mxu0 0.0
  %5388 = vmatprep.subr.mxu0 0.0
  %5389 = vmatpush1.msra.mxu0 0.0
  %5390 = vmatprep.subr.mxu0 0.0
  %5391 = vmatpush1.msra.mxu0 0.0
  %5392 = vmatprep.subr.mxu0 0.0
  %5393 = vmatpush1.msra.mxu0 0.0
  %5394 = vmatprep.subr.mxu0 0.0
  %5395 = vmatpush1.msra.mxu0 0.0
  %5396 = vmatprep.subr.mxu0 0.0
  %5397 = vmatpush1.msra.mxu0 0.0
  %5398 = vmatprep.subr.mxu0 0.0
  %5399 = vmatpush1.msra.mxu0 0.0
  %5400 = vmatprep.subr.mxu0 0.0
  %5401 = vmatpush1.msra.mxu0 0.0
  %5402 = vmatprep.subr.mxu0 0.0
  %5403 = vmatpush1.msra.mxu0 0.0
  %5404 = vmatprep.subr.mxu0 0.0
  %5405 = vmatpush1.msra.mxu0 0.0
  %5406 = vmatprep.subr.mxu0 0.0
  %5407 = vmatpush1.msra.mxu0 0.0
  %5408 = vmatprep.subr.mxu0 0.0
  %5409 = vmatpush1.msra.mxu0 0.0
  %5410 = vmatprep.subr.mxu0 0.0
  %5411 = vmatpush1.msra.mxu0 0.0
  %5412 = vmatprep.subr.mxu0 0.0
  %5413 = vmatpush1.msra.mxu0 0.0
  %5414 = vmatprep.subr.mxu0 0.0
  %5415 = vmatpush1.msra.mxu0 0.0
  %5416 = vmatprep.subr.mxu0 0.0
  %5417 = vmatpush1.msra.mxu0 0.0
  %5418 = vmatprep.subr.mxu0 0.0
  %5419 = vmatpush1.msra.mxu0 0.0
  %5420 = vmatprep.subr.mxu0 0.0
  %5421 = vmatpush1.msra.mxu0 0.0
  %5422 = vmatprep.subr.mxu0 0.0
  %5423 = vmatpush1.msra.mxu0 0.0
  %5424 = vmatprep.subr.mxu0 0.0
  %5425 = vmatpush1.msra.mxu0 0.0
  %5426 = vmatprep.subr.mxu0 0.0
  %5427 = vmatpush1.msra.mxu0 0.0
  %5428 = vmatprep.subr.mxu0 0.0
  %5429 = vmatpush1.msra.mxu0 0.0
  %5430 = vmatprep.subr.mxu0 0.0
  %5431 = vmatpush1.msra.mxu0 0.0
  %5432 = vmatprep.subr.mxu0 0.0
  %5433 = vmatpush1.msra.mxu0 0.0
  %5434 = vmatprep.subr.mxu0 0.0
  %5435 = vmatpush1.msra.mxu0 0.0
  %5436 = vmatprep.subr.mxu0 0.0
  %5437 = vmatpush1.msra.mxu0 0.0
  %5438 = vmatprep.subr.mxu0 0.0
  %5439 = vmatpush1.msra.mxu0 0.0
  %5440 = vmatprep.subr.mxu0 0.0
  %5441 = vmatpush1.msra.mxu0 0.0
  %5442 = vmatprep.subr.mxu0 0.0
  %5443 = vmatpush1.msra.mxu0 0.0
  %5444 = vmatprep.subr.mxu0 0.0
  %5445 = vmatpush1.msra.mxu0 0.0
  %5446 = vmatprep.subr.mxu0 0.0
  %5447 = vmatpush1.msra.mxu0 0.0
  %v5448 = vand.u32 %v5133, 4294901760
  %v5449 = vsub.f32 %v5133, %v5448
  %5450 = vmatprep.mubr.f32.mxu0 %v5449
  %v5451 = vand.u32 %v5131, 4294901760
  %v5452 = vsub.f32 %v5131, %v5451
  %5453 = vmatmul.mubr.f32.gmra.mrb[0].mxu0 %v5452
  %v5454 = vpop.f32.mrb[0].mxu0
  %v5455 = vadd.f32 %v5374, %v5454
  %v5456 = vpop.f32.mrb[0].mxu0
  %v5457 = vand.u32 %v5207, 4294901760
  %v5458 = vsub.f32 %v5207, %v5457
  %5459 = vmatprep.mubr.f32.mxu0 %v5458
  %v5460 = vand.u32 %v5206, 4294901760
  %v5461 = vsub.f32 %v5206, %v5460
  %5462 = vmatmul.mubr.f32.gmra.mrb[0].mxu0 %v5461
  %v5463 = vpop.f32.mrb[0].mxu0
  %v5464 = vadd.f32 %v5381, %v5463
  %v5465 = vpop.f32.mrb[0].mxu0
  %5466 = vdwg.mxu0
  %5467 = vmatprep.subr.mxu0 0.0
  %5468 = vmatpush1.msra.mxu0 1.0
  %5469 = vmatprep.subr.mxu0 0.0
  %5470 = vmatpush1.msra.mxu0 1.0
  %5471 = vmatprep.subr.mxu0 0.0
  %5472 = vmatpush1.msra.mxu0 1.0
  %5473 = vmatprep.subr.mxu0 0.0
  %5474 = vmatpush1.msra.mxu0 1.0
  %5475 = vmatprep.subr.mxu0 0.0
  %5476 = vmatpush1.msra.mxu0 1.0
  %5477 = vmatprep.subr.mxu0 0.0
  %5478 = vmatpush1.msra.mxu0 1.0
  %5479 = vmatprep.subr.mxu0 0.0
  %5480 = vmatpush1.msra.mxu0 1.0
  %5481 = vmatprep.subr.mxu0 0.0
  %5482 = vmatpush1.msra.mxu0 1.0
  %5483 = vmatprep.subr.mxu0 0.0
  %5484 = vmatpush1.msra.mxu0 1.0
  %5485 = vmatprep.subr.mxu0 0.0
  %5486 = vmatpush1.msra.mxu0 1.0
  %5487 = vmatprep.subr.mxu0 0.0
  %5488 = vmatpush1.msra.mxu0 1.0
  %5489 = vmatprep.subr.mxu0 0.0
  %5490 = vmatpush1.msra.mxu0 1.0
  %5491 = vmatprep.subr.mxu0 0.0
  %5492 = vmatpush1.msra.mxu0 1.0
  %5493 = vmatprep.subr.mxu0 0.0
  %5494 = vmatpush1.msra.mxu0 1.0
  %5495 = vmatprep.subr.mxu0 0.0
  %5496 = vmatpush1.msra.mxu0 1.0
  %5497 = vmatprep.subr.mxu0 0.0
  %5498 = vmatpush1.msra.mxu0 1.0
  %5499 = vmatprep.subr.mxu0 0.0
  %5500 = vmatpush1.msra.mxu0 1.0
  %5501 = vmatprep.subr.mxu0 0.0
  %5502 = vmatpush1.msra.mxu0 1.0
  %5503 = vmatprep.subr.mxu0 0.0
  %5504 = vmatpush1.msra.mxu0 1.0
  %5505 = vmatprep.subr.mxu0 0.0
  %5506 = vmatpush1.msra.mxu0 1.0
  %5507 = vmatprep.subr.mxu0 0.0
  %5508 = vmatpush1.msra.mxu0 1.0
  %5509 = vmatprep.subr.mxu0 0.0
  %5510 = vmatpush1.msra.mxu0 1.0
  %5511 = vmatprep.subr.mxu0 0.0
  %5512 = vmatpush1.msra.mxu0 1.0
  %5513 = vmatprep.subr.mxu0 0.0
  %5514 = vmatpush1.msra.mxu0 1.0
  %5515 = vmatprep.subr.mxu0 0.0
  %5516 = vmatpush1.msra.mxu0 1.0
  %5517 = vmatprep.subr.mxu0 0.0
  %5518 = vmatpush1.msra.mxu0 1.0
  %5519 = vmatprep.subr.mxu0 0.0
  %5520 = vmatpush1.msra.mxu0 1.0
  %5521 = vmatprep.subr.mxu0 0.0
  %5522 = vmatpush1.msra.mxu0 1.0
  %5523 = vmatprep.subr.mxu0 0.0
  %5524 = vmatpush1.msra.mxu0 1.0
  %5525 = vmatprep.subr.mxu0 0.0
  %5526 = vmatpush1.msra.mxu0 1.0
  %5527 = vmatprep.subr.mxu0 0.0
  %5528 = vmatpush1.msra.mxu0 1.0
  %5529 = vmatprep.subr.mxu0 0.0
  %5530 = vmatpush1.msra.mxu0 1.0
  %v5531 = vand.u32 %v5133, 4294901760
  %v5532 = vsub.f32 %v5133, %v5531
  %v5533 = vand.u32 %v5532, 4294901760
  %5534 = vmatprep.mubr.f32.mxu0 %v5533
  %v5535 = vand.u32 %v5131, 4294901760
  %v5536 = vsub.f32 %v5131, %v5535
  %v5537 = vand.u32 %v5536, 4294901760
  %5538 = vmatmul.mubr.f32.gmra.mrb[0].mxu0 %v5537
  %v5539 = vpop.f32.mrb[0].mxu0
  %v5540 = vadd.f32 %v5455, %v5539
  %v5541 = vpop.f32.mrb[0].mxu0
  %v5542 = vand.u32 %v5207, 4294901760
  %v5543 = vsub.f32 %v5207, %v5542
  %v5544 = vand.u32 %v5543, 4294901760
  %5545 = vmatprep.mubr.f32.mxu0 %v5544
  %v5546 = vand.u32 %v5206, 4294901760
  %v5547 = vsub.f32 %v5206, %v5546
  %v5548 = vand.u32 %v5547, 4294901760
  %5549 = vmatmul.mubr.f32.gmra.mrb[0].mxu0 %v5548
  %v5550 = vpop.f32.mrb[0].mxu0
  %v5551 = vadd.f32 %v5464, %v5550
  %v5552 = vpop.f32.mrb[0].mxu0
  %5553 = vdwg.mxu0
  %5554 = vmatprep.subr.mxu0 0.0
  %5555 = vmatpush1.msra.mxu0 0.0
  %5556 = vmatprep.subr.mxu0 0.0
  %5557 = vmatpush1.msra.mxu0 0.0
  %5558 = vmatprep.subr.mxu0 0.0
  %5559 = vmatpush1.msra.mxu0 0.0
  %5560 = vmatprep.subr.mxu0 0.0
  %5561 = vmatpush1.msra.mxu0 0.0
  %5562 = vmatprep.subr.mxu0 0.0
  %5563 = vmatpush1.msra.mxu0 0.0
  %5564 = vmatprep.subr.mxu0 0.0
  %5565 = vmatpush1.msra.mxu0 0.0
  %5566 = vmatprep.subr.mxu0 0.0
  %5567 = vmatpush1.msra.mxu0 0.0
  %5568 = vmatprep.subr.mxu0 0.0
  %5569 = vmatpush1.msra.mxu0 0.0
  %5570 = vmatprep.subr.mxu0 0.0
  %5571 = vmatpush1.msra.mxu0 0.0
  %5572 = vmatprep.subr.mxu0 0.0
  %5573 = vmatpush1.msra.mxu0 0.0
  %5574 = vmatprep.subr.mxu0 0.0
  %5575 = vmatpush1.msra.mxu0 0.0
  %5576 = vmatprep.subr.mxu0 0.0
  %5577 = vmatpush1.msra.mxu0 0.0
  %5578 = vmatprep.subr.mxu0 0.0
  %5579 = vmatpush1.msra.mxu0 0.0
  %5580 = vmatprep.subr.mxu0 0.0
  %5581 = vmatpush1.msra.mxu0 0.0
  %5582 = vmatprep.subr.mxu0 0.0
  %5583 = vmatpush1.msra.mxu0 0.0
  %5584 = vmatprep.subr.mxu0 0.0
  %5585 = vmatpush1.msra.mxu0 0.0
  %5586 = vmatprep.subr.mxu0 0.0
  %5587 = vmatpush1.msra.mxu0 0.0
  %5588 = vmatprep.subr.mxu0 0.0
  %5589 = vmatpush1.msra.mxu0 0.0
  %5590 = vmatprep.subr.mxu0 0.0
  %5591 = vmatpush1.msra.mxu0 0.0
  %5592 = vmatprep.subr.mxu0 0.0
  %5593 = vmatpush1.msra.mxu0 0.0
  %5594 = vmatprep.subr.mxu0 0.0
  %5595 = vmatpush1.msra.mxu0 0.0
  %5596 = vmatprep.subr.mxu0 0.0
  %5597 = vmatpush1.msra.mxu0 0.0
  %5598 = vmatprep.subr.mxu0 0.0
  %5599 = vmatpush1.msra.mxu0 0.0
  %5600 = vmatprep.subr.mxu0 0.0
  %5601 = vmatpush1.msra.mxu0 0.0
  %5602 = vmatprep.subr.mxu0 0.0
  %5603 = vmatpush1.msra.mxu0 0.0
  %5604 = vmatprep.subr.mxu0 0.0
  %5605 = vmatpush1.msra.mxu0 0.0
  %5606 = vmatprep.subr.mxu0 0.0
  %5607 = vmatpush1.msra.mxu0 0.0
  %5608 = vmatprep.subr.mxu0 0.0
  %5609 = vmatpush1.msra.mxu0 0.0
  %5610 = vmatprep.subr.mxu0 0.0
  %5611 = vmatpush1.msra.mxu0 0.0
  %5612 = vmatprep.subr.mxu0 0.0
  %5613 = vmatpush1.msra.mxu0 0.0
  %5614 = vmatprep.subr.mxu0 0.0
  %5615 = vmatpush1.msra.mxu0 0.0
  %5616 = vmatprep.subr.mxu0 0.0
  %5617 = vmatpush1.msra.mxu0 0.0
  %v5618 = vand.u32 %v5133, 4294901760
  %5619 = vmatprep.mubr.f32.mxu0 %v5618
  %v5620 = vand.u32 %v5131, 4294901760
  %5621 = vmatmul.mubr.f32.gmra.mrb[0].mxu0 %v5620
  %v5622 = vpop.f32.mrb[0].mxu0
  %v5623 = vadd.f32 %v5540, %v5622
  %v5624 = vpop.f32.mrb[0].mxu0
  %v5625 = vand.u32 %v5207, 4294901760
  %5626 = vmatprep.mubr.f32.mxu0 %v5625
  %v5627 = vand.u32 %v5206, 4294901760
  %5628 = vmatmul.mubr.f32.gmra.mrb[0].mxu0 %v5627
  %v5629 = vpop.f32.mrb[0].mxu0
  %v5630 = vadd.f32 %v5551, %v5629
  %v5631 = vpop.f32.mrb[0].mxu0
  %5632 = vdwg.mxu0
  %5633 = vmatprep.subr.mxu0 0.0
  %5634 = vmatpush1.msra.mxu0 1.0
  %5635 = vmatprep.subr.mxu0 0.0
  %5636 = vmatpush1.msra.mxu0 1.0
  %5637 = vmatprep.subr.mxu0 0.0
  %5638 = vmatpush1.msra.mxu0 1.0
  %5639 = vmatprep.subr.mxu0 0.0
  %5640 = vmatpush1.msra.mxu0 1.0
  %5641 = vmatprep.subr.mxu0 0.0
  %5642 = vmatpush1.msra.mxu0 1.0
  %5643 = vmatprep.subr.mxu0 0.0
  %5644 = vmatpush1.msra.mxu0 1.0
  %5645 = vmatprep.subr.mxu0 0.0
  %5646 = vmatpush1.msra.mxu0 1.0
  %5647 = vmatprep.subr.mxu0 0.0
  %5648 = vmatpush1.msra.mxu0 1.0
  %5649 = vmatprep.subr.mxu0 0.0
  %5650 = vmatpush1.msra.mxu0 1.0
  %5651 = vmatprep.subr.mxu0 0.0
  %5652 = vmatpush1.msra.mxu0 1.0
  %5653 = vmatprep.subr.mxu0 0.0
  %5654 = vmatpush1.msra.mxu0 1.0
  %5655 = vmatprep.subr.mxu0 0.0
  %5656 = vmatpush1.msra.mxu0 1.0
  %5657 = vmatprep.subr.mxu0 0.0
  %5658 = vmatpush1.msra.mxu0 1.0
  %5659 = vmatprep.subr.mxu0 0.0
  %5660 = vmatpush1.msra.mxu0 1.0
  %5661 = vmatprep.subr.mxu0 0.0
  %5662 = vmatpush1.msra.mxu0 1.0
  %5663 = vmatprep.subr.mxu0 0.0
  %5664 = vmatpush1.msra.mxu0 1.0
  %5665 = vmatprep.subr.mxu0 0.0
  %5666 = vmatpush1.msra.mxu0 1.0
  %5667 = vmatprep.subr.mxu0 0.0
  %5668 = vmatpush1.msra.mxu0 1.0
  %5669 = vmatprep.subr.mxu0 0.0
  %5670 = vmatpush1.msra.mxu0 1.0
  %5671 = vmatprep.subr.mxu0 0.0
  %5672 = vmatpush1.msra.mxu0 1.0
  %5673 = vmatprep.subr.mxu0 0.0
  %5674 = vmatpush1.msra.mxu0 1.0
  %5675 = vmatprep.subr.mxu0 0.0
  %5676 = vmatpush1.msra.mxu0 1.0
  %5677 = vmatprep.subr.mxu0 0.0
  %5678 = vmatpush1.msra.mxu0 1.0
  %5679 = vmatprep.subr.mxu0 0.0
  %5680 = vmatpush1.msra.mxu0 1.0
  %5681 = vmatprep.subr.mxu0 0.0
  %5682 = vmatpush1.msra.mxu0 1.0
  %5683 = vmatprep.subr.mxu0 0.0
  %5684 = vmatpush1.msra.mxu0 1.0
  %5685 = vmatprep.subr.mxu0 0.0
  %5686 = vmatpush1.msra.mxu0 1.0
  %5687 = vmatprep.subr.mxu0 0.0
  %5688 = vmatpush1.msra.mxu0 1.0
  %5689 = vmatprep.subr.mxu0 0.0
  %5690 = vmatpush1.msra.mxu0 1.0
  %5691 = vmatprep.subr.mxu0 0.0
  %5692 = vmatpush1.msra.mxu0 1.0
  %5693 = vmatprep.subr.mxu0 0.0
  %5694 = vmatpush1.msra.mxu0 1.0
  %5695 = vmatprep.subr.mxu0 0.0
  %5696 = vmatpush1.msra.mxu0 1.0
  %v5697 = vand.u32 %v5133, 4294901760
  %5698 = vmatprep.mubr.f32.mxu0 %v5697
  %v5699 = vand.u32 %v5131, 4294901760
  %5700 = vmatmul.mubr.f32.gmra.mrb[0].mxu0 %v5699
  %v5701 = vpop.f32.mrb[0].mxu0
  %v5702 = vadd.f32 %v5623, %v5701
  %v5703 = vpop.f32.mrb[0].mxu0
  %v5704 = vand.u32 %v5207, 4294901760
  %5705 = vmatprep.mubr.f32.mxu0 %v5704
  %v5706 = vand.u32 %v5206, 4294901760
  %5707 = vmatmul.mubr.f32.gmra.mrb[0].mxu0 %v5706
  %v5708 = vpop.f32.mrb[0].mxu0
  %v5709 = vadd.f32 %v5630, %v5708
  %v5710 = vpop.f32.mrb[0].mxu0
  %5711 = vdwg.mxu0
  %5712 = vmatprep.subr.mxu0 0.0
  %5713 = vmatpush1.msra.mxu0 1.0
  %5714 = vmatprep.subr.mxu0 0.0
  %5715 = vmatpush1.msra.mxu0 1.0
  %5716 = vmatprep.subr.mxu0 0.0
  %5717 = vmatpush1.msra.mxu0 1.0
  %5718 = vmatprep.subr.mxu0 0.0
  %5719 = vmatpush1.msra.mxu0 1.0
  %5720 = vmatprep.subr.mxu0 0.0
  %5721 = vmatpush1.msra.mxu0 1.0
  %5722 = vmatprep.subr.mxu0 0.0
  %5723 = vmatpush1.msra.mxu0 1.0
  %5724 = vmatprep.subr.mxu0 0.0
  %5725 = vmatpush1.msra.mxu0 1.0
  %5726 = vmatprep.subr.mxu0 0.0
  %5727 = vmatpush1.msra.mxu0 1.0
  %5728 = vmatprep.subr.mxu0 0.0
  %5729 = vmatpush1.msra.mxu0 1.0
  %5730 = vmatprep.subr.mxu0 0.0
  %5731 = vmatpush1.msra.mxu0 1.0
  %5732 = vmatprep.subr.mxu0 0.0
  %5733 = vmatpush1.msra.mxu0 1.0
  %5734 = vmatprep.subr.mxu0 0.0
  %5735 = vmatpush1.msra.mxu0 1.0
  %5736 = vmatprep.subr.mxu0 0.0
  %5737 = vmatpush1.msra.mxu0 1.0
  %5738 = vmatprep.subr.mxu0 0.0
  %5739 = vmatpush1.msra.mxu0 1.0
  %5740 = vmatprep.subr.mxu0 0.0
  %5741 = vmatpush1.msra.mxu0 1.0
  %5742 = vmatprep.subr.mxu0 0.0
  %5743 = vmatpush1.msra.mxu0 1.0
  %5744 = vmatprep.subr.mxu0 0.0
  %5745 = vmatpush1.msra.mxu0 1.0
  %5746 = vmatprep.subr.mxu0 0.0
  %5747 = vmatpush1.msra.mxu0 1.0
  %5748 = vmatprep.subr.mxu0 0.0
  %5749 = vmatpush1.msra.mxu0 1.0
  %5750 = vmatprep.subr.mxu0 0.0
  %5751 = vmatpush1.msra.mxu0 1.0
  %5752 = vmatprep.subr.mxu0 0.0
  %5753 = vmatpush1.msra.mxu0 1.0
  %5754 = vmatprep.subr.mxu0 0.0
  %5755 = vmatpush1.msra.mxu0 1.0
  %5756 = vmatprep.subr.mxu0 0.0
  %5757 = vmatpush1.msra.mxu0 1.0
  %5758 = vmatprep.subr.mxu0 0.0
  %5759 = vmatpush1.msra.mxu0 1.0
  %5760 = vmatprep.subr.mxu0 0.0
  %5761 = vmatpush1.msra.mxu0 1.0
  %5762 = vmatprep.subr.mxu0 0.0
  %5763 = vmatpush1.msra.mxu0 1.0
  %5764 = vmatprep.subr.mxu0 0.0
  %5765 = vmatpush1.msra.mxu0 1.0
  %5766 = vmatprep.subr.mxu0 0.0
  %5767 = vmatpush1.msra.mxu0 1.0
  %5768 = vmatprep.subr.mxu0 0.0
  %5769 = vmatpush1.msra.mxu0 1.0
  %5770 = vmatprep.subr.mxu0 0.0
  %5771 = vmatpush1.msra.mxu0 1.0
  %5772 = vmatprep.subr.mxu0 0.0
  %5773 = vmatpush1.msra.mxu0 1.0
  %5774 = vmatprep.subr.mxu0 0.0
  %5775 = vmatpush1.msra.mxu0 1.0
  %v5776 = vand.u32 %v5204, 4294901760
  %v5777 = vsub.f32 %v5204, %v5776
  %v5778 = vand.u32 %v5777, 4294901760
  %v5779 = vsub.f32 %v5777, %v5778
  %v5780 = vand.u32 %v5779, 4294901760
  %5781 = vmatprep.mubr.f32.mxu0 %v5780
  %v5782 = vand.u32 %v5202, 4294901760
  %v5783 = vsub.f32 %v5202, %v5782
  %v5784 = vand.u32 %v5783, 4294901760
  %v5785 = vsub.f32 %v5783, %v5784
  %v5786 = vand.u32 %v5785, 4294901760
  %5787 = vmatmul.mubr.f32.gmra.mrb[0].mxu0 %v5786
  %v5788 = vpop.f32.mrb[0].mxu0
  %v5789 = vadd.f32 %v5702, %v5788
  %v5790 = vpop.f32.mrb[0].mxu0
  %v5791 = vand.u32 %v5209, 4294901760
  %v5792 = vsub.f32 %v5209, %v5791
  %v5793 = vand.u32 %v5792, 4294901760
  %v5794 = vsub.f32 %v5792, %v5793
  %v5795 = vand.u32 %v5794, 4294901760
  %5796 = vmatprep.mubr.f32.mxu0 %v5795
  %v5797 = vand.u32 %v5208, 4294901760
  %v5798 = vsub.f32 %v5208, %v5797
  %v5799 = vand.u32 %v5798, 4294901760
  %v5800 = vsub.f32 %v5798, %v5799
  %v5801 = vand.u32 %v5800, 4294901760
  %5802 = vmatmul.mubr.f32.gmra.mrb[0].mxu0 %v5801
  %v5803 = vpop.f32.mrb[0].mxu0
  %v5804 = vadd.f32 %v5709, %v5803
  %v5805 = vpop.f32.mrb[0].mxu0
  %5806 = vdwg.mxu0
  %5807 = vmatprep.subr.mxu0 0.0
  %5808 = vmatpush1.msra.mxu0 0.0
  %5809 = vmatprep.subr.mxu0 0.0
  %5810 = vmatpush1.msra.mxu0 0.0
  %5811 = vmatprep.subr.mxu0 0.0
  %5812 = vmatpush1.msra.mxu0 0.0
  %5813 = vmatprep.subr.mxu0 0.0
  %5814 = vmatpush1.msra.mxu0 0.0
  %5815 = vmatprep.subr.mxu0 0.0
  %5816 = vmatpush1.msra.mxu0 0.0
  %5817 = vmatprep.subr.mxu0 0.0
  %5818 = vmatpush1.msra.mxu0 0.0
  %5819 = vmatprep.subr.mxu0 0.0
  %5820 = vmatpush1.msra.mxu0 0.0
  %5821 = vmatprep.subr.mxu0 0.0
  %5822 = vmatpush1.msra.mxu0 0.0
  %5823 = vmatprep.subr.mxu0 0.0
  %5824 = vmatpush1.msra.mxu0 0.0
  %5825 = vmatprep.subr.mxu0 0.0
  %5826 = vmatpush1.msra.mxu0 0.0
  %5827 = vmatprep.subr.mxu0 0.0
  %5828 = vmatpush1.msra.mxu0 0.0
  %5829 = vmatprep.subr.mxu0 0.0
  %5830 = vmatpush1.msra.mxu0 0.0
  %5831 = vmatprep.subr.mxu0 0.0
  %5832 = vmatpush1.msra.mxu0 0.0
  %5833 = vmatprep.subr.mxu0 0.0
  %5834 = vmatpush1.msra.mxu0 0.0
  %5835 = vmatprep.subr.mxu0 0.0
  %5836 = vmatpush1.msra.mxu0 0.0
  %5837 = vmatprep.subr.mxu0 0.0
  %5838 = vmatpush1.msra.mxu0 0.0
  %5839 = vmatprep.subr.mxu0 0.0
  %5840 = vmatpush1.msra.mxu0 0.0
  %5841 = vmatprep.subr.mxu0 0.0
  %5842 = vmatpush1.msra.mxu0 0.0
  %5843 = vmatprep.subr.mxu0 0.0
  %5844 = vmatpush1.msra.mxu0 0.0
  %5845 = vmatprep.subr.mxu0 0.0
  %5846 = vmatpush1.msra.mxu0 0.0
  %5847 = vmatprep.subr.mxu0 0.0
  %5848 = vmatpush1.msra.mxu0 0.0
  %5849 = vmatprep.subr.mxu0 0.0
  %5850 = vmatpush1.msra.mxu0 0.0
  %5851 = vmatprep.subr.mxu0 0.0
  %5852 = vmatpush1.msra.mxu0 0.0
  %5853 = vmatprep.subr.mxu0 0.0
  %5854 = vmatpush1.msra.mxu0 0.0
  %5855 = vmatprep.subr.mxu0 0.0
  %5856 = vmatpush1.msra.mxu0 0.0
  %5857 = vmatprep.subr.mxu0 0.0
  %5858 = vmatpush1.msra.mxu0 0.0
  %5859 = vmatprep.subr.mxu0 0.0
  %5860 = vmatpush1.msra.mxu0 0.0
  %5861 = vmatprep.subr.mxu0 0.0
  %5862 = vmatpush1.msra.mxu0 0.0
  %5863 = vmatprep.subr.mxu0 0.0
  %5864 = vmatpush1.msra.mxu0 0.0
  %5865 = vmatprep.subr.mxu0 0.0
  %5866 = vmatpush1.msra.mxu0 0.0
  %5867 = vmatprep.subr.mxu0 0.0
  %5868 = vmatpush1.msra.mxu0 0.0
  %5869 = vmatprep.subr.mxu0 0.0
  %5870 = vmatpush1.msra.mxu0 0.0
  %v5871 = vand.u32 %v5204, 4294901760
  %5872 = vmatprep.mubr.f32.mxu0 %v5871
  %v5873 = vand.u32 %v5202, 4294901760
  %5874 = vmatmul.mubr.f32.gmra.mrb[0].mxu0 %v5873
  %v5875 = vpop.f32.mrb[0].mxu0
  %v5876 = vadd.f32 %v5789, %v5875
  %v5877 = vpop.f32.mrb[0].mxu0
  %v5878 = vand.u32 %v5209, 4294901760
  %5879 = vmatprep.mubr.f32.mxu0 %v5878
  %v5880 = vand.u32 %v5208, 4294901760
  %5881 = vmatmul.mubr.f32.gmra.mrb[0].mxu0 %v5880
  %v5882 = vpop.f32.mrb[0].mxu0
  %v5883 = vadd.f32 %v5804, %v5882
  %v5884 = vpop.f32.mrb[0].mxu0
  %5885 = vdwg.mxu0
  %5886 = vmatprep.subr.mxu0 0.0
  %5887 = vmatpush1.msra.mxu0 0.0
  %5888 = vmatprep.subr.mxu0 0.0
  %5889 = vmatpush1.msra.mxu0 0.0
  %5890 = vmatprep.subr.mxu0 0.0
  %5891 = vmatpush1.msra.mxu0 0.0
  %5892 = vmatprep.subr.mxu0 0.0
  %5893 = vmatpush1.msra.mxu0 0.0
  %5894 = vmatprep.subr.mxu0 0.0
  %5895 = vmatpush1.msra.mxu0 0.0
  %5896 = vmatprep.subr.mxu0 0.0
  %5897 = vmatpush1.msra.mxu0 0.0
  %5898 = vmatprep.subr.mxu0 0.0
  %5899 = vmatpush1.msra.mxu0 0.0
  %5900 = vmatprep.subr.mxu0 0.0
  %5901 = vmatpush1.msra.mxu0 0.0
  %5902 = vmatprep.subr.mxu0 0.0
  %5903 = vmatpush1.msra.mxu0 0.0
  %5904 = vmatprep.subr.mxu0 0.0
  %5905 = vmatpush1.msra.mxu0 0.0
  %5906 = vmatprep.subr.mxu0 0.0
  %5907 = vmatpush1.msra.mxu0 0.0
  %5908 = vmatprep.subr.mxu0 0.0
  %5909 = vmatpush1.msra.mxu0 0.0
  %5910 = vmatprep.subr.mxu0 0.0
  %5911 = vmatpush1.msra.mxu0 0.0
  %5912 = vmatprep.subr.mxu0 0.0
  %5913 = vmatpush1.msra.mxu0 0.0
  %5914 = vmatprep.subr.mxu0 0.0
  %5915 = vmatpush1.msra.mxu0 0.0
  %5916 = vmatprep.subr.mxu0 0.0
  %5917 = vmatpush1.msra.mxu0 0.0
  %5918 = vmatprep.subr.mxu0 0.0
  %5919 = vmatpush1.msra.mxu0 0.0
  %5920 = vmatprep.subr.mxu0 0.0
  %5921 = vmatpush1.msra.mxu0 0.0
  %5922 = vmatprep.subr.mxu0 0.0
  %5923 = vmatpush1.msra.mxu0 0.0
  %5924 = vmatprep.subr.mxu0 0.0
  %5925 = vmatpush1.msra.mxu0 0.0
  %5926 = vmatprep.subr.mxu0 0.0
  %5927 = vmatpush1.msra.mxu0 0.0
  %5928 = vmatprep.subr.mxu0 0.0
  %5929 = vmatpush1.msra.mxu0 0.0
  %5930 = vmatprep.subr.mxu0 0.0
  %5931 = vmatpush1.msra.mxu0 0.0
  %5932 = vmatprep.subr.mxu0 0.0
  %5933 = vmatpush1.msra.mxu0 0.0
  %5934 = vmatprep.subr.mxu0 0.0
  %5935 = vmatpush1.msra.mxu0 0.0
  %5936 = vmatprep.subr.mxu0 0.0
  %5937 = vmatpush1.msra.mxu0 0.0
  %5938 = vmatprep.subr.mxu0 0.0
  %5939 = vmatpush1.msra.mxu0 0.0
  %5940 = vmatprep.subr.mxu0 0.0
  %5941 = vmatpush1.msra.mxu0 0.0
  %5942 = vmatprep.subr.mxu0 0.0
  %5943 = vmatpush1.msra.mxu0 0.0
  %5944 = vmatprep.subr.mxu0 0.0
  %5945 = vmatpush1.msra.mxu0 0.0
  %5946 = vmatprep.subr.mxu0 0.0
  %5947 = vmatpush1.msra.mxu0 0.0
  %5948 = vmatprep.subr.mxu0 0.0
  %5949 = vmatpush1.msra.mxu0 0.0
  %v5950 = vand.u32 %v5204, 4294901760
  %v5951 = vsub.f32 %v5204, %v5950
  %5952 = vmatprep.mubr.f32.mxu0 %v5951
  %v5953 = vand.u32 %v5202, 4294901760
  %v5954 = vsub.f32 %v5202, %v5953
  %5955 = vmatmul.mubr.f32.gmra.mrb[0].mxu0 %v5954
  %v5956 = vpop.f32.mrb[0].mxu0
  %v5957 = vadd.f32 %v5876, %v5956
  %v5958 = vpop.f32.mrb[0].mxu0
  %v5959 = vand.u32 %v5209, 4294901760
  %v5960 = vsub.f32 %v5209, %v5959
  %5961 = vmatprep.mubr.f32.mxu0 %v5960
  %v5962 = vand.u32 %v5208, 4294901760
  %v5963 = vsub.f32 %v5208, %v5962
  %5964 = vmatmul.mubr.f32.gmra.mrb[0].mxu0 %v5963
  %v5965 = vpop.f32.mrb[0].mxu0
  %v5966 = vadd.f32 %v5883, %v5965
  %v5967 = vpop.f32.mrb[0].mxu0
  %5968 = vdwg.mxu0
  %5969 = vmatprep.subr.mxu0 0.0
  %5970 = vmatpush1.msra.mxu0 1.0
  %5971 = vmatprep.subr.mxu0 0.0
  %5972 = vmatpush1.msra.mxu0 1.0
  %5973 = vmatprep.subr.mxu0 0.0
  %5974 = vmatpush1.msra.mxu0 1.0
  %5975 = vmatprep.subr.mxu0 0.0
  %5976 = vmatpush1.msra.mxu0 1.0
  %5977 = vmatprep.subr.mxu0 0.0
  %5978 = vmatpush1.msra.mxu0 1.0
  %5979 = vmatprep.subr.mxu0 0.0
  %5980 = vmatpush1.msra.mxu0 1.0
  %5981 = vmatprep.subr.mxu0 0.0
  %5982 = vmatpush1.msra.mxu0 1.0
  %5983 = vmatprep.subr.mxu0 0.0
  %5984 = vmatpush1.msra.mxu0 1.0
  %5985 = vmatprep.subr.mxu0 0.0
  %5986 = vmatpush1.msra.mxu0 1.0
  %5987 = vmatprep.subr.mxu0 0.0
  %5988 = vmatpush1.msra.mxu0 1.0
  %5989 = vmatprep.subr.mxu0 0.0
  %5990 = vmatpush1.msra.mxu0 1.0
  %5991 = vmatprep.subr.mxu0 0.0
  %5992 = vmatpush1.msra.mxu0 1.0
  %5993 = vmatprep.subr.mxu0 0.0
  %5994 = vmatpush1.msra.mxu0 1.0
  %5995 = vmatprep.subr.mxu0 0.0
  %5996 = vmatpush1.msra.mxu0 1.0
  %5997 = vmatprep.subr.mxu0 0.0
  %5998 = vmatpush1.msra.mxu0 1.0
  %5999 = vmatprep.subr.mxu0 0.0
  %6000 = vmatpush1.msra.mxu0 1.0
  %6001 = vmatprep.subr.mxu0 0.0
  %6002 = vmatpush1.msra.mxu0 1.0
  %6003 = vmatprep.subr.mxu0 0.0
  %6004 = vmatpush1.msra.mxu0 1.0
  %6005 = vmatprep.subr.mxu0 0.0
  %6006 = vmatpush1.msra.mxu0 1.0
  %6007 = vmatprep.subr.mxu0 0.0
  %6008 = vmatpush1.msra.mxu0 1.0
  %6009 = vmatprep.subr.mxu0 0.0
  %6010 = vmatpush1.msra.mxu0 1.0
  %6011 = vmatprep.subr.mxu0 0.0
  %6012 = vmatpush1.msra.mxu0 1.0
  %6013 = vmatprep.subr.mxu0 0.0
  %6014 = vmatpush1.msra.mxu0 1.0
  %6015 = vmatprep.subr.mxu0 0.0
  %6016 = vmatpush1.msra.mxu0 1.0
  %6017 = vmatprep.subr.mxu0 0.0
  %6018 = vmatpush1.msra.mxu0 1.0
  %6019 = vmatprep.subr.mxu0 0.0
  %6020 = vmatpush1.msra.mxu0 1.0
  %6021 = vmatprep.subr.mxu0 0.0
  %6022 = vmatpush1.msra.mxu0 1.0
  %6023 = vmatprep.subr.mxu0 0.0
  %6024 = vmatpush1.msra.mxu0 1.0
  %6025 = vmatprep.subr.mxu0 0.0
  %6026 = vmatpush1.msra.mxu0 1.0
  %6027 = vmatprep.subr.mxu0 0.0
  %6028 = vmatpush1.msra.mxu0 1.0
  %6029 = vmatprep.subr.mxu0 0.0
  %6030 = vmatpush1.msra.mxu0 1.0
  %6031 = vmatprep.subr.mxu0 0.0
  %6032 = vmatpush1.msra.mxu0 1.0
  %v6033 = vand.u32 %v5204, 4294901760
  %v6034 = vsub.f32 %v5204, %v6033
  %v6035 = vand.u32 %v6034, 4294901760
  %6036 = vmatprep.mubr.f32.mxu0 %v6035
  %v6037 = vand.u32 %v5202, 4294901760
  %v6038 = vsub.f32 %v5202, %v6037
  %v6039 = vand.u32 %v6038, 4294901760
  %6040 = vmatmul.mubr.f32.gmra.mrb[0].mxu0 %v6039
  %v6041 = vpop.f32.mrb[0].mxu0
  %v6042 = vadd.f32 %v5957, %v6041
  %v6043 = vpop.f32.mrb[0].mxu0
  %v6044 = vand.u32 %v5209, 4294901760
  %v6045 = vsub.f32 %v5209, %v6044
  %v6046 = vand.u32 %v6045, 4294901760
  %6047 = vmatprep.mubr.f32.mxu0 %v6046
  %v6048 = vand.u32 %v5208, 4294901760
  %v6049 = vsub.f32 %v5208, %v6048
  %v6050 = vand.u32 %v6049, 4294901760
  %6051 = vmatmul.mubr.f32.gmra.mrb[0].mxu0 %v6050
  %v6052 = vpop.f32.mrb[0].mxu0
  %v6053 = vadd.f32 %v5966, %v6052
  %v6054 = vpop.f32.mrb[0].mxu0
  %6055 = vdwg.mxu0
  %6056 = vmatprep.subr.mxu0 0.0
  %6057 = vmatpush1.msra.mxu0 0.0
  %6058 = vmatprep.subr.mxu0 0.0
  %6059 = vmatpush1.msra.mxu0 0.0
  %6060 = vmatprep.subr.mxu0 0.0
  %6061 = vmatpush1.msra.mxu0 0.0
  %6062 = vmatprep.subr.mxu0 0.0
  %6063 = vmatpush1.msra.mxu0 0.0
  %6064 = vmatprep.subr.mxu0 0.0
  %6065 = vmatpush1.msra.mxu0 0.0
  %6066 = vmatprep.subr.mxu0 0.0
  %6067 = vmatpush1.msra.mxu0 0.0
  %6068 = vmatprep.subr.mxu0 0.0
  %6069 = vmatpush1.msra.mxu0 0.0
  %6070 = vmatprep.subr.mxu0 0.0
  %6071 = vmatpush1.msra.mxu0 0.0
  %6072 = vmatprep.subr.mxu0 0.0
  %6073 = vmatpush1.msra.mxu0 0.0
  %6074 = vmatprep.subr.mxu0 0.0
  %6075 = vmatpush1.msra.mxu0 0.0
  %6076 = vmatprep.subr.mxu0 0.0
  %6077 = vmatpush1.msra.mxu0 0.0
  %6078 = vmatprep.subr.mxu0 0.0
  %6079 = vmatpush1.msra.mxu0 0.0
  %6080 = vmatprep.subr.mxu0 0.0
  %6081 = vmatpush1.msra.mxu0 0.0
  %6082 = vmatprep.subr.mxu0 0.0
  %6083 = vmatpush1.msra.mxu0 0.0
  %6084 = vmatprep.subr.mxu0 0.0
  %6085 = vmatpush1.msra.mxu0 0.0
  %6086 = vmatprep.subr.mxu0 0.0
  %6087 = vmatpush1.msra.mxu0 0.0
  %6088 = vmatprep.subr.mxu0 0.0
  %6089 = vmatpush1.msra.mxu0 0.0
  %6090 = vmatprep.subr.mxu0 0.0
  %6091 = vmatpush1.msra.mxu0 0.0
  %6092 = vmatprep.subr.mxu0 0.0
  %6093 = vmatpush1.msra.mxu0 0.0
  %6094 = vmatprep.subr.mxu0 0.0
  %6095 = vmatpush1.msra.mxu0 0.0
  %6096 = vmatprep.subr.mxu0 0.0
  %6097 = vmatpush1.msra.mxu0 0.0
  %6098 = vmatprep.subr.mxu0 0.0
  %6099 = vmatpush1.msra.mxu0 0.0
  %6100 = vmatprep.subr.mxu0 0.0
  %6101 = vmatpush1.msra.mxu0 0.0
  %6102 = vmatprep.subr.mxu0 0.0
  %6103 = vmatpush1.msra.mxu0 0.0
  %6104 = vmatprep.subr.mxu0 0.0
  %6105 = vmatpush1.msra.mxu0 0.0
  %6106 = vmatprep.subr.mxu0 0.0
  %6107 = vmatpush1.msra.mxu0 0.0
  %6108 = vmatprep.subr.mxu0 0.0
  %6109 = vmatpush1.msra.mxu0 0.0
  %6110 = vmatprep.subr.mxu0 0.0
  %6111 = vmatpush1.msra.mxu0 0.0
  %6112 = vmatprep.subr.mxu0 0.0
  %6113 = vmatpush1.msra.mxu0 0.0
  %6114 = vmatprep.subr.mxu0 0.0
  %6115 = vmatpush1.msra.mxu0 0.0
  %6116 = vmatprep.subr.mxu0 0.0
  %6117 = vmatpush1.msra.mxu0 0.0
  %6118 = vmatprep.subr.mxu0 0.0
  %6119 = vmatpush1.msra.mxu0 0.0
  %v6120 = vand.u32 %v5204, 4294901760
  %6121 = vmatprep.mubr.f32.mxu0 %v6120
  %v6122 = vand.u32 %v5202, 4294901760
  %6123 = vmatmul.mubr.f32.gmra.mrb[0].mxu0 %v6122
  %v6124 = vpop.f32.mrb[0].mxu0
  %v6125 = vadd.f32 %v6042, %v6124
  %v6126 = vpop.f32.mrb[0].mxu0
  %v6127 = vand.u32 %v5209, 4294901760
  %6128 = vmatprep.mubr.f32.mxu0 %v6127
  %v6129 = vand.u32 %v5208, 4294901760
  %6130 = vmatmul.mubr.f32.gmra.mrb[0].mxu0 %v6129
  %v6131 = vpop.f32.mrb[0].mxu0
  %v6132 = vadd.f32 %v6053, %v6131
  %v6133 = vpop.f32.mrb[0].mxu0
  %6134 = vdwg.mxu0
  %6135 = vmatprep.subr.mxu0 0.0
  %6136 = vmatpush1.msra.mxu0 1.0
  %6137 = vmatprep.subr.mxu0 0.0
  %6138 = vmatpush1.msra.mxu0 1.0
  %6139 = vmatprep.subr.mxu0 0.0
  %6140 = vmatpush1.msra.mxu0 1.0
  %6141 = vmatprep.subr.mxu0 0.0
  %6142 = vmatpush1.msra.mxu0 1.0
  %6143 = vmatprep.subr.mxu0 0.0
  %6144 = vmatpush1.msra.mxu0 1.0
  %6145 = vmatprep.subr.mxu0 0.0
  %6146 = vmatpush1.msra.mxu0 1.0
  %6147 = vmatprep.subr.mxu0 0.0
  %6148 = vmatpush1.msra.mxu0 1.0
  %6149 = vmatprep.subr.mxu0 0.0
  %6150 = vmatpush1.msra.mxu0 1.0
  %6151 = vmatprep.subr.mxu0 0.0
  %6152 = vmatpush1.msra.mxu0 1.0
  %6153 = vmatprep.subr.mxu0 0.0
  %6154 = vmatpush1.msra.mxu0 1.0
  %6155 = vmatprep.subr.mxu0 0.0
  %6156 = vmatpush1.msra.mxu0 1.0
  %6157 = vmatprep.subr.mxu0 0.0
  %6158 = vmatpush1.msra.mxu0 1.0
  %6159 = vmatprep.subr.mxu0 0.0
  %6160 = vmatpush1.msra.mxu0 1.0
  %6161 = vmatprep.subr.mxu0 0.0
  %6162 = vmatpush1.msra.mxu0 1.0
  %6163 = vmatprep.subr.mxu0 0.0
  %6164 = vmatpush1.msra.mxu0 1.0
  %6165 = vmatprep.subr.mxu0 0.0
  %6166 = vmatpush1.msra.mxu0 1.0
  %6167 = vmatprep.subr.mxu0 0.0
  %6168 = vmatpush1.msra.mxu0 1.0
  %6169 = vmatprep.subr.mxu0 0.0
  %6170 = vmatpush1.msra.mxu0 1.0
  %6171 = vmatprep.subr.mxu0 0.0
  %6172 = vmatpush1.msra.mxu0 1.0
  %6173 = vmatprep.subr.mxu0 0.0
  %6174 = vmatpush1.msra.mxu0 1.0
  %6175 = vmatprep.subr.mxu0 0.0
  %6176 = vmatpush1.msra.mxu0 1.0
  %6177 = vmatprep.subr.mxu0 0.0
  %6178 = vmatpush1.msra.mxu0 1.0
  %6179 = vmatprep.subr.mxu0 0.0
  %6180 = vmatpush1.msra.mxu0 1.0
  %6181 = vmatprep.subr.mxu0 0.0
  %6182 = vmatpush1.msra.mxu0 1.0
  %6183 = vmatprep.subr.mxu0 0.0
  %6184 = vmatpush1.msra.mxu0 1.0
  %6185 = vmatprep.subr.mxu0 0.0
  %6186 = vmatpush1.msra.mxu0 1.0
  %6187 = vmatprep.subr.mxu0 0.0
  %6188 = vmatpush1.msra.mxu0 1.0
  %6189 = vmatprep.subr.mxu0 0.0
  %6190 = vmatpush1.msra.mxu0 1.0
  %6191 = vmatprep.subr.mxu0 0.0
  %6192 = vmatpush1.msra.mxu0 1.0
  %6193 = vmatprep.subr.mxu0 0.0
  %6194 = vmatpush1.msra.mxu0 1.0
  %6195 = vmatprep.subr.mxu0 0.0
  %6196 = vmatpush1.msra.mxu0 1.0
  %6197 = vmatprep.subr.mxu0 0.0
  %6198 = vmatpush1.msra.mxu0 1.0
  %v6199 = vand.u32 %v5204, 4294901760
  %6200 = vmatprep.mubr.f32.mxu0 %v6199
  %v6201 = vand.u32 %v5202, 4294901760
  %6202 = vmatmul.mubr.f32.gmra.mrb[0].mxu0 %v6201
  %v6203 = vpop.f32.mrb[0].mxu0
  %v6204 = vadd.f32 %v6125, %v6203
  %v6205 = vpop.f32.mrb[0].mxu0
  %v6206 = vand.u32 %v5209, 4294901760
  %6207 = vmatprep.mubr.f32.mxu0 %v6206
  %v6208 = vand.u32 %v5208, 4294901760
  %6209 = vmatmul.mubr.f32.gmra.mrb[0].mxu0 %v6208
  %v6210 = vpop.f32.mrb[0].mxu0
  %v6211 = vadd.f32 %v6132, %v6210
  %v6212 = vpop.f32.mrb[0].mxu0
  %6213 = vdwg.mxu0
  %v6214 = vmul.f32 %v6204, 0.001953125
  %v6215 = vmul.f32 %v6211, 0.001953125
  %v6216 = vmul.f32 %v6214, %v6214
  %v6217 = vsub.f32 %v6215, %v6216
  %v6218 = vmax.f32 %v6217, 0.0
  %v6219 = vadd.f32 %v6218, 1e-05
  %v6220 = vrsqrt.pop %v6219
  %6222 = vrot.lane.b32.xlu0 %v6220, 74
  %v6223 = vpop.permute.xlu0 %6222
  %v6225 = vmul.f32 %v11, %v6223
  %6227 = vrot.lane.b32.xlu0 %v6225, 54
  %v6228 = vpop.permute.xlu0 %6227
  %v6230 = vmul.f32 %v6214, %v6228
  %6232 = vrot.lane.b32.xlu0 %v6230, 75
  %v6233 = vpop.permute.xlu0 %6232
  %v6235 = vsub.f32 %v11, %v6233
  %6236 = vset.pattern.permute.xlu0 74
  %6237 = vperm.xlu0 %6236, %v6225
  %v6238 = vpop.permute.xlu0 %6237
  %v6240 = vmul.f32 %v5131, %v6238
  %v6241 = vmul.f32 %v5133, %v6238
  %v6242 = vmul.f32 %v5202, %v6238
  %v6243 = vmul.f32 %v5204, %v6238
  %6245 = vset.pattern.permute.xlu0 75
  %6246 = vperm.xlu0 %6245, %v6235
  %v6247 = vpop.permute.xlu0 %6246
  %v6249 = vadd.f32 %v6240, %v6247
  %v6250 = vadd.f32 %v6241, %v6247
  %v6251 = vadd.f32 %v6242, %v6247
  %v6252 = vadd.f32 %v6243, %v6247
  %v6253 = vmax.f32 %v6249, 0.0
  %v6254 = vmax.f32 %v6250, 0.0
  %v6255 = vmax.f32 %v6251, 0.0
  %v6256 = vmax.f32 %v6252, 0.0
  %6257 = vst [vmem:[%s2] sm:$0xff] %v6253
  %6258 = vst [vmem:[%s2 + $0x8] sm:$0xff] %v6254
  %s6259 = scalar_lea.vmem %s2, 16
  %6260 = vst [vmem:[%s6259] sm:$0xff] %v6255
  %6261 = vst [vmem:[%s6259 + $0x8] sm:$0xff] %v6256
  // Predicated region
  $region10: #{mlp_forward.1} parent=0 // pred_check
    _
  $region11: #{mlp_forward.1} parent=0 // pred_check_branch
    %6263 = sbr.rel (0) target = $region13
  $region12: #{mlp_forward.1} parent=0 // pred_region
    _
  $region13: #{mlp_forward.1} parent=0 // pred_fallthru
    _
  // Predicated region
  $region14: #{mlp_forward.1} parent=0 // pred_check
    _
  $region15: #{mlp_forward.1} parent=0 // pred_check_branch
    %6265 = sbr.rel (0) target = $region17
  $region16: #{mlp_forward.1} parent=0 // pred_region
    _
  $region17: #{mlp_forward.1} parent=0 // pred_fallthru
    _

</llo_original>
